<compile_context>
chip_gen: v6e
topology: v6e:2x2x1
jax: 0.10.0
libtpu: 0.0.40
codegen_flags: <defaults>
</compile_context>

<pallas_src>
import functools

import jax
import jax.numpy as jnp
import numpy as np
from jax.experimental import pallas as pl
from jax.experimental.pallas import tpu as pltpu


def _gated_cond_masked_conv_kernel(
    pv_ref, ph_ref, xhc_ref, hemb_ref,
    wv_ref, wh_ref, wr_ref, par_ref,
    out_ref, *, N, HW, C, residual, eps):
  """Fused gated masked conv block.

  pv_ref:   (N*HW, Kv)  bf16  im2col patches for the vertical stack
  ph_ref:   (N*HW, Kh)  bf16  im2col patches for the horizontal stack
  xhc_ref:  (N*HW, C)   f32   original x_h (residual term)
  hemb_ref: (N, 4C)     f32   class embedding duplicated ([emb | emb])
  wv_ref:   (Kv, 4C)    bf16  fused [vert | vert@v2h] weights
  wh_ref:   (Kh, 2C)    bf16  horizontal weights
  wr_ref:   (C, C)      bf16  horiz_resid 1x1 weights
  par_ref:  (9, 4C)     f32   packed biases / BN gamma,beta rows
  out_ref:  (N*HW, 2C)  f32   [out_v | out_h]
  """
  C2 = 2 * C
  C4 = 4 * C
  NHW = N * HW

  # ---- fused vertical conv + vert_to_horiz (single im2col matmul) ----
  hv4 = jnp.dot(pv_ref[...], wv_ref[...], preferred_element_type=jnp.float32)
  hv4 = hv4 + par_ref[0:1, :]                       # fused bias (1, 4C)
  # class-conditional bias: broadcast over spatial positions without
  # materializing a (NHW, 2C) temporary.
  hv4 = (hv4.reshape(N, HW, C4) + hemb_ref[...][:, None, :]).reshape(NHW, C4)

  # ---- horizontal masked conv (single im2col matmul) ----
  hh = jnp.dot(ph_ref[...], wh_ref[...], preferred_element_type=jnp.float32)
  hh = hh + par_ref[1:2, :C2]

  gv_in = hv4[:, :C2]                               # h_vert + cond
  gh_in = hv4[:, C2:] + hh                          # v2h + h_horiz + cond

  def gated(t, gamma, beta):
    # GatedActivation: chunk(2) -> BatchNorm2d (batch stats) -> ReLU -> *sigmoid
    x = t[:, :C]
    y = t[:, C:]
    mean = jnp.mean(x, axis=0, keepdims=True)
    var = jnp.mean(jnp.square(x - mean), axis=0, keepdims=True)   # biased var
    xn = (x - mean) * jax.lax.rsqrt(var + eps) * gamma + beta
    gate = pl.reciprocal(1.0 + jnp.exp(-y), approx=True)          # EUP sigmoid
    return jnp.maximum(xn, 0.0) * gate

  out_v = gated(gv_in, par_ref[3:4, :C], par_ref[4:5, :C])
  out_hg = gated(gh_in, par_ref[5:6, :C], par_ref[6:7, :C])

  # ---- horiz_resid: 1x1 conv + BatchNorm2d (+ residual input) ----
  r = jnp.dot(out_hg.astype(jnp.bfloat16), wr_ref[...],
              preferred_element_type=jnp.float32) + par_ref[2:3, :C]
  rmean = jnp.mean(r, axis=0, keepdims=True)
  rvar = jnp.mean(jnp.square(r - rmean), axis=0, keepdims=True)
  r = (r - rmean) * jax.lax.rsqrt(rvar + eps) * par_ref[7:8, :C] + par_ref[8:9, :C]
  if residual:
    r = r + xhc_ref[...]

  # lane-dense concatenated writeback: [out_v | out_h]
  out_ref[:, :C] = out_v
  out_ref[:, C:] = r


def conditional_gated_masked_conv2d(x_v, x_h, h_idx, params, *,
                                    mask_type, kernel, residual):
  """x_v, x_h: (N, C, H, W) float32 (NCHW, PyTorch convention); h_idx: (N,) int."""
  N, C, H, W = x_v.shape
  assert H == W, "module's slicing logic assumes square spatial dims"
  k = kernel
  p = k // 2
  kh = p + 1
  eps = 1e-5

  # mask 'A' (make_causal) zeroes the last vertical kernel row and the last
  # horizontal kernel column -> simply drop those taps at trace time.
  n_vr = p if mask_type == 'A' else kh      # vertical kernel rows kept
  n_hc = p if mask_type == 'A' else kh      # horizontal kernel cols kept
  assert n_vr >= 1 and n_hc >= 1, "kernel=1 with mask 'A' zeroes the convs"

  C2, C4 = 2 * C, 4 * C
  HW = H * W
  NHW = N * HW

  Wv, bv = params['vert_w'], params['vert_b']        # (2C, C, p+1, k), (2C,)
  Wv2h, bv2h = params['v2h_w'], params['v2h_b']      # (2C, 2C, 1, 1), (2C,)
  Wh, bh = params['horiz_w'], params['horiz_b']      # (2C, C, 1, p+1), (2C,)
  Wr, br = params['res_w'], params['res_b']          # (C, C, 1, 1), (C,)

  # ---- fused weights: per-tap (C,2C) matrices stacked into one im2col RHS ----
  wv_taps = jnp.transpose(Wv, (2, 3, 1, 0))[:n_vr]           # (n_vr, k, C, 2C)
  wv_stack = wv_taps.reshape(n_vr * k * C, C2).astype(jnp.float32)
  wv2h_m = jnp.transpose(Wv2h[:, :, 0, 0], (1, 0)).astype(jnp.float32)  # (2C,2C) in->out
  # fold vert_to_horiz into the vertical matmul: output columns = [h_vert | v2h]
  wv_big = jnp.concatenate([wv_stack, wv_stack @ wv2h_m],
                           axis=1).astype(jnp.bfloat16)       # (Kv, 4C)
  wh_taps = jnp.transpose(Wh, (2, 3, 1, 0))[0, :n_hc]         # (n_hc, C, 2C)
  wh_stack = wh_taps.reshape(n_hc * C, C2).astype(jnp.bfloat16)
  wr_m = jnp.transpose(Wr[:, :, 0, 0], (1, 0)).astype(jnp.bfloat16)     # (C, C)

  bv_f = jnp.asarray(bv, jnp.float32)
  bv4 = jnp.concatenate([bv_f, bv_f @ wv2h_m + jnp.asarray(bv2h, jnp.float32)])

  # ---- pack the 9 small bias/gamma/beta vectors into one (9, 4C) array ----
  def _row(v):
    v = jnp.asarray(v, jnp.float32).reshape(-1)
    return jnp.pad(v, (0, C4 - v.shape[0]))
  par = jnp.stack([_row(bv4), _row(bh), _row(br),
                   _row(params['gv_gamma']), _row(params['gv_beta']),
                   _row(params['gh_gamma']), _row(params['gh_beta']),
                   _row(params['gr_gamma']), _row(params['gr_beta'])], axis=0)

  # embedding lookup (glue, stays in XLA); duplicated so one add covers hv & v2h
  hemb = jnp.take(params['emb'], h_idx, axis=0).astype(jnp.float32)     # (N, 2C)
  hemb4 = jnp.concatenate([hemb, hemb], axis=1)                          # (N, 4C)

  # ---- im2col built once in the wrapper (NCHW -> NHWC, PyTorch-style pad) ----
  xv_nhwc = jnp.transpose(x_v, (0, 2, 3, 1)).astype(jnp.float32)
  xh_nhwc = jnp.transpose(x_h, (0, 2, 3, 1)).astype(jnp.float32)
  xv_pad = jnp.pad(xv_nhwc, ((0, 0), (p, p), (p, p), (0, 0)))
  xh_pad = jnp.pad(xh_nhwc, ((0, 0), (0, 0), (p, p), (0, 0)))

  v_slices = [xv_pad[:, dy:dy + H, dx:dx + W, :]
              for dy in range(n_vr) for dx in range(k)]
  pv = jnp.concatenate(v_slices, axis=-1).reshape(NHW, n_vr * k * C)
  pv = pv.astype(jnp.bfloat16)
  h_slices = [xh_pad[:, :, dx:dx + W, :] for dx in range(n_hc)]
  ph = jnp.concatenate(h_slices, axis=-1).reshape(NHW, n_hc * C)
  ph = ph.astype(jnp.bfloat16)
  xhc = xh_nhwc.reshape(NHW, C)            # exact f32 residual term

  kern = functools.partial(_gated_cond_masked_conv_kernel,
                           N=N, HW=HW, C=C, residual=residual, eps=eps)
  vmem = pltpu.MemorySpace.VMEM
  out = pl.pallas_call(
      kern,
      out_shape=jax.ShapeDtypeStruct((NHW, C2), jnp.float32),
      in_specs=[pl.BlockSpec(memory_space=vmem)] * 8,
      out_specs=pl.BlockSpec(memory_space=vmem),
  )(pv, ph, xhc, hemb4, wv_big, wh_stack, wr_m, par)

  out = out.reshape(N, H, W, C2)
  out_v = jnp.transpose(out[..., :C], (0, 3, 1, 2))
  out_h = jnp.transpose(out[..., C:], (0, 3, 1, 2))
  return out_v, out_h


# ----------------------------- pure-JAX reference -----------------------------
def _conv_nchw(x, w, b, pad):
  y = jax.lax.conv_general_dilated(
      x, w, window_strides=(1, 1),
      padding=((pad[0], pad[0]), (pad[1], pad[1])),
      dimension_numbers=('NCHW', 'OIHW', 'NCHW'))
  return y + b[None, :, None, None]


def reference_forward(x_v, x_h, h_idx, params, *, mask_type, kernel, residual):
  N, C, H, W = x_v.shape
  k = kernel
  p = k // 2
  eps = 1e-5
  Wv, bv = params['vert_w'], params['vert_b']
  Wv2h, bv2h = params['v2h_w'], params['v2h_b']
  Wh, bh = params['horiz_w'], params['horiz_b']
  Wr, br = params['res_w'], params['res_b']
  if mask_type == 'A':
    Wv = Wv.at[:, :, -1].set(0.0)
    Wh = Wh.at[:, :, :, -1].set(0.0)
  hemb = params['emb'][h_idx]

  def bn(x, g, b):
    m = x.mean(axis=(0, 2, 3), keepdims=True)
    v = ((x - m) ** 2).mean(axis=(0, 2, 3), keepdims=True)
    return (x - m) / jnp.sqrt(v + eps) * g[None, :, None, None] + b[None, :, None, None]

  def gated(t, g, b):
    xx, yy = t[:, :C], t[:, C:]
    return jnp.maximum(bn(xx, g, b), 0.0) * jax.nn.sigmoid(yy)

  h_vert = _conv_nchw(x_v, Wv, bv, (p, p))[:, :, :W, :]
  out_v = gated(h_vert + hemb[:, :, None, None],
                params['gv_gamma'], params['gv_beta'])
  h_horiz = _conv_nchw(x_h, Wh, bh, (0, p))[:, :, :, :H]
  v2h = _conv_nchw(h_vert, Wv2h, bv2h, (0, 0))
  out_h = gated(v2h + h_horiz + hemb[:, :, None, None],
                params['gh_gamma'], params['gh_beta'])
  r = bn(_conv_nchw(out_h, Wr, br, (0, 0)), params['gr_gamma'], params['gr_beta'])
  out_h = r + x_h if residual else r
  return out_v, out_h


if __name__ == "__main__":
  # Module config (small, consistent with the PyTorch __init__)
  N, C, H, W = 2, 32, 16, 16          # batch, hidden_size, spatial
  k = 3                               # odd kernel
  num_mode = 4
  kh = k // 2 + 1

  key = jax.random.PRNGKey(0)
  ks = jax.random.split(key, 20)
  nrm = lambda kk, shape, s=0.1: s * jax.random.normal(kk, shape, jnp.float32)

  params = dict(
      emb=nrm(ks[0], (num_mode, 2 * C), 0.5),
      vert_w=nrm(ks[1], (2 * C, C, kh, k)),
      vert_b=nrm(ks[2], (2 * C,)),
      v2h_w=nrm(ks[3], (2 * C, 2 * C, 1, 1)),
      v2h_b=nrm(ks[4], (2 * C,)),
      horiz_w=nrm(ks[5], (2 * C, C, 1, kh)),
      horiz_b=nrm(ks[6], (2 * C,)),
      res_w=nrm(ks[7], (C, C, 1, 1)),
      res_b=nrm(ks[8], (C,)),
      gv_gamma=1.0 + nrm(ks[9], (C,)),
      gv_beta=nrm(ks[10], (C,)),
      gh_gamma=1.0 + nrm(ks[11], (C,)),
      gh_beta=nrm(ks[12], (C,)),
      gr_gamma=1.0 + nrm(ks[13], (C,)),
      gr_beta=nrm(ks[14], (C,)),
  )

  x_v = jax.random.normal(ks[15], (N, C, H, W), jnp.float32)
  x_h = jax.random.normal(ks[16], (N, C, H, W), jnp.float32)
  h_idx = jax.random.randint(ks[17], (N,), 0, num_mode)

  # exercise both mask types / residual modes (tap-trimming path differs)
  for mask_type, residual in (('A', True), ('B', False)):
    out_v, out_h = conditional_gated_masked_conv2d(
        x_v, x_h, h_idx, params, mask_type=mask_type, kernel=k, residual=residual)
    jax.block_until_ready((out_v, out_h))

    ref_v, ref_h = reference_forward(
        x_v, x_h, h_idx, params, mask_type=mask_type, kernel=k, residual=residual)

    # Loose tolerance: bf16 MXU matmuls in the kernel vs XLA f32 conv reference.
    np.testing.assert_allclose(np.asarray(out_v), np.asarray(ref_v),
                               atol=5e-2, rtol=5e-2)
    np.testing.assert_allclose(np.asarray(out_h), np.asarray(ref_h),
                               atol=5e-2, rtol=5e-2)

  print("KERNEL_OK")
</pallas_src>

<mosaic_0001>
module attributes {stable_mosaic.version = 11 : i64} {
  func.func @_gated_cond_masked_conv_kernel(%arg0: memref<512x96xbf16, #tpu.memory_space<vmem>>, %arg1: memref<512x32xbf16, #tpu.memory_space<vmem>>, %arg2: memref<512x32xf32, #tpu.memory_space<vmem>>, %arg3: memref<2x128xf32, #tpu.memory_space<vmem>>, %arg4: memref<96x128xbf16, #tpu.memory_space<vmem>>, %arg5: memref<32x64xbf16, #tpu.memory_space<vmem>>, %arg6: memref<32x32xbf16, #tpu.memory_space<vmem>>, %arg7: memref<9x128xf32, #tpu.memory_space<vmem>>, %arg8: memref<512x64xf32, #tpu.memory_space<vmem>>) attributes {dimension_semantics = [], scalar_prefetch = 0 : i64, scratch_operands = 0 : i64, tpu.core_type = #tpu.core_type<tc>} {
    %c0 = arith.constant 0 : index
    %c0_0 = arith.constant 0 : index
    %0 = vector.load %arg0[%c0, %c0_0] : memref<512x96xbf16, #tpu.memory_space<vmem>>, vector<512x96xbf16>
    %c0_1 = arith.constant 0 : index
    %c0_2 = arith.constant 0 : index
    %1 = vector.load %arg4[%c0_1, %c0_2] : memref<96x128xbf16, #tpu.memory_space<vmem>>, vector<96x128xbf16>
    %cst = arith.constant dense<0.000000e+00> : vector<512x128xf32>
    %2 = tpu.matmul %0, %1, %cst {dimension_numbers = #tpu.dot_dimension_numbers<[1], [0], [0], [1], [0, 0, 1, 1], [], []>} : vector<512x96xbf16>, vector<96x128xbf16>, vector<512x128xf32> -> vector<512x128xf32>
    %c0_3 = arith.constant 0 : index
    %c0_4 = arith.constant 0 : index
    %3 = vector.load %arg7[%c0_3, %c0_4] : memref<9x128xf32, #tpu.memory_space<vmem>>, vector<1x128xf32>
    %4 = vector.broadcast %3 : vector<1x128xf32> to vector<512x128xf32>
    %5 = arith.addf %2, %4 : vector<512x128xf32>
    %6 = vector.shape_cast %5 : vector<512x128xf32> to vector<2x256x128xf32>
    %c0_5 = arith.constant 0 : index
    %c0_6 = arith.constant 0 : index
    %7 = vector.load %arg3[%c0_5, %c0_6] : memref<2x128xf32, #tpu.memory_space<vmem>>, vector<2x128xf32>
    %8 = vector.shape_cast %7 : vector<2x128xf32> to vector<2x1x128xf32>
    %9 = vector.broadcast %8 : vector<2x1x128xf32> to vector<2x256x128xf32>
    %10 = arith.addf %6, %9 : vector<2x256x128xf32>
    %11 = vector.shape_cast %10 : vector<2x256x128xf32> to vector<512x128xf32>
    %c0_7 = arith.constant 0 : index
    %c0_8 = arith.constant 0 : index
    %12 = vector.load %arg1[%c0_7, %c0_8] : memref<512x32xbf16, #tpu.memory_space<vmem>>, vector<512x32xbf16>
    %c0_9 = arith.constant 0 : index
    %c0_10 = arith.constant 0 : index
    %13 = vector.load %arg5[%c0_9, %c0_10] : memref<32x64xbf16, #tpu.memory_space<vmem>>, vector<32x64xbf16>
    %cst_11 = arith.constant dense<0.000000e+00> : vector<512x64xf32>
    %14 = tpu.matmul %12, %13, %cst_11 {dimension_numbers = #tpu.dot_dimension_numbers<[1], [0], [0], [1], [0, 0, 1, 1], [], []>} : vector<512x32xbf16>, vector<32x64xbf16>, vector<512x64xf32> -> vector<512x64xf32>
    %c1 = arith.constant 1 : index
    %c0_12 = arith.constant 0 : index
    %15 = vector.load %arg7[%c1, %c0_12] : memref<9x128xf32, #tpu.memory_space<vmem>>, vector<1x64xf32>
    %16 = vector.broadcast %15 : vector<1x64xf32> to vector<512x64xf32>
    %17 = arith.addf %14, %16 : vector<512x64xf32>
    %18 = vector.extract_strided_slice %11 {offsets = [0, 0], sizes = [512, 64], strides = [1, 1]} : vector<512x128xf32> to vector<512x64xf32>
    %19 = vector.extract_strided_slice %11 {offsets = [0, 64], sizes = [512, 64], strides = [1, 1]} : vector<512x128xf32> to vector<512x64xf32>
    %20 = arith.addf %19, %17 : vector<512x64xf32>
    %c3 = arith.constant 3 : index
    %c0_13 = arith.constant 0 : index
    %21 = vector.load %arg7[%c3, %c0_13] : memref<9x128xf32, #tpu.memory_space<vmem>>, vector<1x32xf32>
    %c4 = arith.constant 4 : index
    %c0_14 = arith.constant 0 : index
    %22 = vector.load %arg7[%c4, %c0_14] : memref<9x128xf32, #tpu.memory_space<vmem>>, vector<1x32xf32>
    %23 = vector.extract_strided_slice %18 {offsets = [0, 0], sizes = [512, 32], strides = [1, 1]} : vector<512x64xf32> to vector<512x32xf32>
    %24 = vector.extract_strided_slice %18 {offsets = [0, 32], sizes = [512, 32], strides = [1, 1]} : vector<512x64xf32> to vector<512x32xf32>
    %cst_15 = arith.constant dense<0.000000e+00> : vector<32xf32>
    %25 = vector.multi_reduction <add>, %23, %cst_15 [0] : vector<512x32xf32> to vector<32xf32>
    %26 = vector.shape_cast %25 : vector<32xf32> to vector<1x32xf32>
    %cst_16 = arith.constant 5.120000e+02 : f32
    %27 = vector.broadcast %cst_16 : f32 to vector<1x32xf32>
    %28 = arith.divf %26, %27 : vector<1x32xf32>
    %29 = vector.broadcast %28 : vector<1x32xf32> to vector<512x32xf32>
    %30 = arith.subf %23, %29 : vector<512x32xf32>
    %31 = arith.mulf %30, %30 : vector<512x32xf32>
    %cst_17 = arith.constant dense<0.000000e+00> : vector<32xf32>
    %32 = vector.multi_reduction <add>, %31, %cst_17 [0] : vector<512x32xf32> to vector<32xf32>
    %33 = vector.shape_cast %32 : vector<32xf32> to vector<1x32xf32>
    %cst_18 = arith.constant 5.120000e+02 : f32
    %34 = vector.broadcast %cst_18 : f32 to vector<1x32xf32>
    %35 = arith.divf %33, %34 : vector<1x32xf32>
    %36 = vector.broadcast %28 : vector<1x32xf32> to vector<512x32xf32>
    %37 = arith.subf %23, %36 : vector<512x32xf32>
    %cst_19 = arith.constant 9.99999974E-6 : f32
    %38 = vector.broadcast %cst_19 : f32 to vector<1x32xf32>
    %39 = arith.addf %35, %38 : vector<1x32xf32>
    %40 = math.rsqrt %39 : vector<1x32xf32>
    %41 = vector.broadcast %40 : vector<1x32xf32> to vector<512x32xf32>
    %42 = arith.mulf %37, %41 : vector<512x32xf32>
    %43 = vector.broadcast %21 : vector<1x32xf32> to vector<512x32xf32>
    %44 = arith.mulf %42, %43 : vector<512x32xf32>
    %45 = vector.broadcast %22 : vector<1x32xf32> to vector<512x32xf32>
    %46 = arith.addf %44, %45 : vector<512x32xf32>
    %cst_20 = arith.constant 0.000000e+00 : f32
    %47 = vector.broadcast %cst_20 : f32 to vector<512x32xf32>
    %48 = arith.subf %47, %24 : vector<512x32xf32>
    %49 = math.exp %48 : vector<512x32xf32>
    %cst_21 = arith.constant 1.000000e+00 : f32
    %50 = vector.broadcast %cst_21 : f32 to vector<512x32xf32>
    %51 = arith.addf %50, %49 : vector<512x32xf32>
    %52 = tpu.reciprocal %51 {approx = true} : vector<512x32xf32> -> vector<512x32xf32>
    %cst_22 = arith.constant 0.000000e+00 : f32
    %53 = vector.broadcast %cst_22 : f32 to vector<512x32xf32>
    %54 = arith.maximumf %46, %53 : vector<512x32xf32>
    %55 = arith.mulf %54, %52 : vector<512x32xf32>
    %c5 = arith.constant 5 : index
    %c0_23 = arith.constant 0 : index
    %56 = vector.load %arg7[%c5, %c0_23] : memref<9x128xf32, #tpu.memory_space<vmem>>, vector<1x32xf32>
    %c6 = arith.constant 6 : index
    %c0_24 = arith.constant 0 : index
    %57 = vector.load %arg7[%c6, %c0_24] : memref<9x128xf32, #tpu.memory_space<vmem>>, vector<1x32xf32>
    %58 = vector.extract_strided_slice %20 {offsets = [0, 0], sizes = [512, 32], strides = [1, 1]} : vector<512x64xf32> to vector<512x32xf32>
    %59 = vector.extract_strided_slice %20 {offsets = [0, 32], sizes = [512, 32], strides = [1, 1]} : vector<512x64xf32> to vector<512x32xf32>
    %cst_25 = arith.constant dense<0.000000e+00> : vector<32xf32>
    %60 = vector.multi_reduction <add>, %58, %cst_25 [0] : vector<512x32xf32> to vector<32xf32>
    %61 = vector.shape_cast %60 : vector<32xf32> to vector<1x32xf32>
    %cst_26 = arith.constant 5.120000e+02 : f32
    %62 = vector.broadcast %cst_26 : f32 to vector<1x32xf32>
    %63 = arith.divf %61, %62 : vector<1x32xf32>
    %64 = vector.broadcast %63 : vector<1x32xf32> to vector<512x32xf32>
    %65 = arith.subf %58, %64 : vector<512x32xf32>
    %66 = arith.mulf %65, %65 : vector<512x32xf32>
    %cst_27 = arith.constant dense<0.000000e+00> : vector<32xf32>
    %67 = vector.multi_reduction <add>, %66, %cst_27 [0] : vector<512x32xf32> to vector<32xf32>
    %68 = vector.shape_cast %67 : vector<32xf32> to vector<1x32xf32>
    %cst_28 = arith.constant 5.120000e+02 : f32
    %69 = vector.broadcast %cst_28 : f32 to vector<1x32xf32>
    %70 = arith.divf %68, %69 : vector<1x32xf32>
    %71 = vector.broadcast %63 : vector<1x32xf32> to vector<512x32xf32>
    %72 = arith.subf %58, %71 : vector<512x32xf32>
    %cst_29 = arith.constant 9.99999974E-6 : f32
    %73 = vector.broadcast %cst_29 : f32 to vector<1x32xf32>
    %74 = arith.addf %70, %73 : vector<1x32xf32>
    %75 = math.rsqrt %74 : vector<1x32xf32>
    %76 = vector.broadcast %75 : vector<1x32xf32> to vector<512x32xf32>
    %77 = arith.mulf %72, %76 : vector<512x32xf32>
    %78 = vector.broadcast %56 : vector<1x32xf32> to vector<512x32xf32>
    %79 = arith.mulf %77, %78 : vector<512x32xf32>
    %80 = vector.broadcast %57 : vector<1x32xf32> to vector<512x32xf32>
    %81 = arith.addf %79, %80 : vector<512x32xf32>
    %cst_30 = arith.constant 0.000000e+00 : f32
    %82 = vector.broadcast %cst_30 : f32 to vector<512x32xf32>
    %83 = arith.subf %82, %59 : vector<512x32xf32>
    %84 = math.exp %83 : vector<512x32xf32>
    %cst_31 = arith.constant 1.000000e+00 : f32
    %85 = vector.broadcast %cst_31 : f32 to vector<512x32xf32>
    %86 = arith.addf %85, %84 : vector<512x32xf32>
    %87 = tpu.reciprocal %86 {approx = true} : vector<512x32xf32> -> vector<512x32xf32>
    %cst_32 = arith.constant 0.000000e+00 : f32
    %88 = vector.broadcast %cst_32 : f32 to vector<512x32xf32>
    %89 = arith.maximumf %81, %88 : vector<512x32xf32>
    %90 = arith.mulf %89, %87 : vector<512x32xf32>
    %91 = arith.truncf %90 : vector<512x32xf32> to vector<512x32xbf16>
    %c0_33 = arith.constant 0 : index
    %c0_34 = arith.constant 0 : index
    %92 = vector.load %arg6[%c0_33, %c0_34] : memref<32x32xbf16, #tpu.memory_space<vmem>>, vector<32x32xbf16>
    %cst_35 = arith.constant dense<0.000000e+00> : vector<512x32xf32>
    %93 = tpu.matmul %91, %92, %cst_35 {dimension_numbers = #tpu.dot_dimension_numbers<[1], [0], [0], [1], [0, 0, 1, 1], [], []>} : vector<512x32xbf16>, vector<32x32xbf16>, vector<512x32xf32> -> vector<512x32xf32>
    %c2 = arith.constant 2 : index
    %c0_36 = arith.constant 0 : index
    %94 = vector.load %arg7[%c2, %c0_36] : memref<9x128xf32, #tpu.memory_space<vmem>>, vector<1x32xf32>
    %95 = vector.broadcast %94 : vector<1x32xf32> to vector<512x32xf32>
    %96 = arith.addf %93, %95 : vector<512x32xf32>
    %cst_37 = arith.constant dense<0.000000e+00> : vector<32xf32>
    %97 = vector.multi_reduction <add>, %96, %cst_37 [0] : vector<512x32xf32> to vector<32xf32>
    %98 = vector.shape_cast %97 : vector<32xf32> to vector<1x32xf32>
    %cst_38 = arith.constant 5.120000e+02 : f32
    %99 = vector.broadcast %cst_38 : f32 to vector<1x32xf32>
    %100 = arith.divf %98, %99 : vector<1x32xf32>
    %101 = vector.broadcast %100 : vector<1x32xf32> to vector<512x32xf32>
    %102 = arith.subf %96, %101 : vector<512x32xf32>
    %103 = arith.mulf %102, %102 : vector<512x32xf32>
    %cst_39 = arith.constant dense<0.000000e+00> : vector<32xf32>
    %104 = vector.multi_reduction <add>, %103, %cst_39 [0] : vector<512x32xf32> to vector<32xf32>
    %105 = vector.shape_cast %104 : vector<32xf32> to vector<1x32xf32>
    %cst_40 = arith.constant 5.120000e+02 : f32
    %106 = vector.broadcast %cst_40 : f32 to vector<1x32xf32>
    %107 = arith.divf %105, %106 : vector<1x32xf32>
    %108 = vector.broadcast %100 : vector<1x32xf32> to vector<512x32xf32>
    %109 = arith.subf %96, %108 : vector<512x32xf32>
    %cst_41 = arith.constant 9.99999974E-6 : f32
    %110 = vector.broadcast %cst_41 : f32 to vector<1x32xf32>
    %111 = arith.addf %107, %110 : vector<1x32xf32>
    %112 = math.rsqrt %111 : vector<1x32xf32>
    %113 = vector.broadcast %112 : vector<1x32xf32> to vector<512x32xf32>
    %114 = arith.mulf %109, %113 : vector<512x32xf32>
    %c7 = arith.constant 7 : index
    %c0_42 = arith.constant 0 : index
    %115 = vector.load %arg7[%c7, %c0_42] : memref<9x128xf32, #tpu.memory_space<vmem>>, vector<1x32xf32>
    %116 = vector.broadcast %115 : vector<1x32xf32> to vector<512x32xf32>
    %117 = arith.mulf %114, %116 : vector<512x32xf32>
    %c8 = arith.constant 8 : index
    %c0_43 = arith.constant 0 : index
    %118 = vector.load %arg7[%c8, %c0_43] : memref<9x128xf32, #tpu.memory_space<vmem>>, vector<1x32xf32>
    %119 = vector.broadcast %118 : vector<1x32xf32> to vector<512x32xf32>
    %120 = arith.addf %117, %119 : vector<512x32xf32>
    %c0_44 = arith.constant 0 : index
    %c0_45 = arith.constant 0 : index
    %121 = vector.load %arg2[%c0_44, %c0_45] : memref<512x32xf32, #tpu.memory_space<vmem>>, vector<512x32xf32>
    %122 = arith.addf %120, %121 : vector<512x32xf32>
    %c0_46 = arith.constant 0 : index
    %c0_47 = arith.constant 0 : index
    %123 = vector.load %arg8[%c0_46, %c0_47] : memref<512x64xf32, #tpu.memory_space<vmem>>, vector<512x32xf32>
    tpu.vector_store %arg8[%c0_46, %c0_47], %55 {strides = array<i32>} : memref<512x64xf32, #tpu.memory_space<vmem>>, vector<512x32xf32>,
    %c0_48 = arith.constant 0 : index
    %c32 = arith.constant 32 : index
    %124 = vector.load %arg8[%c0_48, %c32] : memref<512x64xf32, #tpu.memory_space<vmem>>, vector<512x32xf32>
    tpu.vector_store %arg8[%c0_48, %c32], %122 {strides = array<i32>} : memref<512x64xf32, #tpu.memory_space<vmem>>, vector<512x32xf32>,
    return
  }
}

</mosaic_0001>

<llo_original>
// kernel: tpu_custom_call.1
$region0: #{tpu_custom_call.1}
  #allocation0 [shape = 'u32[]', space=smem, size = 0x4, offset = 0x4, fixed_abs, tag = 'smem constant byte address 0x4 - core index']
  #allocation1 [shape = 'u32[144,128]{1,0:T(1,128)}', space=vmem, size = 0x12000, scoped, tag = 'internal scratch']
  %s0 = inlined_call_operand.vmem [shape: bf16[512,96], index: 0, kind: input, shape index: {}]
  %s1 = inlined_call_operand.vmem [shape: bf16[512,32], index: 1, kind: input, shape index: {}]
  %s2 = inlined_call_operand.vmem [shape: f32[512,32], index: 2, kind: input, shape index: {}]
  %s3 = inlined_call_operand.vmem [shape: f32[2,128], index: 3, kind: input, shape index: {}]
  %s4 = inlined_call_operand.vmem [shape: bf16[96,128], index: 4, kind: input, shape index: {}]
  %s5 = inlined_call_operand.vmem [shape: bf16[32,64], index: 5, kind: input, shape index: {}]
  %s6 = inlined_call_operand.vmem [shape: bf16[32,32], index: 6, kind: input, shape index: {}]
  %s7 = inlined_call_operand.vmem [shape: f32[9,128], index: 7, kind: input, shape index: {}]
  %s8 = inlined_call_operand.vmem [shape: f32[512,64], index: 8, kind: output, shape index: {}]
  %s9 = sld [smem:[#allocation0]]
  $region42: #{tpu_custom_call.1} parent=0
    _
  %s11 = ssub.s32 1, %s9
  %s12 = scalar_select 0, %s11, %s9
  // Predicated region
  $region2: #{tpu_custom_call.1} parent=0 // pred_check
    _
  $region3: #{tpu_custom_call.1} parent=0 // pred_check_branch
    %14 = sbr.rel (0) target = $region5
  $region4: #{tpu_custom_call.1} parent=0 // pred_region
    _
  $region5: #{tpu_custom_call.1} parent=0 // pred_fallthru
    _
  // Predicated region
  $region6: #{tpu_custom_call.1} parent=0 // pred_check
    _
  $region7: #{tpu_custom_call.1} parent=0 // pred_check_branch
    %16 = sbr.rel (0) target = $region9
  $region8: #{tpu_custom_call.1} parent=0 // pred_region
    _
  $region9: #{tpu_custom_call.1} parent=0 // pred_fallthru
    _
  // Predicated region
  $region10: #{tpu_custom_call.1} parent=0 // pred_check
    _
  $region11: #{tpu_custom_call.1} parent=0 // pred_check_branch
    %18 = sbr.rel (0) target = $region13
  $region12: #{tpu_custom_call.1} parent=0 // pred_region
    _
  $region13: #{tpu_custom_call.1} parent=0 // pred_fallthru
    _
  // Predicated region
  $region14: #{tpu_custom_call.1} parent=0 // pred_check
    _
  $region15: #{tpu_custom_call.1} parent=0 // pred_check_branch
    %20 = sbr.rel (0) target = $region17
  $region16: #{tpu_custom_call.1} parent=0 // pred_region
    _
  $region17: #{tpu_custom_call.1} parent=0 // pred_fallthru
    _
  // Predicated region
  $region18: #{tpu_custom_call.1} parent=0 // pred_check
    _
  $region19: #{tpu_custom_call.1} parent=0 // pred_check_branch
    %22 = sbr.rel (0) target = $region21
  $region20: #{tpu_custom_call.1} parent=0 // pred_region
    _
  $region21: #{tpu_custom_call.1} parent=0 // pred_fallthru
    _
  // Predicated region
  $region22: #{tpu_custom_call.1} parent=0 // pred_check
    _
  $region23: #{tpu_custom_call.1} parent=0 // pred_check_branch
    %24 = sbr.rel (0) target = $region25
  $region24: #{tpu_custom_call.1} parent=0 // pred_region
    _
  $region25: #{tpu_custom_call.1} parent=0 // pred_fallthru
    _
  // Predicated region
  $region26: #{tpu_custom_call.1} parent=0 // pred_check
    _
  $region27: #{tpu_custom_call.1} parent=0 // pred_check_branch
    %26 = sbr.rel (0) target = $region29
  $region28: #{tpu_custom_call.1} parent=0 // pred_region
    _
  $region29: #{tpu_custom_call.1} parent=0 // pred_fallthru
    _
  // Predicated region
  $region30: #{tpu_custom_call.1} parent=0 // pred_check
    _
  $region31: #{tpu_custom_call.1} parent=0 // pred_check_branch
    %28 = sbr.rel (0) target = $region33
  $region32: #{tpu_custom_call.1} parent=0 // pred_region
    _
  $region33: #{tpu_custom_call.1} parent=0 // pred_fallthru
    _
  %v30 = vld [vmem:[%s0] sm:$0xf]
  %v31 = vld [vmem:[%s0 + $0x4] sm:$0xf]
  %v32 = vld [vmem:[%s0 + $0x8] sm:$0xf]
  %v33 = vld [vmem:[%s0 + $0xc] sm:$0xf]
  %v34 = vld [vmem:[%s0 + $0x10] sm:$0xf]
  %v35 = vld [vmem:[%s0 + $0x14] sm:$0xf]
  %v36 = vld [vmem:[%s0 + $0x18] sm:$0xf]
  %v37 = vld [vmem:[%s0 + $0x1c] sm:$0xf]
  %v38 = vld [vmem:[%s0 + $0x20] sm:$0xf]
  %v39 = vld [vmem:[%s0 + $0x24] sm:$0xf]
  %v40 = vld [vmem:[%s0 + $0x28] sm:$0xf]
  %v41 = vld [vmem:[%s0 + $0x2c] sm:$0xf]
  %v42 = vld [vmem:[%s0 + $0x30] sm:$0xf]
  %v43 = vld [vmem:[%s0 + $0x34] sm:$0xf]
  %v44 = vld [vmem:[%s0 + $0x38] sm:$0xf]
  %v45 = vld [vmem:[%s0 + $0x3c] sm:$0xf]
  %v46 = vld [vmem:[%s0 + $0x40] sm:$0xf]
  %v47 = vld [vmem:[%s0 + $0x44] sm:$0xf]
  %v48 = vld [vmem:[%s0 + $0x48] sm:$0xf]
  %v49 = vld [vmem:[%s0 + $0x4c] sm:$0xf]
  %v50 = vld [vmem:[%s0 + $0x50] sm:$0xf]
  %v51 = vld [vmem:[%s0 + $0x54] sm:$0xf]
  %v52 = vld [vmem:[%s0 + $0x58] sm:$0xf]
  %v53 = vld [vmem:[%s0 + $0x5c] sm:$0xf]
  %v54 = vld [vmem:[%s0 + $0x60] sm:$0xf]
  %v55 = vld [vmem:[%s0 + $0x64] sm:$0xf]
  %v56 = vld [vmem:[%s0 + $0x68] sm:$0xf]
  %v57 = vld [vmem:[%s0 + $0x6c] sm:$0xf]
  %v58 = vld [vmem:[%s0 + $0x70] sm:$0xf]
  %v59 = vld [vmem:[%s0 + $0x74] sm:$0xf]
  %v60 = vld [vmem:[%s0 + $0x78] sm:$0xf]
  %v61 = vld [vmem:[%s0 + $0x7c] sm:$0xf]
  %v62 = vld [vmem:[%s0 + $0x80] sm:$0xf]
  %v63 = vld [vmem:[%s0 + $0x84] sm:$0xf]
  %v64 = vld [vmem:[%s0 + $0x88] sm:$0xf]
  %v65 = vld [vmem:[%s0 + $0x8c] sm:$0xf]
  %v66 = vld [vmem:[%s0 + $0x90] sm:$0xf]
  %v67 = vld [vmem:[%s0 + $0x94] sm:$0xf]
  %v68 = vld [vmem:[%s0 + $0x98] sm:$0xf]
  %v69 = vld [vmem:[%s0 + $0x9c] sm:$0xf]
  %v70 = vld [vmem:[%s0 + $0xa0] sm:$0xf]
  %v71 = vld [vmem:[%s0 + $0xa4] sm:$0xf]
  %v72 = vld [vmem:[%s0 + $0xa8] sm:$0xf]
  %v73 = vld [vmem:[%s0 + $0xac] sm:$0xf]
  %v74 = vld [vmem:[%s0 + $0xb0] sm:$0xf]
  %v75 = vld [vmem:[%s0 + $0xb4] sm:$0xf]
  %v76 = vld [vmem:[%s0 + $0xb8] sm:$0xf]
  %v77 = vld [vmem:[%s0 + $0xbc] sm:$0xf]
  %v78 = vld [vmem:[%s0 + $0xc0] sm:$0xf]
  %v79 = vld [vmem:[%s0 + $0xc4] sm:$0xf]
  %v80 = vld [vmem:[%s0 + $0xc8] sm:$0xf]
  %v81 = vld [vmem:[%s0 + $0xcc] sm:$0xf]
  %v82 = vld [vmem:[%s0 + $0xd0] sm:$0xf]
  %v83 = vld [vmem:[%s0 + $0xd4] sm:$0xf]
  %v84 = vld [vmem:[%s0 + $0xd8] sm:$0xf]
  %v85 = vld [vmem:[%s0 + $0xdc] sm:$0xf]
  %v86 = vld [vmem:[%s0 + $0xe0] sm:$0xf]
  %v87 = vld [vmem:[%s0 + $0xe4] sm:$0xf]
  %v88 = vld [vmem:[%s0 + $0xe8] sm:$0xf]
  %v89 = vld [vmem:[%s0 + $0xec] sm:$0xf]
  %v90 = vld [vmem:[%s0 + $0xf0] sm:$0xf]
  %v91 = vld [vmem:[%s0 + $0xf4] sm:$0xf]
  %v92 = vld [vmem:[%s0 + $0xf8] sm:$0xf]
  %v93 = vld [vmem:[%s0 + $0xfc] sm:$0xf]
  %v94 = vld [vmem:[%s4] sm:$0xf]
  %v95 = vld [vmem:[%s4 + $0x4] sm:$0xf]
  %v96 = vld [vmem:[%s4 + $0x8] sm:$0xf]
  %v97 = vld [vmem:[%s4 + $0xc] sm:$0xf]
  %v98 = vld [vmem:[%s4 + $0x10] sm:$0xf]
  %v99 = vld [vmem:[%s4 + $0x14] sm:$0xf]
  %v100 = vld [vmem:[%s4 + $0x18] sm:$0xf]
  %v101 = vld [vmem:[%s4 + $0x1c] sm:$0xf]
  %v102 = vld [vmem:[%s4 + $0x20] sm:$0xf]
  %v103 = vld [vmem:[%s4 + $0x24] sm:$0xf]
  %v104 = vld [vmem:[%s4 + $0x28] sm:$0xf]
  %v105 = vld [vmem:[%s4 + $0x2c] sm:$0xf]
  %v106 = vld [vmem:[%s7] sm:$0x1]
  %v107 = vlaneseq
  %v108 = vshrl.u32 %v107, 7
  %v109 = vsub.s32 0, %v108
  %v110 = vrot.slane %v106, %v109
  %v175 = vunpack.c.l.b16 %v30
  %v176 = vunpack.c.l.b16 %v31
  %v177 = vunpack.c.l.b16 %v32
  %v178 = vunpack.c.l.b16 %v33
  %v179 = vunpack.c.l.b16 %v34
  %v180 = vunpack.c.l.b16 %v35
  %v181 = vunpack.c.l.b16 %v36
  %v182 = vunpack.c.l.b16 %v37
  %v183 = vunpack.c.l.b16 %v38
  %v184 = vunpack.c.l.b16 %v39
  %v185 = vunpack.c.l.b16 %v40
  %v186 = vunpack.c.l.b16 %v41
  %v187 = vunpack.c.l.b16 %v42
  %v188 = vunpack.c.l.b16 %v43
  %v189 = vunpack.c.l.b16 %v44
  %v190 = vunpack.c.l.b16 %v45
  %v191 = vunpack.c.l.b16 %v46
  %v192 = vunpack.c.l.b16 %v47
  %v193 = vunpack.c.l.b16 %v48
  %v194 = vunpack.c.l.b16 %v49
  %v195 = vunpack.c.l.b16 %v50
  %v196 = vunpack.c.l.b16 %v51
  %v197 = vunpack.c.l.b16 %v52
  %v198 = vunpack.c.l.b16 %v53
  %v199 = vunpack.c.l.b16 %v54
  %v200 = vunpack.c.l.b16 %v55
  %v201 = vunpack.c.l.b16 %v56
  %v202 = vunpack.c.l.b16 %v57
  %v203 = vunpack.c.l.b16 %v58
  %v204 = vunpack.c.l.b16 %v59
  %v205 = vunpack.c.l.b16 %v60
  %v206 = vunpack.c.l.b16 %v61
  %v207 = vunpack.c.l.b16 %v62
  %v208 = vunpack.c.l.b16 %v63
  %v209 = vunpack.c.l.b16 %v64
  %v210 = vunpack.c.l.b16 %v65
  %v211 = vunpack.c.l.b16 %v66
  %v212 = vunpack.c.l.b16 %v67
  %v213 = vunpack.c.l.b16 %v68
  %v214 = vunpack.c.l.b16 %v69
  %v215 = vunpack.c.l.b16 %v70
  %v216 = vunpack.c.l.b16 %v71
  %v217 = vunpack.c.l.b16 %v72
  %v218 = vunpack.c.l.b16 %v73
  %v219 = vunpack.c.l.b16 %v74
  %v220 = vunpack.c.l.b16 %v75
  %v221 = vunpack.c.l.b16 %v76
  %v222 = vunpack.c.l.b16 %v77
  %v223 = vunpack.c.l.b16 %v78
  %v224 = vunpack.c.l.b16 %v79
  %v225 = vunpack.c.l.b16 %v80
  %v226 = vunpack.c.l.b16 %v81
  %v227 = vunpack.c.l.b16 %v82
  %v228 = vunpack.c.l.b16 %v83
  %v229 = vunpack.c.l.b16 %v84
  %v230 = vunpack.c.l.b16 %v85
  %v231 = vunpack.c.l.b16 %v86
  %v232 = vunpack.c.l.b16 %v87
  %v233 = vunpack.c.l.b16 %v88
  %v234 = vunpack.c.l.b16 %v89
  %v235 = vunpack.c.l.b16 %v90
  %v236 = vunpack.c.l.b16 %v91
  %v237 = vunpack.c.l.b16 %v92
  %v238 = vunpack.c.l.b16 %v93
  %v239 = vpack.c.b16 %v176, %v175
  %v240 = vpack.c.b16 %v178, %v177
  %v241 = vpack.c.b16 %v180, %v179
  %v242 = vpack.c.b16 %v182, %v181
  %v243 = vpack.c.b16 %v184, %v183
  %v244 = vpack.c.b16 %v186, %v185
  %v245 = vpack.c.b16 %v188, %v187
  %v246 = vpack.c.b16 %v190, %v189
  %v247 = vpack.c.b16 %v192, %v191
  %v248 = vpack.c.b16 %v194, %v193
  %v249 = vpack.c.b16 %v196, %v195
  %v250 = vpack.c.b16 %v198, %v197
  %v251 = vpack.c.b16 %v200, %v199
  %v252 = vpack.c.b16 %v202, %v201
  %v253 = vpack.c.b16 %v204, %v203
  %v254 = vpack.c.b16 %v206, %v205
  %v255 = vpack.c.b16 %v208, %v207
  %v256 = vpack.c.b16 %v210, %v209
  %v257 = vpack.c.b16 %v212, %v211
  %v258 = vpack.c.b16 %v214, %v213
  %v259 = vpack.c.b16 %v216, %v215
  %v260 = vpack.c.b16 %v218, %v217
  %v261 = vpack.c.b16 %v220, %v219
  %v262 = vpack.c.b16 %v222, %v221
  %v263 = vpack.c.b16 %v224, %v223
  %v264 = vpack.c.b16 %v226, %v225
  %v265 = vpack.c.b16 %v228, %v227
  %v266 = vpack.c.b16 %v230, %v229
  %v267 = vpack.c.b16 %v232, %v231
  %v268 = vpack.c.b16 %v234, %v233
  %v269 = vpack.c.b16 %v236, %v235
  %v270 = vpack.c.b16 %v238, %v237
  %v283 = vunpack.c.l.b16 %v94
  %v284 = vunpack.c.l.b16 %v95
  %v285 = vunpack.c.l.b16 %v96
  %v286 = vunpack.c.l.b16 %v97
  %v287 = vunpack.c.l.b16 %v98
  %v288 = vunpack.c.l.b16 %v99
  %v289 = vunpack.c.l.b16 %v100
  %v290 = vunpack.c.l.b16 %v101
  %v291 = vunpack.c.l.b16 %v102
  %v292 = vunpack.c.l.b16 %v103
  %v293 = vunpack.c.l.b16 %v104
  %v294 = vunpack.c.l.b16 %v105
  %v295 = vpack.c.b16 %v284, %v283
  %v296 = vpack.c.b16 %v286, %v285
  %v297 = vpack.c.b16 %v288, %v287
  %v298 = vpack.c.b16 %v290, %v289
  %v299 = vpack.c.b16 %v292, %v291
  %v300 = vpack.c.b16 %v294, %v293
  %vm307 = vcmask 785408
  %v309 = vsel %vm307, %v239, 0
  %v312 = vsel %vm307, %v240, 0
  %v315 = vsel %vm307, %v241, 0
  %v318 = vsel %vm307, %v242, 0
  %v321 = vsel %vm307, %v243, 0
  %v324 = vsel %vm307, %v244, 0
  %v327 = vsel %vm307, %v245, 0
  %v330 = vsel %vm307, %v246, 0
  %v333 = vsel %vm307, %v247, 0
  %v336 = vsel %vm307, %v248, 0
  %v339 = vsel %vm307, %v249, 0
  %v342 = vsel %vm307, %v250, 0
  %v345 = vsel %vm307, %v251, 0
  %v348 = vsel %vm307, %v252, 0
  %v351 = vsel %vm307, %v253, 0
  %v354 = vsel %vm307, %v254, 0
  %v357 = vsel %vm307, %v255, 0
  %v360 = vsel %vm307, %v256, 0
  %v363 = vsel %vm307, %v257, 0
  %v366 = vsel %vm307, %v258, 0
  %v369 = vsel %vm307, %v259, 0
  %v372 = vsel %vm307, %v260, 0
  %v375 = vsel %vm307, %v261, 0
  %v378 = vsel %vm307, %v262, 0
  %v381 = vsel %vm307, %v263, 0
  %v384 = vsel %vm307, %v264, 0
  %v387 = vsel %vm307, %v265, 0
  %v390 = vsel %vm307, %v266, 0
  %v393 = vsel %vm307, %v267, 0
  %v396 = vsel %vm307, %v268, 0
  %v399 = vsel %vm307, %v269, 0
  %v402 = vsel %vm307, %v270, 0
  %404 = vmatprep.subr.bf16.mxu0 0
  %405 = vmatpush1.bf16.msra.mxu0 0
  %406 = vmatprep.subr.bf16.mxu0 0
  %407 = vmatpush1.bf16.msra.mxu0 0
  %408 = vmatprep.subr.bf16.mxu0 0
  %409 = vmatpush1.bf16.msra.mxu0 %v300
  %410 = vmatprep.subr.bf16.mxu0 0
  %411 = vmatpush1.bf16.msra.mxu0 %v299
  %412 = vmatprep.subr.bf16.mxu0 0
  %413 = vmatpush1.bf16.msra.mxu0 %v298
  %414 = vmatprep.subr.bf16.mxu0 0
  %415 = vmatpush1.bf16.msra.mxu0 %v297
  %416 = vmatprep.subr.bf16.mxu0 0
  %417 = vmatpush1.bf16.msra.mxu0 %v296
  %418 = vmatprep.subr.bf16.mxu0 0
  %419 = vmatpush1.bf16.msra.mxu0 %v295
  %420 = vmatprep.subr.bf16.mxu0 0
  %421 = vmatpush2.bf16.msra.mxu0 0
  %422 = vmatprep.subr.bf16.mxu0 0
  %423 = vmatpush2.bf16.msra.mxu0 0
  %424 = vmatprep.subr.bf16.mxu0 0
  %425 = vmatpush2.bf16.msra.mxu0 0
  %426 = vmatprep.subr.bf16.mxu0 0
  %427 = vmatpush2.bf16.msra.mxu0 0
  %428 = vmatprep.subr.bf16.mxu0 0
  %429 = vmatpush2.bf16.msra.mxu0 0
  %430 = vmatprep.subr.bf16.mxu0 0
  %431 = vmatpush2.bf16.msra.mxu0 0
  %432 = vmatprep.subr.bf16.mxu0 0
  %433 = vmatpush2.bf16.msra.mxu0 0
  %434 = vmatprep.subr.bf16.mxu0 0
  %435 = vmatpush2.bf16.msra.mxu0 0
  %436 = vmatprep.mubr.bf16.mxu0 0
  %437 = vmatmul.mubr.bf16.gmra.mxu0 %v309
  %v438 = vpop.f32.mrf.mxu0
  %v439 = vadd.f32 %v110, %v438
  %v440 = vpop.f32.mrf.mxu0
  %v441 = vpop.f32.mrf.mxu0
  %v442 = vadd.f32 %v110, %v441
  %v443 = vpop.f32.mrf.mxu0
  %444 = vmatprep.mubr.bf16.mxu0 0
  %445 = vmatmul.mubr.bf16.gmra.mxu0 %v312
  %v446 = vpop.f32.mrf.mxu0
  %v447 = vadd.f32 %v110, %v446
  %v448 = vpop.f32.mrf.mxu0
  %v449 = vpop.f32.mrf.mxu0
  %v450 = vadd.f32 %v110, %v449
  %v451 = vpop.f32.mrf.mxu0
  %452 = vmatprep.mubr.bf16.mxu0 0
  %453 = vmatmul.mubr.bf16.gmra.mxu0 %v315
  %v454 = vpop.f32.mrf.mxu0
  %v455 = vadd.f32 %v110, %v454
  %v456 = vpop.f32.mrf.mxu0
  %v457 = vpop.f32.mrf.mxu0
  %v458 = vadd.f32 %v110, %v457
  %v459 = vpop.f32.mrf.mxu0
  %460 = vmatprep.mubr.bf16.mxu0 0
  %461 = vmatmul.mubr.bf16.gmra.mxu0 %v318
  %v462 = vpop.f32.mrf.mxu0
  %v463 = vadd.f32 %v110, %v462
  %v464 = vpop.f32.mrf.mxu0
  %v465 = vpop.f32.mrf.mxu0
  %v466 = vadd.f32 %v110, %v465
  %v467 = vpop.f32.mrf.mxu0
  %468 = vmatprep.mubr.bf16.mxu0 0
  %469 = vmatmul.mubr.bf16.gmra.mxu0 %v321
  %v470 = vpop.f32.mrf.mxu0
  %v471 = vadd.f32 %v110, %v470
  %v472 = vpop.f32.mrf.mxu0
  %v473 = vpop.f32.mrf.mxu0
  %v474 = vadd.f32 %v110, %v473
  %v475 = vpop.f32.mrf.mxu0
  %476 = vmatprep.mubr.bf16.mxu0 0
  %477 = vmatmul.mubr.bf16.gmra.mxu0 %v324
  %v478 = vpop.f32.mrf.mxu0
  %v479 = vadd.f32 %v110, %v478
  %v480 = vpop.f32.mrf.mxu0
  %v481 = vpop.f32.mrf.mxu0
  %v482 = vadd.f32 %v110, %v481
  %v483 = vpop.f32.mrf.mxu0
  %484 = vmatprep.mubr.bf16.mxu0 0
  %485 = vmatmul.mubr.bf16.gmra.mxu0 %v327
  %v486 = vpop.f32.mrf.mxu0
  %v487 = vadd.f32 %v110, %v486
  %v488 = vpop.f32.mrf.mxu0
  %v489 = vpop.f32.mrf.mxu0
  %v490 = vadd.f32 %v110, %v489
  %v491 = vpop.f32.mrf.mxu0
  %492 = vmatprep.mubr.bf16.mxu0 0
  %493 = vmatmul.mubr.bf16.gmra.mxu0 %v330
  %v494 = vpop.f32.mrf.mxu0
  %v495 = vadd.f32 %v110, %v494
  %v496 = vpop.f32.mrf.mxu0
  %v497 = vpop.f32.mrf.mxu0
  %v498 = vadd.f32 %v110, %v497
  %v499 = vpop.f32.mrf.mxu0
  %500 = vmatprep.mubr.bf16.mxu0 0
  %501 = vmatmul.mubr.bf16.gmra.mxu0 %v333
  %v502 = vpop.f32.mrf.mxu0
  %v503 = vadd.f32 %v110, %v502
  %v504 = vpop.f32.mrf.mxu0
  %v505 = vpop.f32.mrf.mxu0
  %v506 = vadd.f32 %v110, %v505
  %v507 = vpop.f32.mrf.mxu0
  %508 = vmatprep.mubr.bf16.mxu0 0
  %509 = vmatmul.mubr.bf16.gmra.mxu0 %v336
  %v510 = vpop.f32.mrf.mxu0
  %v511 = vadd.f32 %v110, %v510
  %v512 = vpop.f32.mrf.mxu0
  %v513 = vpop.f32.mrf.mxu0
  %v514 = vadd.f32 %v110, %v513
  %v515 = vpop.f32.mrf.mxu0
  %516 = vmatprep.mubr.bf16.mxu0 0
  %517 = vmatmul.mubr.bf16.gmra.mxu0 %v339
  %v518 = vpop.f32.mrf.mxu0
  %v519 = vadd.f32 %v110, %v518
  %v520 = vpop.f32.mrf.mxu0
  %v521 = vpop.f32.mrf.mxu0
  %v522 = vadd.f32 %v110, %v521
  %v523 = vpop.f32.mrf.mxu0
  %524 = vmatprep.mubr.bf16.mxu0 0
  %525 = vmatmul.mubr.bf16.gmra.mxu0 %v342
  %v526 = vpop.f32.mrf.mxu0
  %v527 = vadd.f32 %v110, %v526
  %v528 = vpop.f32.mrf.mxu0
  %v529 = vpop.f32.mrf.mxu0
  %v530 = vadd.f32 %v110, %v529
  %v531 = vpop.f32.mrf.mxu0
  %532 = vmatprep.mubr.bf16.mxu0 0
  %533 = vmatmul.mubr.bf16.gmra.mxu0 %v345
  %v534 = vpop.f32.mrf.mxu0
  %v535 = vadd.f32 %v110, %v534
  %v536 = vpop.f32.mrf.mxu0
  %v537 = vpop.f32.mrf.mxu0
  %v538 = vadd.f32 %v110, %v537
  %v539 = vpop.f32.mrf.mxu0
  %540 = vmatprep.mubr.bf16.mxu0 0
  %541 = vmatmul.mubr.bf16.gmra.mxu0 %v348
  %v542 = vpop.f32.mrf.mxu0
  %v543 = vadd.f32 %v110, %v542
  %v544 = vpop.f32.mrf.mxu0
  %v545 = vpop.f32.mrf.mxu0
  %v546 = vadd.f32 %v110, %v545
  %v547 = vpop.f32.mrf.mxu0
  %548 = vmatprep.mubr.bf16.mxu0 0
  %549 = vmatmul.mubr.bf16.gmra.mxu0 %v351
  %v550 = vpop.f32.mrf.mxu0
  %v551 = vadd.f32 %v110, %v550
  %v552 = vpop.f32.mrf.mxu0
  %v553 = vpop.f32.mrf.mxu0
  %v554 = vadd.f32 %v110, %v553
  %v555 = vpop.f32.mrf.mxu0
  %556 = vmatprep.mubr.bf16.mxu0 0
  %557 = vmatmul.mubr.bf16.gmra.mxu0 %v354
  %v558 = vpop.f32.mrf.mxu0
  %v559 = vadd.f32 %v110, %v558
  %v560 = vpop.f32.mrf.mxu0
  %v561 = vpop.f32.mrf.mxu0
  %v562 = vadd.f32 %v110, %v561
  %v563 = vpop.f32.mrf.mxu0
  %564 = vmatprep.mubr.bf16.mxu0 0
  %565 = vmatmul.mubr.bf16.gmra.mxu0 %v357
  %v566 = vpop.f32.mrf.mxu0
  %v567 = vadd.f32 %v110, %v566
  %v568 = vpop.f32.mrf.mxu0
  %v569 = vpop.f32.mrf.mxu0
  %v570 = vadd.f32 %v110, %v569
  %v571 = vpop.f32.mrf.mxu0
  %572 = vmatprep.mubr.bf16.mxu0 0
  %573 = vmatmul.mubr.bf16.gmra.mxu0 %v360
  %v574 = vpop.f32.mrf.mxu0
  %v575 = vadd.f32 %v110, %v574
  %v576 = vpop.f32.mrf.mxu0
  %v577 = vpop.f32.mrf.mxu0
  %v578 = vadd.f32 %v110, %v577
  %v579 = vpop.f32.mrf.mxu0
  %580 = vmatprep.mubr.bf16.mxu0 0
  %581 = vmatmul.mubr.bf16.gmra.mxu0 %v363
  %v582 = vpop.f32.mrf.mxu0
  %v583 = vadd.f32 %v110, %v582
  %v584 = vpop.f32.mrf.mxu0
  %v585 = vpop.f32.mrf.mxu0
  %v586 = vadd.f32 %v110, %v585
  %v587 = vpop.f32.mrf.mxu0
  %588 = vmatprep.mubr.bf16.mxu0 0
  %589 = vmatmul.mubr.bf16.gmra.mxu0 %v366
  %v590 = vpop.f32.mrf.mxu0
  %v591 = vadd.f32 %v110, %v590
  %v592 = vpop.f32.mrf.mxu0
  %v593 = vpop.f32.mrf.mxu0
  %v594 = vadd.f32 %v110, %v593
  %v595 = vpop.f32.mrf.mxu0
  %596 = vmatprep.mubr.bf16.mxu0 0
  %597 = vmatmul.mubr.bf16.gmra.mxu0 %v369
  %v598 = vpop.f32.mrf.mxu0
  %v599 = vadd.f32 %v110, %v598
  %v600 = vpop.f32.mrf.mxu0
  %v601 = vpop.f32.mrf.mxu0
  %v602 = vadd.f32 %v110, %v601
  %v603 = vpop.f32.mrf.mxu0
  %604 = vmatprep.mubr.bf16.mxu0 0
  %605 = vmatmul.mubr.bf16.gmra.mxu0 %v372
  %v606 = vpop.f32.mrf.mxu0
  %v607 = vadd.f32 %v110, %v606
  %v608 = vpop.f32.mrf.mxu0
  %v609 = vpop.f32.mrf.mxu0
  %v610 = vadd.f32 %v110, %v609
  %v611 = vpop.f32.mrf.mxu0
  %612 = vmatprep.mubr.bf16.mxu0 0
  %613 = vmatmul.mubr.bf16.gmra.mxu0 %v375
  %v614 = vpop.f32.mrf.mxu0
  %v615 = vadd.f32 %v110, %v614
  %v616 = vpop.f32.mrf.mxu0
  %v617 = vpop.f32.mrf.mxu0
  %v618 = vadd.f32 %v110, %v617
  %v619 = vpop.f32.mrf.mxu0
  %620 = vmatprep.mubr.bf16.mxu0 0
  %621 = vmatmul.mubr.bf16.gmra.mxu0 %v378
  %v622 = vpop.f32.mrf.mxu0
  %v623 = vadd.f32 %v110, %v622
  %v624 = vpop.f32.mrf.mxu0
  %v625 = vpop.f32.mrf.mxu0
  %v626 = vadd.f32 %v110, %v625
  %v627 = vpop.f32.mrf.mxu0
  %628 = vmatprep.mubr.bf16.mxu0 0
  %629 = vmatmul.mubr.bf16.gmra.mxu0 %v381
  %v630 = vpop.f32.mrf.mxu0
  %v631 = vadd.f32 %v110, %v630
  %v632 = vpop.f32.mrf.mxu0
  %v633 = vpop.f32.mrf.mxu0
  %v634 = vadd.f32 %v110, %v633
  %v635 = vpop.f32.mrf.mxu0
  %636 = vmatprep.mubr.bf16.mxu0 0
  %637 = vmatmul.mubr.bf16.gmra.mxu0 %v384
  %v638 = vpop.f32.mrf.mxu0
  %v639 = vadd.f32 %v110, %v638
  %v640 = vpop.f32.mrf.mxu0
  %v641 = vpop.f32.mrf.mxu0
  %v642 = vadd.f32 %v110, %v641
  %v643 = vpop.f32.mrf.mxu0
  %644 = vmatprep.mubr.bf16.mxu0 0
  %645 = vmatmul.mubr.bf16.gmra.mxu0 %v387
  %v646 = vpop.f32.mrf.mxu0
  %v647 = vadd.f32 %v110, %v646
  %v648 = vpop.f32.mrf.mxu0
  %v649 = vpop.f32.mrf.mxu0
  %v650 = vadd.f32 %v110, %v649
  %v651 = vpop.f32.mrf.mxu0
  %652 = vmatprep.mubr.bf16.mxu0 0
  %653 = vmatmul.mubr.bf16.gmra.mxu0 %v390
  %v654 = vpop.f32.mrf.mxu0
  %v655 = vadd.f32 %v110, %v654
  %v656 = vpop.f32.mrf.mxu0
  %v657 = vpop.f32.mrf.mxu0
  %v658 = vadd.f32 %v110, %v657
  %v659 = vpop.f32.mrf.mxu0
  %660 = vmatprep.mubr.bf16.mxu0 0
  %661 = vmatmul.mubr.bf16.gmra.mxu0 %v393
  %v662 = vpop.f32.mrf.mxu0
  %v663 = vadd.f32 %v110, %v662
  %v664 = vpop.f32.mrf.mxu0
  %v665 = vpop.f32.mrf.mxu0
  %v666 = vadd.f32 %v110, %v665
  %v667 = vpop.f32.mrf.mxu0
  %668 = vmatprep.mubr.bf16.mxu0 0
  %669 = vmatmul.mubr.bf16.gmra.mxu0 %v396
  %v670 = vpop.f32.mrf.mxu0
  %v671 = vadd.f32 %v110, %v670
  %v672 = vpop.f32.mrf.mxu0
  %v673 = vpop.f32.mrf.mxu0
  %v674 = vadd.f32 %v110, %v673
  %v675 = vpop.f32.mrf.mxu0
  %676 = vmatprep.mubr.bf16.mxu0 0
  %677 = vmatmul.mubr.bf16.gmra.mxu0 %v399
  %v678 = vpop.f32.mrf.mxu0
  %v679 = vadd.f32 %v110, %v678
  %v680 = vpop.f32.mrf.mxu0
  %v681 = vpop.f32.mrf.mxu0
  %v682 = vadd.f32 %v110, %v681
  %v683 = vpop.f32.mrf.mxu0
  %684 = vmatprep.mubr.bf16.mxu0 0
  %685 = vmatmul.mubr.bf16.gmra.mxu0 %v402
  %v686 = vpop.f32.mrf.mxu0
  %v687 = vadd.f32 %v110, %v686
  %v688 = vpop.f32.mrf.mxu0
  %v689 = vpop.f32.mrf.mxu0
  %v690 = vadd.f32 %v110, %v689
  %v691 = vpop.f32.mrf.mxu0
  %692 = vdwg.mxu0
  %v693 = vld [vmem:[%s3] sm:$0x3]
  %v696 = vunpack.c.l.s4 1966171168
  %v697 = vunpack.c.0.s8 %v696
  %v698 = vlaneseq
  %v699 = vshrl.u32 %v698, 7
  %v700 = vsub.s32 %v697, %v699
  %v701 = vrot.slane %v693, %v700
  %v702 = vcombine.high %v701, %v701
  %v704 = vunpack.c.l.s4 1966171168
  %v705 = vunpack.c.0.s8 %v704
  %v706 = vlaneseq
  %v707 = vshrl.u32 %v706, 7
  %v708 = vsub.s32 %v705, %v707
  %v709 = vrot.slane %v701, %v708
  %v711 = vunpack.c.l.s4 1966171168
  %v712 = vunpack.c.0.s8 %v711
  %v713 = vlaneseq
  %v714 = vshrl.u32 %v713, 7
  %v715 = vsub.s32 %v712, %v714
  %v716 = vrot.slane %v702, %v715
  %v717 = vlaneseq
  %v718 = vshrl.u32 %v717, 7
  %v719 = vsub.s32 0, %v718
  %v720 = vrot.slane %v709, %v719
  %v721 = vlaneseq
  %v722 = vshrl.u32 %v721, 7
  %v723 = vsub.s32 0, %v722
  %v724 = vrot.slane %v716, %v723
  %v727 = vadd.f32 %v439, %v720
  %v728 = vadd.f32 %v442, %v720
  %v729 = vadd.f32 %v447, %v720
  %v730 = vadd.f32 %v450, %v720
  %v731 = vadd.f32 %v455, %v720
  %v732 = vadd.f32 %v458, %v720
  %v733 = vadd.f32 %v463, %v720
  %v734 = vadd.f32 %v466, %v720
  %v735 = vadd.f32 %v471, %v720
  %v736 = vadd.f32 %v474, %v720
  %v737 = vadd.f32 %v479, %v720
  %v738 = vadd.f32 %v482, %v720
  %v739 = vadd.f32 %v487, %v720
  %v740 = vadd.f32 %v490, %v720
  %v741 = vadd.f32 %v495, %v720
  %v742 = vadd.f32 %v498, %v720
  %v743 = vadd.f32 %v503, %v720
  %v744 = vadd.f32 %v506, %v720
  %v745 = vadd.f32 %v511, %v720
  %v746 = vadd.f32 %v514, %v720
  %v747 = vadd.f32 %v519, %v720
  %v748 = vadd.f32 %v522, %v720
  %v749 = vadd.f32 %v527, %v720
  %v750 = vadd.f32 %v530, %v720
  %v751 = vadd.f32 %v535, %v720
  %v752 = vadd.f32 %v538, %v720
  %v753 = vadd.f32 %v543, %v720
  %v754 = vadd.f32 %v546, %v720
  %v755 = vadd.f32 %v551, %v720
  %v756 = vadd.f32 %v554, %v720
  %v757 = vadd.f32 %v559, %v720
  %v758 = vadd.f32 %v562, %v720
  %v759 = vadd.f32 %v567, %v724
  %v760 = vadd.f32 %v570, %v724
  %v761 = vadd.f32 %v575, %v724
  %v762 = vadd.f32 %v578, %v724
  %v763 = vadd.f32 %v583, %v724
  %v764 = vadd.f32 %v586, %v724
  %v765 = vadd.f32 %v591, %v724
  %v766 = vadd.f32 %v594, %v724
  %v767 = vadd.f32 %v599, %v724
  %v768 = vadd.f32 %v602, %v724
  %v769 = vadd.f32 %v607, %v724
  %v770 = vadd.f32 %v610, %v724
  %v771 = vadd.f32 %v615, %v724
  %v772 = vadd.f32 %v618, %v724
  %v773 = vadd.f32 %v623, %v724
  %v774 = vadd.f32 %v626, %v724
  %v775 = vadd.f32 %v631, %v724
  %v776 = vadd.f32 %v634, %v724
  %v777 = vadd.f32 %v639, %v724
  %v778 = vadd.f32 %v642, %v724
  %v779 = vadd.f32 %v647, %v724
  %v780 = vadd.f32 %v650, %v724
  %v781 = vadd.f32 %v655, %v724
  %v782 = vadd.f32 %v658, %v724
  %v783 = vadd.f32 %v663, %v724
  %v784 = vadd.f32 %v666, %v724
  %v785 = vadd.f32 %v671, %v724
  %v786 = vadd.f32 %v674, %v724
  %v787 = vadd.f32 %v679, %v724
  %v788 = vadd.f32 %v682, %v724
  %v789 = vadd.f32 %v687, %v724
  %v790 = vadd.f32 %v690, %v724
  %v791 = vld [vmem:[%s1] sm:$0xf]
  %v792 = vld [vmem:[%s1 + $0x4] sm:$0xf]
  %v793 = vld [vmem:[%s1 + $0x8] sm:$0xf]
  %v794 = vld [vmem:[%s1 + $0xc] sm:$0xf]
  %v795 = vld [vmem:[%s1 + $0x10] sm:$0xf]
  %v796 = vld [vmem:[%s1 + $0x14] sm:$0xf]
  %v797 = vld [vmem:[%s1 + $0x18] sm:$0xf]
  %v798 = vld [vmem:[%s1 + $0x1c] sm:$0xf]
  %v799 = vld [vmem:[%s1 + $0x20] sm:$0xf]
  %v800 = vld [vmem:[%s1 + $0x24] sm:$0xf]
  %v801 = vld [vmem:[%s1 + $0x28] sm:$0xf]
  %v802 = vld [vmem:[%s1 + $0x2c] sm:$0xf]
  %v803 = vld [vmem:[%s1 + $0x30] sm:$0xf]
  %v804 = vld [vmem:[%s1 + $0x34] sm:$0xf]
  %v805 = vld [vmem:[%s1 + $0x38] sm:$0xf]
  %v806 = vld [vmem:[%s1 + $0x3c] sm:$0xf]
  %v807 = vld [vmem:[%s1 + $0x40] sm:$0xf]
  %v808 = vld [vmem:[%s1 + $0x44] sm:$0xf]
  %v809 = vld [vmem:[%s1 + $0x48] sm:$0xf]
  %v810 = vld [vmem:[%s1 + $0x4c] sm:$0xf]
  %v811 = vld [vmem:[%s1 + $0x50] sm:$0xf]
  %v812 = vld [vmem:[%s1 + $0x54] sm:$0xf]
  %v813 = vld [vmem:[%s1 + $0x58] sm:$0xf]
  %v814 = vld [vmem:[%s1 + $0x5c] sm:$0xf]
  %v815 = vld [vmem:[%s1 + $0x60] sm:$0xf]
  %v816 = vld [vmem:[%s1 + $0x64] sm:$0xf]
  %v817 = vld [vmem:[%s1 + $0x68] sm:$0xf]
  %v818 = vld [vmem:[%s1 + $0x6c] sm:$0xf]
  %v819 = vld [vmem:[%s1 + $0x70] sm:$0xf]
  %v820 = vld [vmem:[%s1 + $0x74] sm:$0xf]
  %v821 = vld [vmem:[%s1 + $0x78] sm:$0xf]
  %v822 = vld [vmem:[%s1 + $0x7c] sm:$0xf]
  %v823 = vld [vmem:[%s1 + $0x80] sm:$0xf]
  %v824 = vld [vmem:[%s1 + $0x84] sm:$0xf]
  %v825 = vld [vmem:[%s1 + $0x88] sm:$0xf]
  %v826 = vld [vmem:[%s1 + $0x8c] sm:$0xf]
  %v827 = vld [vmem:[%s1 + $0x90] sm:$0xf]
  %v828 = vld [vmem:[%s1 + $0x94] sm:$0xf]
  %v829 = vld [vmem:[%s1 + $0x98] sm:$0xf]
  %v830 = vld [vmem:[%s1 + $0x9c] sm:$0xf]
  %v831 = vld [vmem:[%s1 + $0xa0] sm:$0xf]
  %v832 = vld [vmem:[%s1 + $0xa4] sm:$0xf]
  %v833 = vld [vmem:[%s1 + $0xa8] sm:$0xf]
  %v834 = vld [vmem:[%s1 + $0xac] sm:$0xf]
  %v835 = vld [vmem:[%s1 + $0xb0] sm:$0xf]
  %v836 = vld [vmem:[%s1 + $0xb4] sm:$0xf]
  %v837 = vld [vmem:[%s1 + $0xb8] sm:$0xf]
  %v838 = vld [vmem:[%s1 + $0xbc] sm:$0xf]
  %v839 = vld [vmem:[%s1 + $0xc0] sm:$0xf]
  %v840 = vld [vmem:[%s1 + $0xc4] sm:$0xf]
  %v841 = vld [vmem:[%s1 + $0xc8] sm:$0xf]
  %v842 = vld [vmem:[%s1 + $0xcc] sm:$0xf]
  %v843 = vld [vmem:[%s1 + $0xd0] sm:$0xf]
  %v844 = vld [vmem:[%s1 + $0xd4] sm:$0xf]
  %v845 = vld [vmem:[%s1 + $0xd8] sm:$0xf]
  %v846 = vld [vmem:[%s1 + $0xdc] sm:$0xf]
  %v847 = vld [vmem:[%s1 + $0xe0] sm:$0xf]
  %v848 = vld [vmem:[%s1 + $0xe4] sm:$0xf]
  %v849 = vld [vmem:[%s1 + $0xe8] sm:$0xf]
  %v850 = vld [vmem:[%s1 + $0xec] sm:$0xf]
  %v851 = vld [vmem:[%s1 + $0xf0] sm:$0xf]
  %v852 = vld [vmem:[%s1 + $0xf4] sm:$0xf]
  %v853 = vld [vmem:[%s1 + $0xf8] sm:$0xf]
  %v854 = vld [vmem:[%s1 + $0xfc] sm:$0xf]
  %v855 = vld [vmem:[%s5] sm:$0xf]
  %v856 = vld [vmem:[%s5 + $0x4] sm:$0xf]
  %v857 = vld [vmem:[%s5 + $0x8] sm:$0xf]
  %v858 = vld [vmem:[%s5 + $0xc] sm:$0xf]
  %v859 = vld [vmem:[%s7 + $0x1] sm:$0x1]
  %v860 = vlaneseq
  %v861 = vshrl.u32 %v860, 7
  %v862 = vsub.s32 0, %v861
  %v863 = vrot.slane %v859, %v862
  %v928 = vunpack.c.l.b16 %v791
  %v929 = vunpack.c.l.b16 %v792
  %v930 = vunpack.c.l.b16 %v793
  %v931 = vunpack.c.l.b16 %v794
  %v932 = vunpack.c.l.b16 %v795
  %v933 = vunpack.c.l.b16 %v796
  %v934 = vunpack.c.l.b16 %v797
  %v935 = vunpack.c.l.b16 %v798
  %v936 = vunpack.c.l.b16 %v799
  %v937 = vunpack.c.l.b16 %v800
  %v938 = vunpack.c.l.b16 %v801
  %v939 = vunpack.c.l.b16 %v802
  %v940 = vunpack.c.l.b16 %v803
  %v941 = vunpack.c.l.b16 %v804
  %v942 = vunpack.c.l.b16 %v805
  %v943 = vunpack.c.l.b16 %v806
  %v944 = vunpack.c.l.b16 %v807
  %v945 = vunpack.c.l.b16 %v808
  %v946 = vunpack.c.l.b16 %v809
  %v947 = vunpack.c.l.b16 %v810
  %v948 = vunpack.c.l.b16 %v811
  %v949 = vunpack.c.l.b16 %v812
  %v950 = vunpack.c.l.b16 %v813
  %v951 = vunpack.c.l.b16 %v814
  %v952 = vunpack.c.l.b16 %v815
  %v953 = vunpack.c.l.b16 %v816
  %v954 = vunpack.c.l.b16 %v817
  %v955 = vunpack.c.l.b16 %v818
  %v956 = vunpack.c.l.b16 %v819
  %v957 = vunpack.c.l.b16 %v820
  %v958 = vunpack.c.l.b16 %v821
  %v959 = vunpack.c.l.b16 %v822
  %v960 = vunpack.c.l.b16 %v823
  %v961 = vunpack.c.l.b16 %v824
  %v962 = vunpack.c.l.b16 %v825
  %v963 = vunpack.c.l.b16 %v826
  %v964 = vunpack.c.l.b16 %v827
  %v965 = vunpack.c.l.b16 %v828
  %v966 = vunpack.c.l.b16 %v829
  %v967 = vunpack.c.l.b16 %v830
  %v968 = vunpack.c.l.b16 %v831
  %v969 = vunpack.c.l.b16 %v832
  %v970 = vunpack.c.l.b16 %v833
  %v971 = vunpack.c.l.b16 %v834
  %v972 = vunpack.c.l.b16 %v835
  %v973 = vunpack.c.l.b16 %v836
  %v974 = vunpack.c.l.b16 %v837
  %v975 = vunpack.c.l.b16 %v838
  %v976 = vunpack.c.l.b16 %v839
  %v977 = vunpack.c.l.b16 %v840
  %v978 = vunpack.c.l.b16 %v841
  %v979 = vunpack.c.l.b16 %v842
  %v980 = vunpack.c.l.b16 %v843
  %v981 = vunpack.c.l.b16 %v844
  %v982 = vunpack.c.l.b16 %v845
  %v983 = vunpack.c.l.b16 %v846
  %v984 = vunpack.c.l.b16 %v847
  %v985 = vunpack.c.l.b16 %v848
  %v986 = vunpack.c.l.b16 %v849
  %v987 = vunpack.c.l.b16 %v850
  %v988 = vunpack.c.l.b16 %v851
  %v989 = vunpack.c.l.b16 %v852
  %v990 = vunpack.c.l.b16 %v853
  %v991 = vunpack.c.l.b16 %v854
  %v992 = vpack.c.b16 %v929, %v928
  %v993 = vpack.c.b16 %v931, %v930
  %v994 = vpack.c.b16 %v933, %v932
  %v995 = vpack.c.b16 %v935, %v934
  %v996 = vpack.c.b16 %v937, %v936
  %v997 = vpack.c.b16 %v939, %v938
  %v998 = vpack.c.b16 %v941, %v940
  %v999 = vpack.c.b16 %v943, %v942
  %v1000 = vpack.c.b16 %v945, %v944
  %v1001 = vpack.c.b16 %v947, %v946
  %v1002 = vpack.c.b16 %v949, %v948
  %v1003 = vpack.c.b16 %v951, %v950
  %v1004 = vpack.c.b16 %v953, %v952
  %v1005 = vpack.c.b16 %v955, %v954
  %v1006 = vpack.c.b16 %v957, %v956
  %v1007 = vpack.c.b16 %v959, %v958
  %v1008 = vpack.c.b16 %v961, %v960
  %v1009 = vpack.c.b16 %v963, %v962
  %v1010 = vpack.c.b16 %v965, %v964
  %v1011 = vpack.c.b16 %v967, %v966
  %v1012 = vpack.c.b16 %v969, %v968
  %v1013 = vpack.c.b16 %v971, %v970
  %v1014 = vpack.c.b16 %v973, %v972
  %v1015 = vpack.c.b16 %v975, %v974
  %v1016 = vpack.c.b16 %v977, %v976
  %v1017 = vpack.c.b16 %v979, %v978
  %v1018 = vpack.c.b16 %v981, %v980
  %v1019 = vpack.c.b16 %v983, %v982
  %v1020 = vpack.c.b16 %v985, %v984
  %v1021 = vpack.c.b16 %v987, %v986
  %v1022 = vpack.c.b16 %v989, %v988
  %v1023 = vpack.c.b16 %v991, %v990
  %v1028 = vunpack.c.l.b16 %v855
  %v1029 = vunpack.c.l.b16 %v856
  %v1030 = vunpack.c.l.b16 %v857
  %v1031 = vunpack.c.l.b16 %v858
  %v1032 = vpack.c.b16 %v1029, %v1028
  %v1033 = vpack.c.b16 %v1031, %v1030
  %vm1036 = vcmask 261120
  %v1038 = vsel %vm1036, %v992, 0
  %v1041 = vsel %vm1036, %v993, 0
  %v1044 = vsel %vm1036, %v994, 0
  %v1047 = vsel %vm1036, %v995, 0
  %v1050 = vsel %vm1036, %v996, 0
  %v1053 = vsel %vm1036, %v997, 0
  %v1056 = vsel %vm1036, %v998, 0
  %v1059 = vsel %vm1036, %v999, 0
  %v1062 = vsel %vm1036, %v1000, 0
  %v1065 = vsel %vm1036, %v1001, 0
  %v1068 = vsel %vm1036, %v1002, 0
  %v1071 = vsel %vm1036, %v1003, 0
  %v1074 = vsel %vm1036, %v1004, 0
  %v1077 = vsel %vm1036, %v1005, 0
  %v1080 = vsel %vm1036, %v1006, 0
  %v1083 = vsel %vm1036, %v1007, 0
  %v1086 = vsel %vm1036, %v1008, 0
  %v1089 = vsel %vm1036, %v1009, 0
  %v1092 = vsel %vm1036, %v1010, 0
  %v1095 = vsel %vm1036, %v1011, 0
  %v1098 = vsel %vm1036, %v1012, 0
  %v1101 = vsel %vm1036, %v1013, 0
  %v1104 = vsel %vm1036, %v1014, 0
  %v1107 = vsel %vm1036, %v1015, 0
  %v1110 = vsel %vm1036, %v1016, 0
  %v1113 = vsel %vm1036, %v1017, 0
  %v1116 = vsel %vm1036, %v1018, 0
  %v1119 = vsel %vm1036, %v1019, 0
  %v1122 = vsel %vm1036, %v1020, 0
  %v1125 = vsel %vm1036, %v1021, 0
  %v1128 = vsel %vm1036, %v1022, 0
  %v1131 = vsel %vm1036, %v1023, 0
  %1133 = vmatprep.subr.bf16.mxu0 0
  %1134 = vmatpush1.bf16.msra.mxu0 0
  %1135 = vmatprep.subr.bf16.mxu0 0
  %1136 = vmatpush1.bf16.msra.mxu0 0
  %1137 = vmatprep.subr.bf16.mxu0 0
  %1138 = vmatpush1.bf16.msra.mxu0 0
  %1139 = vmatprep.subr.bf16.mxu0 0
  %1140 = vmatpush1.bf16.msra.mxu0 0
  %1141 = vmatprep.subr.bf16.mxu0 0
  %1142 = vmatpush1.bf16.msra.mxu0 0
  %1143 = vmatprep.subr.bf16.mxu0 0
  %1144 = vmatpush1.bf16.msra.mxu0 0
  %1145 = vmatprep.subr.bf16.mxu0 0
  %1146 = vmatpush1.bf16.msra.mxu0 %v1033
  %1147 = vmatprep.subr.bf16.mxu0 0
  %1148 = vmatpush1.bf16.msra.mxu0 %v1032
  %1149 = vmatprep.subr.bf16.mxu0 0
  %1150 = vmatpush2.bf16.msra.mxu0 0
  %1151 = vmatprep.subr.bf16.mxu0 0
  %1152 = vmatpush2.bf16.msra.mxu0 0
  %1153 = vmatprep.subr.bf16.mxu0 0
  %1154 = vmatpush2.bf16.msra.mxu0 0
  %1155 = vmatprep.subr.bf16.mxu0 0
  %1156 = vmatpush2.bf16.msra.mxu0 0
  %1157 = vmatprep.subr.bf16.mxu0 0
  %1158 = vmatpush2.bf16.msra.mxu0 0
  %1159 = vmatprep.subr.bf16.mxu0 0
  %1160 = vmatpush2.bf16.msra.mxu0 0
  %1161 = vmatprep.subr.bf16.mxu0 0
  %1162 = vmatpush2.bf16.msra.mxu0 0
  %1163 = vmatprep.subr.bf16.mxu0 0
  %1164 = vmatpush2.bf16.msra.mxu0 0
  %1165 = vmatprep.mubr.bf16.mxu0 0
  %1166 = vmatmul.mubr.bf16.gmra.mxu0 %v1038
  %v1167 = vpop.f32.mrf.mxu0
  %v1168 = vadd.f32 %v863, %v1167
  %v1169 = vpop.f32.mrf.mxu0
  %v1170 = vpop.f32.mrf.mxu0
  %v1171 = vadd.f32 %v863, %v1170
  %v1172 = vpop.f32.mrf.mxu0
  %1173 = vmatprep.mubr.bf16.mxu0 0
  %1174 = vmatmul.mubr.bf16.gmra.mxu0 %v1041
  %v1175 = vpop.f32.mrf.mxu0
  %v1176 = vadd.f32 %v863, %v1175
  %v1177 = vpop.f32.mrf.mxu0
  %v1178 = vpop.f32.mrf.mxu0
  %v1179 = vadd.f32 %v863, %v1178
  %v1180 = vpop.f32.mrf.mxu0
  %1181 = vmatprep.mubr.bf16.mxu0 0
  %1182 = vmatmul.mubr.bf16.gmra.mxu0 %v1044
  %v1183 = vpop.f32.mrf.mxu0
  %v1184 = vadd.f32 %v863, %v1183
  %v1185 = vpop.f32.mrf.mxu0
  %v1186 = vpop.f32.mrf.mxu0
  %v1187 = vadd.f32 %v863, %v1186
  %v1188 = vpop.f32.mrf.mxu0
  %1189 = vmatprep.mubr.bf16.mxu0 0
  %1190 = vmatmul.mubr.bf16.gmra.mxu0 %v1047
  %v1191 = vpop.f32.mrf.mxu0
  %v1192 = vadd.f32 %v863, %v1191
  %v1193 = vpop.f32.mrf.mxu0
  %v1194 = vpop.f32.mrf.mxu0
  %v1195 = vadd.f32 %v863, %v1194
  %v1196 = vpop.f32.mrf.mxu0
  %1197 = vmatprep.mubr.bf16.mxu0 0
  %1198 = vmatmul.mubr.bf16.gmra.mxu0 %v1050
  %v1199 = vpop.f32.mrf.mxu0
  %v1200 = vadd.f32 %v863, %v1199
  %v1201 = vpop.f32.mrf.mxu0
  %v1202 = vpop.f32.mrf.mxu0
  %v1203 = vadd.f32 %v863, %v1202
  %v1204 = vpop.f32.mrf.mxu0
  %1205 = vmatprep.mubr.bf16.mxu0 0
  %1206 = vmatmul.mubr.bf16.gmra.mxu0 %v1053
  %v1207 = vpop.f32.mrf.mxu0
  %v1208 = vadd.f32 %v863, %v1207
  %v1209 = vpop.f32.mrf.mxu0
  %v1210 = vpop.f32.mrf.mxu0
  %v1211 = vadd.f32 %v863, %v1210
  %v1212 = vpop.f32.mrf.mxu0
  %1213 = vmatprep.mubr.bf16.mxu0 0
  %1214 = vmatmul.mubr.bf16.gmra.mxu0 %v1056
  %v1215 = vpop.f32.mrf.mxu0
  %v1216 = vadd.f32 %v863, %v1215
  %v1217 = vpop.f32.mrf.mxu0
  %v1218 = vpop.f32.mrf.mxu0
  %v1219 = vadd.f32 %v863, %v1218
  %v1220 = vpop.f32.mrf.mxu0
  %1221 = vmatprep.mubr.bf16.mxu0 0
  %1222 = vmatmul.mubr.bf16.gmra.mxu0 %v1059
  %v1223 = vpop.f32.mrf.mxu0
  %v1224 = vadd.f32 %v863, %v1223
  %v1225 = vpop.f32.mrf.mxu0
  %v1226 = vpop.f32.mrf.mxu0
  %v1227 = vadd.f32 %v863, %v1226
  %v1228 = vpop.f32.mrf.mxu0
  %1229 = vmatprep.mubr.bf16.mxu0 0
  %1230 = vmatmul.mubr.bf16.gmra.mxu0 %v1062
  %v1231 = vpop.f32.mrf.mxu0
  %v1232 = vadd.f32 %v863, %v1231
  %v1233 = vpop.f32.mrf.mxu0
  %v1234 = vpop.f32.mrf.mxu0
  %v1235 = vadd.f32 %v863, %v1234
  %v1236 = vpop.f32.mrf.mxu0
  %1237 = vmatprep.mubr.bf16.mxu0 0
  %1238 = vmatmul.mubr.bf16.gmra.mxu0 %v1065
  %v1239 = vpop.f32.mrf.mxu0
  %v1240 = vadd.f32 %v863, %v1239
  %v1241 = vpop.f32.mrf.mxu0
  %v1242 = vpop.f32.mrf.mxu0
  %v1243 = vadd.f32 %v863, %v1242
  %v1244 = vpop.f32.mrf.mxu0
  %1245 = vmatprep.mubr.bf16.mxu0 0
  %1246 = vmatmul.mubr.bf16.gmra.mxu0 %v1068
  %v1247 = vpop.f32.mrf.mxu0
  %v1248 = vadd.f32 %v863, %v1247
  %v1249 = vpop.f32.mrf.mxu0
  %v1250 = vpop.f32.mrf.mxu0
  %v1251 = vadd.f32 %v863, %v1250
  %v1252 = vpop.f32.mrf.mxu0
  %1253 = vmatprep.mubr.bf16.mxu0 0
  %1254 = vmatmul.mubr.bf16.gmra.mxu0 %v1071
  %v1255 = vpop.f32.mrf.mxu0
  %v1256 = vadd.f32 %v863, %v1255
  %v1257 = vpop.f32.mrf.mxu0
  %v1258 = vpop.f32.mrf.mxu0
  %v1259 = vadd.f32 %v863, %v1258
  %v1260 = vpop.f32.mrf.mxu0
  %1261 = vmatprep.mubr.bf16.mxu0 0
  %1262 = vmatmul.mubr.bf16.gmra.mxu0 %v1074
  %v1263 = vpop.f32.mrf.mxu0
  %v1264 = vadd.f32 %v863, %v1263
  %v1265 = vpop.f32.mrf.mxu0
  %v1266 = vpop.f32.mrf.mxu0
  %v1267 = vadd.f32 %v863, %v1266
  %v1268 = vpop.f32.mrf.mxu0
  %1269 = vmatprep.mubr.bf16.mxu0 0
  %1270 = vmatmul.mubr.bf16.gmra.mxu0 %v1077
  %v1271 = vpop.f32.mrf.mxu0
  %v1272 = vadd.f32 %v863, %v1271
  %v1273 = vpop.f32.mrf.mxu0
  %v1274 = vpop.f32.mrf.mxu0
  %v1275 = vadd.f32 %v863, %v1274
  %v1276 = vpop.f32.mrf.mxu0
  %1277 = vmatprep.mubr.bf16.mxu0 0
  %1278 = vmatmul.mubr.bf16.gmra.mxu0 %v1080
  %v1279 = vpop.f32.mrf.mxu0
  %v1280 = vadd.f32 %v863, %v1279
  %v1281 = vpop.f32.mrf.mxu0
  %v1282 = vpop.f32.mrf.mxu0
  %v1283 = vadd.f32 %v863, %v1282
  %v1284 = vpop.f32.mrf.mxu0
  %1285 = vmatprep.mubr.bf16.mxu0 0
  %1286 = vmatmul.mubr.bf16.gmra.mxu0 %v1083
  %v1287 = vpop.f32.mrf.mxu0
  %v1288 = vadd.f32 %v863, %v1287
  %v1289 = vpop.f32.mrf.mxu0
  %v1290 = vpop.f32.mrf.mxu0
  %v1291 = vadd.f32 %v863, %v1290
  %v1292 = vpop.f32.mrf.mxu0
  %1293 = vmatprep.mubr.bf16.mxu0 0
  %1294 = vmatmul.mubr.bf16.gmra.mxu0 %v1086
  %v1295 = vpop.f32.mrf.mxu0
  %v1296 = vadd.f32 %v863, %v1295
  %v1297 = vpop.f32.mrf.mxu0
  %v1298 = vpop.f32.mrf.mxu0
  %v1299 = vadd.f32 %v863, %v1298
  %v1300 = vpop.f32.mrf.mxu0
  %1301 = vmatprep.mubr.bf16.mxu0 0
  %1302 = vmatmul.mubr.bf16.gmra.mxu0 %v1089
  %v1303 = vpop.f32.mrf.mxu0
  %v1304 = vadd.f32 %v863, %v1303
  %v1305 = vpop.f32.mrf.mxu0
  %v1306 = vpop.f32.mrf.mxu0
  %v1307 = vadd.f32 %v863, %v1306
  %v1308 = vpop.f32.mrf.mxu0
  %1309 = vmatprep.mubr.bf16.mxu0 0
  %1310 = vmatmul.mubr.bf16.gmra.mxu0 %v1092
  %v1311 = vpop.f32.mrf.mxu0
  %v1312 = vadd.f32 %v863, %v1311
  %v1313 = vpop.f32.mrf.mxu0
  %v1314 = vpop.f32.mrf.mxu0
  %v1315 = vadd.f32 %v863, %v1314
  %v1316 = vpop.f32.mrf.mxu0
  %1317 = vmatprep.mubr.bf16.mxu0 0
  %1318 = vmatmul.mubr.bf16.gmra.mxu0 %v1095
  %v1319 = vpop.f32.mrf.mxu0
  %v1320 = vadd.f32 %v863, %v1319
  %v1321 = vpop.f32.mrf.mxu0
  %v1322 = vpop.f32.mrf.mxu0
  %v1323 = vadd.f32 %v863, %v1322
  %v1324 = vpop.f32.mrf.mxu0
  %1325 = vmatprep.mubr.bf16.mxu0 0
  %1326 = vmatmul.mubr.bf16.gmra.mxu0 %v1098
  %v1327 = vpop.f32.mrf.mxu0
  %v1328 = vadd.f32 %v863, %v1327
  %v1329 = vpop.f32.mrf.mxu0
  %v1330 = vpop.f32.mrf.mxu0
  %v1331 = vadd.f32 %v863, %v1330
  %v1332 = vpop.f32.mrf.mxu0
  %1333 = vmatprep.mubr.bf16.mxu0 0
  %1334 = vmatmul.mubr.bf16.gmra.mxu0 %v1101
  %v1335 = vpop.f32.mrf.mxu0
  %v1336 = vadd.f32 %v863, %v1335
  %v1337 = vpop.f32.mrf.mxu0
  %v1338 = vpop.f32.mrf.mxu0
  %v1339 = vadd.f32 %v863, %v1338
  %v1340 = vpop.f32.mrf.mxu0
  %1341 = vmatprep.mubr.bf16.mxu0 0
  %1342 = vmatmul.mubr.bf16.gmra.mxu0 %v1104
  %v1343 = vpop.f32.mrf.mxu0
  %v1344 = vadd.f32 %v863, %v1343
  %v1345 = vpop.f32.mrf.mxu0
  %v1346 = vpop.f32.mrf.mxu0
  %v1347 = vadd.f32 %v863, %v1346
  %v1348 = vpop.f32.mrf.mxu0
  %1349 = vmatprep.mubr.bf16.mxu0 0
  %1350 = vmatmul.mubr.bf16.gmra.mxu0 %v1107
  %v1351 = vpop.f32.mrf.mxu0
  %v1352 = vadd.f32 %v863, %v1351
  %v1353 = vpop.f32.mrf.mxu0
  %v1354 = vpop.f32.mrf.mxu0
  %v1355 = vadd.f32 %v863, %v1354
  %v1356 = vpop.f32.mrf.mxu0
  %1357 = vmatprep.mubr.bf16.mxu0 0
  %1358 = vmatmul.mubr.bf16.gmra.mxu0 %v1110
  %v1359 = vpop.f32.mrf.mxu0
  %v1360 = vadd.f32 %v863, %v1359
  %v1361 = vpop.f32.mrf.mxu0
  %v1362 = vpop.f32.mrf.mxu0
  %v1363 = vadd.f32 %v863, %v1362
  %v1364 = vpop.f32.mrf.mxu0
  %1365 = vmatprep.mubr.bf16.mxu0 0
  %1366 = vmatmul.mubr.bf16.gmra.mxu0 %v1113
  %v1367 = vpop.f32.mrf.mxu0
  %v1368 = vadd.f32 %v863, %v1367
  %v1369 = vpop.f32.mrf.mxu0
  %v1370 = vpop.f32.mrf.mxu0
  %v1371 = vadd.f32 %v863, %v1370
  %v1372 = vpop.f32.mrf.mxu0
  %1373 = vmatprep.mubr.bf16.mxu0 0
  %1374 = vmatmul.mubr.bf16.gmra.mxu0 %v1116
  %v1375 = vpop.f32.mrf.mxu0
  %v1376 = vadd.f32 %v863, %v1375
  %v1377 = vpop.f32.mrf.mxu0
  %v1378 = vpop.f32.mrf.mxu0
  %v1379 = vadd.f32 %v863, %v1378
  %v1380 = vpop.f32.mrf.mxu0
  %1381 = vmatprep.mubr.bf16.mxu0 0
  %1382 = vmatmul.mubr.bf16.gmra.mxu0 %v1119
  %v1383 = vpop.f32.mrf.mxu0
  %v1384 = vadd.f32 %v863, %v1383
  %v1385 = vpop.f32.mrf.mxu0
  %v1386 = vpop.f32.mrf.mxu0
  %v1387 = vadd.f32 %v863, %v1386
  %v1388 = vpop.f32.mrf.mxu0
  %1389 = vmatprep.mubr.bf16.mxu0 0
  %1390 = vmatmul.mubr.bf16.gmra.mxu0 %v1122
  %v1391 = vpop.f32.mrf.mxu0
  %v1392 = vadd.f32 %v863, %v1391
  %v1393 = vpop.f32.mrf.mxu0
  %v1394 = vpop.f32.mrf.mxu0
  %v1395 = vadd.f32 %v863, %v1394
  %v1396 = vpop.f32.mrf.mxu0
  %1397 = vmatprep.mubr.bf16.mxu0 0
  %1398 = vmatmul.mubr.bf16.gmra.mxu0 %v1125
  %v1399 = vpop.f32.mrf.mxu0
  %v1400 = vadd.f32 %v863, %v1399
  %v1401 = vpop.f32.mrf.mxu0
  %v1402 = vpop.f32.mrf.mxu0
  %v1403 = vadd.f32 %v863, %v1402
  %v1404 = vpop.f32.mrf.mxu0
  %1405 = vmatprep.mubr.bf16.mxu0 0
  %1406 = vmatmul.mubr.bf16.gmra.mxu0 %v1128
  %v1407 = vpop.f32.mrf.mxu0
  %v1408 = vadd.f32 %v863, %v1407
  %v1409 = vpop.f32.mrf.mxu0
  %v1410 = vpop.f32.mrf.mxu0
  %v1411 = vadd.f32 %v863, %v1410
  %v1412 = vpop.f32.mrf.mxu0
  %1413 = vmatprep.mubr.bf16.mxu0 0
  %1414 = vmatmul.mubr.bf16.gmra.mxu0 %v1131
  %v1415 = vpop.f32.mrf.mxu0
  %v1416 = vadd.f32 %v863, %v1415
  %v1417 = vpop.f32.mrf.mxu0
  %v1418 = vpop.f32.mrf.mxu0
  %v1419 = vadd.f32 %v863, %v1418
  %v1420 = vpop.f32.mrf.mxu0
  %1421 = vdwg.mxu0
  %1486 = vrot.lane.b32.xlu0 %v1168, 64
  %v1487 = vpop.permute.xlu0 %1486
  %1488 = vrot.lane.b32.xlu0 %v1171, 64
  %v1489 = vpop.permute.xlu0 %1488
  %1490 = vrot.lane.b32.xlu0 %v1176, 64
  %v1491 = vpop.permute.xlu0 %1490
  %1492 = vrot.lane.b32.xlu0 %v1179, 64
  %v1493 = vpop.permute.xlu0 %1492
  %1494 = vrot.lane.b32.xlu0 %v1184, 64
  %v1495 = vpop.permute.xlu0 %1494
  %1496 = vrot.lane.b32.xlu0 %v1187, 64
  %v1497 = vpop.permute.xlu0 %1496
  %1498 = vrot.lane.b32.xlu0 %v1192, 64
  %v1499 = vpop.permute.xlu0 %1498
  %1500 = vrot.lane.b32.xlu0 %v1195, 64
  %v1501 = vpop.permute.xlu0 %1500
  %1502 = vrot.lane.b32.xlu0 %v1200, 64
  %v1503 = vpop.permute.xlu0 %1502
  %1504 = vrot.lane.b32.xlu0 %v1203, 64
  %v1505 = vpop.permute.xlu0 %1504
  %1506 = vrot.lane.b32.xlu0 %v1208, 64
  %v1507 = vpop.permute.xlu0 %1506
  %1508 = vrot.lane.b32.xlu0 %v1211, 64
  %v1509 = vpop.permute.xlu0 %1508
  %1510 = vrot.lane.b32.xlu0 %v1216, 64
  %v1511 = vpop.permute.xlu0 %1510
  %1512 = vrot.lane.b32.xlu0 %v1219, 64
  %v1513 = vpop.permute.xlu0 %1512
  %1514 = vrot.lane.b32.xlu0 %v1224, 64
  %v1515 = vpop.permute.xlu0 %1514
  %1516 = vrot.lane.b32.xlu0 %v1227, 64
  %v1517 = vpop.permute.xlu0 %1516
  %1518 = vrot.lane.b32.xlu0 %v1232, 64
  %v1519 = vpop.permute.xlu0 %1518
  %1520 = vrot.lane.b32.xlu0 %v1235, 64
  %v1521 = vpop.permute.xlu0 %1520
  %1522 = vrot.lane.b32.xlu0 %v1240, 64
  %v1523 = vpop.permute.xlu0 %1522
  %1524 = vrot.lane.b32.xlu0 %v1243, 64
  %v1525 = vpop.permute.xlu0 %1524
  %1526 = vrot.lane.b32.xlu0 %v1248, 64
  %v1527 = vpop.permute.xlu0 %1526
  %1528 = vrot.lane.b32.xlu0 %v1251, 64
  %v1529 = vpop.permute.xlu0 %1528
  %1530 = vrot.lane.b32.xlu0 %v1256, 64
  %v1531 = vpop.permute.xlu0 %1530
  %1532 = vrot.lane.b32.xlu0 %v1259, 64
  %v1533 = vpop.permute.xlu0 %1532
  %1534 = vrot.lane.b32.xlu0 %v1264, 64
  %v1535 = vpop.permute.xlu0 %1534
  %1536 = vrot.lane.b32.xlu0 %v1267, 64
  %v1537 = vpop.permute.xlu0 %1536
  %1538 = vrot.lane.b32.xlu0 %v1272, 64
  %v1539 = vpop.permute.xlu0 %1538
  %1540 = vrot.lane.b32.xlu0 %v1275, 64
  %v1541 = vpop.permute.xlu0 %1540
  %1542 = vrot.lane.b32.xlu0 %v1280, 64
  %v1543 = vpop.permute.xlu0 %1542
  %1544 = vrot.lane.b32.xlu0 %v1283, 64
  %v1545 = vpop.permute.xlu0 %1544
  %1546 = vrot.lane.b32.xlu0 %v1288, 64
  %v1547 = vpop.permute.xlu0 %1546
  %1548 = vrot.lane.b32.xlu0 %v1291, 64
  %v1549 = vpop.permute.xlu0 %1548
  %1550 = vrot.lane.b32.xlu0 %v1296, 64
  %v1551 = vpop.permute.xlu0 %1550
  %1552 = vrot.lane.b32.xlu0 %v1299, 64
  %v1553 = vpop.permute.xlu0 %1552
  %1554 = vrot.lane.b32.xlu0 %v1304, 64
  %v1555 = vpop.permute.xlu0 %1554
  %1556 = vrot.lane.b32.xlu0 %v1307, 64
  %v1557 = vpop.permute.xlu0 %1556
  %1558 = vrot.lane.b32.xlu0 %v1312, 64
  %v1559 = vpop.permute.xlu0 %1558
  %1560 = vrot.lane.b32.xlu0 %v1315, 64
  %v1561 = vpop.permute.xlu0 %1560
  %1562 = vrot.lane.b32.xlu0 %v1320, 64
  %v1563 = vpop.permute.xlu0 %1562
  %1564 = vrot.lane.b32.xlu0 %v1323, 64
  %v1565 = vpop.permute.xlu0 %1564
  %1566 = vrot.lane.b32.xlu0 %v1328, 64
  %v1567 = vpop.permute.xlu0 %1566
  %1568 = vrot.lane.b32.xlu0 %v1331, 64
  %v1569 = vpop.permute.xlu0 %1568
  %1570 = vrot.lane.b32.xlu0 %v1336, 64
  %v1571 = vpop.permute.xlu0 %1570
  %1572 = vrot.lane.b32.xlu0 %v1339, 64
  %v1573 = vpop.permute.xlu0 %1572
  %1574 = vrot.lane.b32.xlu0 %v1344, 64
  %v1575 = vpop.permute.xlu0 %1574
  %1576 = vrot.lane.b32.xlu0 %v1347, 64
  %v1577 = vpop.permute.xlu0 %1576
  %1578 = vrot.lane.b32.xlu0 %v1352, 64
  %v1579 = vpop.permute.xlu0 %1578
  %1580 = vrot.lane.b32.xlu0 %v1355, 64
  %v1581 = vpop.permute.xlu0 %1580
  %1582 = vrot.lane.b32.xlu0 %v1360, 64
  %v1583 = vpop.permute.xlu0 %1582
  %1584 = vrot.lane.b32.xlu0 %v1363, 64
  %v1585 = vpop.permute.xlu0 %1584
  %1586 = vrot.lane.b32.xlu0 %v1368, 64
  %v1587 = vpop.permute.xlu0 %1586
  %1588 = vrot.lane.b32.xlu0 %v1371, 64
  %v1589 = vpop.permute.xlu0 %1588
  %1590 = vrot.lane.b32.xlu0 %v1376, 64
  %v1591 = vpop.permute.xlu0 %1590
  %1592 = vrot.lane.b32.xlu0 %v1379, 64
  %v1593 = vpop.permute.xlu0 %1592
  %1594 = vrot.lane.b32.xlu0 %v1384, 64
  %v1595 = vpop.permute.xlu0 %1594
  %1596 = vrot.lane.b32.xlu0 %v1387, 64
  %v1597 = vpop.permute.xlu0 %1596
  %1598 = vrot.lane.b32.xlu0 %v1392, 64
  %v1599 = vpop.permute.xlu0 %1598
  %1600 = vrot.lane.b32.xlu0 %v1395, 64
  %v1601 = vpop.permute.xlu0 %1600
  %1602 = vrot.lane.b32.xlu0 %v1400, 64
  %v1603 = vpop.permute.xlu0 %1602
  %1604 = vrot.lane.b32.xlu0 %v1403, 64
  %v1605 = vpop.permute.xlu0 %1604
  %1606 = vrot.lane.b32.xlu0 %v1408, 64
  %v1607 = vpop.permute.xlu0 %1606
  %1608 = vrot.lane.b32.xlu0 %v1411, 64
  %v1609 = vpop.permute.xlu0 %1608
  %1610 = vrot.lane.b32.xlu0 %v1416, 64
  %v1611 = vpop.permute.xlu0 %1610
  %1612 = vrot.lane.b32.xlu0 %v1419, 64
  %v1613 = vpop.permute.xlu0 %1612
  %v1678 = vadd.f32 %v727, %v1487
  %v1679 = vadd.f32 %v728, %v1489
  %v1680 = vadd.f32 %v729, %v1491
  %v1681 = vadd.f32 %v730, %v1493
  %v1682 = vadd.f32 %v731, %v1495
  %v1683 = vadd.f32 %v732, %v1497
  %v1684 = vadd.f32 %v733, %v1499
  %v1685 = vadd.f32 %v734, %v1501
  %v1686 = vadd.f32 %v735, %v1503
  %v1687 = vadd.f32 %v736, %v1505
  %v1688 = vadd.f32 %v737, %v1507
  %v1689 = vadd.f32 %v738, %v1509
  %v1690 = vadd.f32 %v739, %v1511
  %v1691 = vadd.f32 %v740, %v1513
  %v1692 = vadd.f32 %v741, %v1515
  %v1693 = vadd.f32 %v742, %v1517
  %v1694 = vadd.f32 %v743, %v1519
  %v1695 = vadd.f32 %v744, %v1521
  %v1696 = vadd.f32 %v745, %v1523
  %v1697 = vadd.f32 %v746, %v1525
  %v1698 = vadd.f32 %v747, %v1527
  %v1699 = vadd.f32 %v748, %v1529
  %v1700 = vadd.f32 %v749, %v1531
  %v1701 = vadd.f32 %v750, %v1533
  %v1702 = vadd.f32 %v751, %v1535
  %v1703 = vadd.f32 %v752, %v1537
  %v1704 = vadd.f32 %v753, %v1539
  %v1705 = vadd.f32 %v754, %v1541
  %v1706 = vadd.f32 %v755, %v1543
  %v1707 = vadd.f32 %v756, %v1545
  %v1708 = vadd.f32 %v757, %v1547
  %v1709 = vadd.f32 %v758, %v1549
  %v1710 = vadd.f32 %v759, %v1551
  %v1711 = vadd.f32 %v760, %v1553
  %v1712 = vadd.f32 %v761, %v1555
  %v1713 = vadd.f32 %v762, %v1557
  %v1714 = vadd.f32 %v763, %v1559
  %v1715 = vadd.f32 %v764, %v1561
  %v1716 = vadd.f32 %v765, %v1563
  %v1717 = vadd.f32 %v766, %v1565
  %v1718 = vadd.f32 %v767, %v1567
  %v1719 = vadd.f32 %v768, %v1569
  %v1720 = vadd.f32 %v769, %v1571
  %v1721 = vadd.f32 %v770, %v1573
  %v1722 = vadd.f32 %v771, %v1575
  %v1723 = vadd.f32 %v772, %v1577
  %v1724 = vadd.f32 %v773, %v1579
  %v1725 = vadd.f32 %v774, %v1581
  %v1726 = vadd.f32 %v775, %v1583
  %v1727 = vadd.f32 %v776, %v1585
  %v1728 = vadd.f32 %v777, %v1587
  %v1729 = vadd.f32 %v778, %v1589
  %v1730 = vadd.f32 %v779, %v1591
  %v1731 = vadd.f32 %v780, %v1593
  %v1732 = vadd.f32 %v781, %v1595
  %v1733 = vadd.f32 %v782, %v1597
  %v1734 = vadd.f32 %v783, %v1599
  %v1735 = vadd.f32 %v784, %v1601
  %v1736 = vadd.f32 %v785, %v1603
  %v1737 = vadd.f32 %v786, %v1605
  %v1738 = vadd.f32 %v787, %v1607
  %v1739 = vadd.f32 %v788, %v1609
  %v1740 = vadd.f32 %v789, %v1611
  %v1741 = vadd.f32 %v790, %v1613
  %v1742 = vld [vmem:[%s7 + $0x3] sm:$0x1]
  %v1743 = vld [vmem:[%s7 + $0x4] sm:$0x1]
  %v1744 = vsel %vm1036, %v727, 0.0
  %v1745 = vsel %vm1036, %v728, 0.0
  %v1746 = vadd.f32 %v1744, %v1745
  %v1747 = vsel %vm1036, %v729, 0.0
  %v1748 = vadd.f32 %v1746, %v1747
  %v1749 = vsel %vm1036, %v730, 0.0
  %v1750 = vadd.f32 %v1748, %v1749
  %v1751 = vsel %vm1036, %v731, 0.0
  %v1752 = vadd.f32 %v1750, %v1751
  %v1753 = vsel %vm1036, %v732, 0.0
  %v1754 = vadd.f32 %v1752, %v1753
  %v1755 = vsel %vm1036, %v733, 0.0
  %v1756 = vadd.f32 %v1754, %v1755
  %v1757 = vsel %vm1036, %v734, 0.0
  %v1758 = vadd.f32 %v1756, %v1757
  %v1759 = vsel %vm1036, %v735, 0.0
  %v1760 = vadd.f32 %v1758, %v1759
  %v1761 = vsel %vm1036, %v736, 0.0
  %v1762 = vadd.f32 %v1760, %v1761
  %v1763 = vsel %vm1036, %v737, 0.0
  %v1764 = vadd.f32 %v1762, %v1763
  %v1765 = vsel %vm1036, %v738, 0.0
  %v1766 = vadd.f32 %v1764, %v1765
  %v1767 = vsel %vm1036, %v739, 0.0
  %v1768 = vadd.f32 %v1766, %v1767
  %v1769 = vsel %vm1036, %v740, 0.0
  %v1770 = vadd.f32 %v1768, %v1769
  %v1771 = vsel %vm1036, %v741, 0.0
  %v1772 = vadd.f32 %v1770, %v1771
  %v1773 = vsel %vm1036, %v742, 0.0
  %v1774 = vadd.f32 %v1772, %v1773
  %v1775 = vsel %vm1036, %v743, 0.0
  %v1776 = vadd.f32 %v1774, %v1775
  %v1777 = vsel %vm1036, %v744, 0.0
  %v1778 = vadd.f32 %v1776, %v1777
  %v1779 = vsel %vm1036, %v745, 0.0
  %v1780 = vadd.f32 %v1778, %v1779
  %v1781 = vsel %vm1036, %v746, 0.0
  %v1782 = vadd.f32 %v1780, %v1781
  %v1783 = vsel %vm1036, %v747, 0.0
  %v1784 = vadd.f32 %v1782, %v1783
  %v1785 = vsel %vm1036, %v748, 0.0
  %v1786 = vadd.f32 %v1784, %v1785
  %v1787 = vsel %vm1036, %v749, 0.0
  %v1788 = vadd.f32 %v1786, %v1787
  %v1789 = vsel %vm1036, %v750, 0.0
  %v1790 = vadd.f32 %v1788, %v1789
  %v1791 = vsel %vm1036, %v751, 0.0
  %v1792 = vadd.f32 %v1790, %v1791
  %v1793 = vsel %vm1036, %v752, 0.0
  %v1794 = vadd.f32 %v1792, %v1793
  %v1795 = vsel %vm1036, %v753, 0.0
  %v1796 = vadd.f32 %v1794, %v1795
  %v1797 = vsel %vm1036, %v754, 0.0
  %v1798 = vadd.f32 %v1796, %v1797
  %v1799 = vsel %vm1036, %v755, 0.0
  %v1800 = vadd.f32 %v1798, %v1799
  %v1801 = vsel %vm1036, %v756, 0.0
  %v1802 = vadd.f32 %v1800, %v1801
  %v1803 = vsel %vm1036, %v757, 0.0
  %v1804 = vadd.f32 %v1802, %v1803
  %v1805 = vsel %vm1036, %v758, 0.0
  %v1806 = vadd.f32 %v1804, %v1805
  %v1807 = vsel %vm1036, %v759, 0.0
  %v1808 = vadd.f32 %v1806, %v1807
  %v1809 = vsel %vm1036, %v760, 0.0
  %v1810 = vadd.f32 %v1808, %v1809
  %v1811 = vsel %vm1036, %v761, 0.0
  %v1812 = vadd.f32 %v1810, %v1811
  %v1813 = vsel %vm1036, %v762, 0.0
  %v1814 = vadd.f32 %v1812, %v1813
  %v1815 = vsel %vm1036, %v763, 0.0
  %v1816 = vadd.f32 %v1814, %v1815
  %v1817 = vsel %vm1036, %v764, 0.0
  %v1818 = vadd.f32 %v1816, %v1817
  %v1819 = vsel %vm1036, %v765, 0.0
  %v1820 = vadd.f32 %v1818, %v1819
  %v1821 = vsel %vm1036, %v766, 0.0
  %v1822 = vadd.f32 %v1820, %v1821
  %v1823 = vsel %vm1036, %v767, 0.0
  %v1824 = vadd.f32 %v1822, %v1823
  %v1825 = vsel %vm1036, %v768, 0.0
  %v1826 = vadd.f32 %v1824, %v1825
  %v1827 = vsel %vm1036, %v769, 0.0
  %v1828 = vadd.f32 %v1826, %v1827
  %v1829 = vsel %vm1036, %v770, 0.0
  %v1830 = vadd.f32 %v1828, %v1829
  %v1831 = vsel %vm1036, %v771, 0.0
  %v1832 = vadd.f32 %v1830, %v1831
  %v1833 = vsel %vm1036, %v772, 0.0
  %v1834 = vadd.f32 %v1832, %v1833
  %v1835 = vsel %vm1036, %v773, 0.0
  %v1836 = vadd.f32 %v1834, %v1835
  %v1837 = vsel %vm1036, %v774, 0.0
  %v1838 = vadd.f32 %v1836, %v1837
  %v1839 = vsel %vm1036, %v775, 0.0
  %v1840 = vadd.f32 %v1838, %v1839
  %v1841 = vsel %vm1036, %v776, 0.0
  %v1842 = vadd.f32 %v1840, %v1841
  %v1843 = vsel %vm1036, %v777, 0.0
  %v1844 = vadd.f32 %v1842, %v1843
  %v1845 = vsel %vm1036, %v778, 0.0
  %v1846 = vadd.f32 %v1844, %v1845
  %v1847 = vsel %vm1036, %v779, 0.0
  %v1848 = vadd.f32 %v1846, %v1847
  %v1849 = vsel %vm1036, %v780, 0.0
  %v1850 = vadd.f32 %v1848, %v1849
  %v1851 = vsel %vm1036, %v781, 0.0
  %v1852 = vadd.f32 %v1850, %v1851
  %v1853 = vsel %vm1036, %v782, 0.0
  %v1854 = vadd.f32 %v1852, %v1853
  %v1855 = vsel %vm1036, %v783, 0.0
  %v1856 = vadd.f32 %v1854, %v1855
  %v1857 = vsel %vm1036, %v784, 0.0
  %v1858 = vadd.f32 %v1856, %v1857
  %v1859 = vsel %vm1036, %v785, 0.0
  %v1860 = vadd.f32 %v1858, %v1859
  %v1861 = vsel %vm1036, %v786, 0.0
  %v1862 = vadd.f32 %v1860, %v1861
  %v1863 = vsel %vm1036, %v787, 0.0
  %v1864 = vadd.f32 %v1862, %v1863
  %v1865 = vsel %vm1036, %v788, 0.0
  %v1866 = vadd.f32 %v1864, %v1865
  %v1867 = vsel %vm1036, %v789, 0.0
  %v1868 = vadd.f32 %v1866, %v1867
  %v1869 = vsel %vm1036, %v790, 0.0
  %v1870 = vadd.f32 %v1868, %v1869
  %v1871 = vrot.slane %v1870, 4
  %v1872 = vadd.f32 %v1870, %v1871
  %v1873 = vrot.slane %v1872, 2
  %v1874 = vadd.f32 %v1872, %v1873
  %v1875 = vrot.slane %v1874, 1
  %v1876 = vadd.f32 %v1874, %v1875
  %v1877 = vrcp.pop 512.0
  %v1878 = vmul.f32 %v1876, %v1877
  %v1879 = vsub.f32 %v727, %v1878
  %v1880 = vsub.f32 %v728, %v1878
  %v1881 = vsub.f32 %v729, %v1878
  %v1882 = vsub.f32 %v730, %v1878
  %v1883 = vsub.f32 %v731, %v1878
  %v1884 = vsub.f32 %v732, %v1878
  %v1885 = vsub.f32 %v733, %v1878
  %v1886 = vsub.f32 %v734, %v1878
  %v1887 = vsub.f32 %v735, %v1878
  %v1888 = vsub.f32 %v736, %v1878
  %v1889 = vsub.f32 %v737, %v1878
  %v1890 = vsub.f32 %v738, %v1878
  %v1891 = vsub.f32 %v739, %v1878
  %v1892 = vsub.f32 %v740, %v1878
  %v1893 = vsub.f32 %v741, %v1878
  %v1894 = vsub.f32 %v742, %v1878
  %v1895 = vsub.f32 %v743, %v1878
  %v1896 = vsub.f32 %v744, %v1878
  %v1897 = vsub.f32 %v745, %v1878
  %v1898 = vsub.f32 %v746, %v1878
  %v1899 = vsub.f32 %v747, %v1878
  %v1900 = vsub.f32 %v748, %v1878
  %v1901 = vsub.f32 %v749, %v1878
  %v1902 = vsub.f32 %v750, %v1878
  %v1903 = vsub.f32 %v751, %v1878
  %v1904 = vsub.f32 %v752, %v1878
  %v1905 = vsub.f32 %v753, %v1878
  %v1906 = vsub.f32 %v754, %v1878
  %v1907 = vsub.f32 %v755, %v1878
  %v1908 = vsub.f32 %v756, %v1878
  %v1909 = vsub.f32 %v757, %v1878
  %v1910 = vsub.f32 %v758, %v1878
  %v1911 = vsub.f32 %v759, %v1878
  %v1912 = vsub.f32 %v760, %v1878
  %v1913 = vsub.f32 %v761, %v1878
  %v1914 = vsub.f32 %v762, %v1878
  %v1915 = vsub.f32 %v763, %v1878
  %v1916 = vsub.f32 %v764, %v1878
  %v1917 = vsub.f32 %v765, %v1878
  %v1918 = vsub.f32 %v766, %v1878
  %v1919 = vsub.f32 %v767, %v1878
  %v1920 = vsub.f32 %v768, %v1878
  %v1921 = vsub.f32 %v769, %v1878
  %v1922 = vsub.f32 %v770, %v1878
  %v1923 = vsub.f32 %v771, %v1878
  %v1924 = vsub.f32 %v772, %v1878
  %v1925 = vsub.f32 %v773, %v1878
  %v1926 = vsub.f32 %v774, %v1878
  %v1927 = vsub.f32 %v775, %v1878
  %v1928 = vsub.f32 %v776, %v1878
  %v1929 = vsub.f32 %v777, %v1878
  %v1930 = vsub.f32 %v778, %v1878
  %v1931 = vsub.f32 %v779, %v1878
  %v1932 = vsub.f32 %v780, %v1878
  %v1933 = vsub.f32 %v781, %v1878
  %v1934 = vsub.f32 %v782, %v1878
  %v1935 = vsub.f32 %v783, %v1878
  %v1936 = vsub.f32 %v784, %v1878
  %v1937 = vsub.f32 %v785, %v1878
  %v1938 = vsub.f32 %v786, %v1878
  %v1939 = vsub.f32 %v787, %v1878
  %v1940 = vsub.f32 %v788, %v1878
  %v1941 = vsub.f32 %v789, %v1878
  %v1942 = vsub.f32 %v790, %v1878
  %v1943 = vmul.f32 %v1879, %v1879
  %v1944 = vmul.f32 %v1880, %v1880
  %v1945 = vmul.f32 %v1881, %v1881
  %v1946 = vmul.f32 %v1882, %v1882
  %v1947 = vmul.f32 %v1883, %v1883
  %v1948 = vmul.f32 %v1884, %v1884
  %v1949 = vmul.f32 %v1885, %v1885
  %v1950 = vmul.f32 %v1886, %v1886
  %v1951 = vmul.f32 %v1887, %v1887
  %v1952 = vmul.f32 %v1888, %v1888
  %v1953 = vmul.f32 %v1889, %v1889
  %v1954 = vmul.f32 %v1890, %v1890
  %v1955 = vmul.f32 %v1891, %v1891
  %v1956 = vmul.f32 %v1892, %v1892
  %v1957 = vmul.f32 %v1893, %v1893
  %v1958 = vmul.f32 %v1894, %v1894
  %v1959 = vmul.f32 %v1895, %v1895
  %v1960 = vmul.f32 %v1896, %v1896
  %v1961 = vmul.f32 %v1897, %v1897
  %v1962 = vmul.f32 %v1898, %v1898
  %v1963 = vmul.f32 %v1899, %v1899
  %v1964 = vmul.f32 %v1900, %v1900
  %v1965 = vmul.f32 %v1901, %v1901
  %v1966 = vmul.f32 %v1902, %v1902
  %v1967 = vmul.f32 %v1903, %v1903
  %v1968 = vmul.f32 %v1904, %v1904
  %v1969 = vmul.f32 %v1905, %v1905
  %v1970 = vmul.f32 %v1906, %v1906
  %v1971 = vmul.f32 %v1907, %v1907
  %v1972 = vmul.f32 %v1908, %v1908
  %v1973 = vmul.f32 %v1909, %v1909
  %v1974 = vmul.f32 %v1910, %v1910
  %v1975 = vmul.f32 %v1911, %v1911
  %v1976 = vmul.f32 %v1912, %v1912
  %v1977 = vmul.f32 %v1913, %v1913
  %v1978 = vmul.f32 %v1914, %v1914
  %v1979 = vmul.f32 %v1915, %v1915
  %v1980 = vmul.f32 %v1916, %v1916
  %v1981 = vmul.f32 %v1917, %v1917
  %v1982 = vmul.f32 %v1918, %v1918
  %v1983 = vmul.f32 %v1919, %v1919
  %v1984 = vmul.f32 %v1920, %v1920
  %v1985 = vmul.f32 %v1921, %v1921
  %v1986 = vmul.f32 %v1922, %v1922
  %v1987 = vmul.f32 %v1923, %v1923
  %v1988 = vmul.f32 %v1924, %v1924
  %v1989 = vmul.f32 %v1925, %v1925
  %v1990 = vmul.f32 %v1926, %v1926
  %v1991 = vmul.f32 %v1927, %v1927
  %v1992 = vmul.f32 %v1928, %v1928
  %v1993 = vmul.f32 %v1929, %v1929
  %v1994 = vmul.f32 %v1930, %v1930
  %v1995 = vmul.f32 %v1931, %v1931
  %v1996 = vmul.f32 %v1932, %v1932
  %v1997 = vmul.f32 %v1933, %v1933
  %v1998 = vmul.f32 %v1934, %v1934
  %v1999 = vmul.f32 %v1935, %v1935
  %v2000 = vmul.f32 %v1936, %v1936
  %v2001 = vmul.f32 %v1937, %v1937
  %v2002 = vmul.f32 %v1938, %v1938
  %v2003 = vmul.f32 %v1939, %v1939
  %v2004 = vmul.f32 %v1940, %v1940
  %v2005 = vmul.f32 %v1941, %v1941
  %v2006 = vmul.f32 %v1942, %v1942
  %v2007 = vsel %vm1036, %v1943, 0.0
  %v2008 = vsel %vm1036, %v1944, 0.0
  %v2009 = vadd.f32 %v2007, %v2008
  %v2010 = vsel %vm1036, %v1945, 0.0
  %v2011 = vadd.f32 %v2009, %v2010
  %v2012 = vsel %vm1036, %v1946, 0.0
  %v2013 = vadd.f32 %v2011, %v2012
  %v2014 = vsel %vm1036, %v1947, 0.0
  %v2015 = vadd.f32 %v2013, %v2014
  %v2016 = vsel %vm1036, %v1948, 0.0
  %v2017 = vadd.f32 %v2015, %v2016
  %v2018 = vsel %vm1036, %v1949, 0.0
  %v2019 = vadd.f32 %v2017, %v2018
  %v2020 = vsel %vm1036, %v1950, 0.0
  %v2021 = vadd.f32 %v2019, %v2020
  %v2022 = vsel %vm1036, %v1951, 0.0
  %v2023 = vadd.f32 %v2021, %v2022
  %v2024 = vsel %vm1036, %v1952, 0.0
  %v2025 = vadd.f32 %v2023, %v2024
  %v2026 = vsel %vm1036, %v1953, 0.0
  %v2027 = vadd.f32 %v2025, %v2026
  %v2028 = vsel %vm1036, %v1954, 0.0
  %v2029 = vadd.f32 %v2027, %v2028
  %v2030 = vsel %vm1036, %v1955, 0.0
  %v2031 = vadd.f32 %v2029, %v2030
  %v2032 = vsel %vm1036, %v1956, 0.0
  %v2033 = vadd.f32 %v2031, %v2032
  %v2034 = vsel %vm1036, %v1957, 0.0
  %v2035 = vadd.f32 %v2033, %v2034
  %v2036 = vsel %vm1036, %v1958, 0.0
  %v2037 = vadd.f32 %v2035, %v2036
  %v2038 = vsel %vm1036, %v1959, 0.0
  %v2039 = vadd.f32 %v2037, %v2038
  %v2040 = vsel %vm1036, %v1960, 0.0
  %v2041 = vadd.f32 %v2039, %v2040
  %v2042 = vsel %vm1036, %v1961, 0.0
  %v2043 = vadd.f32 %v2041, %v2042
  %v2044 = vsel %vm1036, %v1962, 0.0
  %v2045 = vadd.f32 %v2043, %v2044
  %v2046 = vsel %vm1036, %v1963, 0.0
  %v2047 = vadd.f32 %v2045, %v2046
  %v2048 = vsel %vm1036, %v1964, 0.0
  %v2049 = vadd.f32 %v2047, %v2048
  %v2050 = vsel %vm1036, %v1965, 0.0
  %v2051 = vadd.f32 %v2049, %v2050
  %v2052 = vsel %vm1036, %v1966, 0.0
  %v2053 = vadd.f32 %v2051, %v2052
  %v2054 = vsel %vm1036, %v1967, 0.0
  %v2055 = vadd.f32 %v2053, %v2054
  %v2056 = vsel %vm1036, %v1968, 0.0
  %v2057 = vadd.f32 %v2055, %v2056
  %v2058 = vsel %vm1036, %v1969, 0.0
  %v2059 = vadd.f32 %v2057, %v2058
  %v2060 = vsel %vm1036, %v1970, 0.0
  %v2061 = vadd.f32 %v2059, %v2060
  %v2062 = vsel %vm1036, %v1971, 0.0
  %v2063 = vadd.f32 %v2061, %v2062
  %v2064 = vsel %vm1036, %v1972, 0.0
  %v2065 = vadd.f32 %v2063, %v2064
  %v2066 = vsel %vm1036, %v1973, 0.0
  %v2067 = vadd.f32 %v2065, %v2066
  %v2068 = vsel %vm1036, %v1974, 0.0
  %v2069 = vadd.f32 %v2067, %v2068
  %v2070 = vsel %vm1036, %v1975, 0.0
  %v2071 = vadd.f32 %v2069, %v2070
  %v2072 = vsel %vm1036, %v1976, 0.0
  %v2073 = vadd.f32 %v2071, %v2072
  %v2074 = vsel %vm1036, %v1977, 0.0
  %v2075 = vadd.f32 %v2073, %v2074
  %v2076 = vsel %vm1036, %v1978, 0.0
  %v2077 = vadd.f32 %v2075, %v2076
  %v2078 = vsel %vm1036, %v1979, 0.0
  %v2079 = vadd.f32 %v2077, %v2078
  %v2080 = vsel %vm1036, %v1980, 0.0
  %v2081 = vadd.f32 %v2079, %v2080
  %v2082 = vsel %vm1036, %v1981, 0.0
  %v2083 = vadd.f32 %v2081, %v2082
  %v2084 = vsel %vm1036, %v1982, 0.0
  %v2085 = vadd.f32 %v2083, %v2084
  %v2086 = vsel %vm1036, %v1983, 0.0
  %v2087 = vadd.f32 %v2085, %v2086
  %v2088 = vsel %vm1036, %v1984, 0.0
  %v2089 = vadd.f32 %v2087, %v2088
  %v2090 = vsel %vm1036, %v1985, 0.0
  %v2091 = vadd.f32 %v2089, %v2090
  %v2092 = vsel %vm1036, %v1986, 0.0
  %v2093 = vadd.f32 %v2091, %v2092
  %v2094 = vsel %vm1036, %v1987, 0.0
  %v2095 = vadd.f32 %v2093, %v2094
  %v2096 = vsel %vm1036, %v1988, 0.0
  %v2097 = vadd.f32 %v2095, %v2096
  %v2098 = vsel %vm1036, %v1989, 0.0
  %v2099 = vadd.f32 %v2097, %v2098
  %v2100 = vsel %vm1036, %v1990, 0.0
  %v2101 = vadd.f32 %v2099, %v2100
  %v2102 = vsel %vm1036, %v1991, 0.0
  %v2103 = vadd.f32 %v2101, %v2102
  %v2104 = vsel %vm1036, %v1992, 0.0
  %v2105 = vadd.f32 %v2103, %v2104
  %v2106 = vsel %vm1036, %v1993, 0.0
  %v2107 = vadd.f32 %v2105, %v2106
  %v2108 = vsel %vm1036, %v1994, 0.0
  %v2109 = vadd.f32 %v2107, %v2108
  %v2110 = vsel %vm1036, %v1995, 0.0
  %v2111 = vadd.f32 %v2109, %v2110
  %v2112 = vsel %vm1036, %v1996, 0.0
  %v2113 = vadd.f32 %v2111, %v2112
  %v2114 = vsel %vm1036, %v1997, 0.0
  %v2115 = vadd.f32 %v2113, %v2114
  %v2116 = vsel %vm1036, %v1998, 0.0
  %v2117 = vadd.f32 %v2115, %v2116
  %v2118 = vsel %vm1036, %v1999, 0.0
  %v2119 = vadd.f32 %v2117, %v2118
  %v2120 = vsel %vm1036, %v2000, 0.0
  %v2121 = vadd.f32 %v2119, %v2120
  %v2122 = vsel %vm1036, %v2001, 0.0
  %v2123 = vadd.f32 %v2121, %v2122
  %v2124 = vsel %vm1036, %v2002, 0.0
  %v2125 = vadd.f32 %v2123, %v2124
  %v2126 = vsel %vm1036, %v2003, 0.0
  %v2127 = vadd.f32 %v2125, %v2126
  %v2128 = vsel %vm1036, %v2004, 0.0
  %v2129 = vadd.f32 %v2127, %v2128
  %v2130 = vsel %vm1036, %v2005, 0.0
  %v2131 = vadd.f32 %v2129, %v2130
  %v2132 = vsel %vm1036, %v2006, 0.0
  %v2133 = vadd.f32 %v2131, %v2132
  %v2134 = vrot.slane %v2133, 4
  %v2135 = vadd.f32 %v2133, %v2134
  %v2136 = vrot.slane %v2135, 2
  %v2137 = vadd.f32 %v2135, %v2136
  %v2138 = vrot.slane %v2137, 1
  %v2139 = vadd.f32 %v2137, %v2138
  %v2140 = vmul.f32 %v2139, %v1877
  %v2141 = vadd.f32 %v2140, 1e-05
  %v2142 = vrsqrt.pop %v2141
  %v2143 = vmul.f32 %v1879, %v2142
  %v2144 = vmul.f32 %v1880, %v2142
  %v2145 = vmul.f32 %v1881, %v2142
  %v2146 = vmul.f32 %v1882, %v2142
  %v2147 = vmul.f32 %v1883, %v2142
  %v2148 = vmul.f32 %v1884, %v2142
  %v2149 = vmul.f32 %v1885, %v2142
  %v2150 = vmul.f32 %v1886, %v2142
  %v2151 = vmul.f32 %v1887, %v2142
  %v2152 = vmul.f32 %v1888, %v2142
  %v2153 = vmul.f32 %v1889, %v2142
  %v2154 = vmul.f32 %v1890, %v2142
  %v2155 = vmul.f32 %v1891, %v2142
  %v2156 = vmul.f32 %v1892, %v2142
  %v2157 = vmul.f32 %v1893, %v2142
  %v2158 = vmul.f32 %v1894, %v2142
  %v2159 = vmul.f32 %v1895, %v2142
  %v2160 = vmul.f32 %v1896, %v2142
  %v2161 = vmul.f32 %v1897, %v2142
  %v2162 = vmul.f32 %v1898, %v2142
  %v2163 = vmul.f32 %v1899, %v2142
  %v2164 = vmul.f32 %v1900, %v2142
  %v2165 = vmul.f32 %v1901, %v2142
  %v2166 = vmul.f32 %v1902, %v2142
  %v2167 = vmul.f32 %v1903, %v2142
  %v2168 = vmul.f32 %v1904, %v2142
  %v2169 = vmul.f32 %v1905, %v2142
  %v2170 = vmul.f32 %v1906, %v2142
  %v2171 = vmul.f32 %v1907, %v2142
  %v2172 = vmul.f32 %v1908, %v2142
  %v2173 = vmul.f32 %v1909, %v2142
  %v2174 = vmul.f32 %v1910, %v2142
  %v2175 = vmul.f32 %v1911, %v2142
  %v2176 = vmul.f32 %v1912, %v2142
  %v2177 = vmul.f32 %v1913, %v2142
  %v2178 = vmul.f32 %v1914, %v2142
  %v2179 = vmul.f32 %v1915, %v2142
  %v2180 = vmul.f32 %v1916, %v2142
  %v2181 = vmul.f32 %v1917, %v2142
  %v2182 = vmul.f32 %v1918, %v2142
  %v2183 = vmul.f32 %v1919, %v2142
  %v2184 = vmul.f32 %v1920, %v2142
  %v2185 = vmul.f32 %v1921, %v2142
  %v2186 = vmul.f32 %v1922, %v2142
  %v2187 = vmul.f32 %v1923, %v2142
  %v2188 = vmul.f32 %v1924, %v2142
  %v2189 = vmul.f32 %v1925, %v2142
  %v2190 = vmul.f32 %v1926, %v2142
  %v2191 = vmul.f32 %v1927, %v2142
  %v2192 = vmul.f32 %v1928, %v2142
  %v2193 = vmul.f32 %v1929, %v2142
  %v2194 = vmul.f32 %v1930, %v2142
  %v2195 = vmul.f32 %v1931, %v2142
  %v2196 = vmul.f32 %v1932, %v2142
  %v2197 = vmul.f32 %v1933, %v2142
  %v2198 = vmul.f32 %v1934, %v2142
  %v2199 = vmul.f32 %v1935, %v2142
  %v2200 = vmul.f32 %v1936, %v2142
  %v2201 = vmul.f32 %v1937, %v2142
  %v2202 = vmul.f32 %v1938, %v2142
  %v2203 = vmul.f32 %v1939, %v2142
  %v2204 = vmul.f32 %v1940, %v2142
  %v2205 = vmul.f32 %v1941, %v2142
  %v2206 = vmul.f32 %v1942, %v2142
  %v2207 = vlaneseq
  %v2208 = vshrl.u32 %v2207, 7
  %v2209 = vsub.s32 0, %v2208
  %v2210 = vrot.slane %v1742, %v2209
  %v2211 = vmul.f32 %v2143, %v2210
  %v2212 = vmul.f32 %v2144, %v2210
  %v2213 = vmul.f32 %v2145, %v2210
  %v2214 = vmul.f32 %v2146, %v2210
  %v2215 = vmul.f32 %v2147, %v2210
  %v2216 = vmul.f32 %v2148, %v2210
  %v2217 = vmul.f32 %v2149, %v2210
  %v2218 = vmul.f32 %v2150, %v2210
  %v2219 = vmul.f32 %v2151, %v2210
  %v2220 = vmul.f32 %v2152, %v2210
  %v2221 = vmul.f32 %v2153, %v2210
  %v2222 = vmul.f32 %v2154, %v2210
  %v2223 = vmul.f32 %v2155, %v2210
  %v2224 = vmul.f32 %v2156, %v2210
  %v2225 = vmul.f32 %v2157, %v2210
  %v2226 = vmul.f32 %v2158, %v2210
  %v2227 = vmul.f32 %v2159, %v2210
  %v2228 = vmul.f32 %v2160, %v2210
  %v2229 = vmul.f32 %v2161, %v2210
  %v2230 = vmul.f32 %v2162, %v2210
  %v2231 = vmul.f32 %v2163, %v2210
  %v2232 = vmul.f32 %v2164, %v2210
  %v2233 = vmul.f32 %v2165, %v2210
  %v2234 = vmul.f32 %v2166, %v2210
  %v2235 = vmul.f32 %v2167, %v2210
  %v2236 = vmul.f32 %v2168, %v2210
  %v2237 = vmul.f32 %v2169, %v2210
  %v2238 = vmul.f32 %v2170, %v2210
  %v2239 = vmul.f32 %v2171, %v2210
  %v2240 = vmul.f32 %v2172, %v2210
  %v2241 = vmul.f32 %v2173, %v2210
  %v2242 = vmul.f32 %v2174, %v2210
  %v2243 = vmul.f32 %v2175, %v2210
  %v2244 = vmul.f32 %v2176, %v2210
  %v2245 = vmul.f32 %v2177, %v2210
  %v2246 = vmul.f32 %v2178, %v2210
  %v2247 = vmul.f32 %v2179, %v2210
  %v2248 = vmul.f32 %v2180, %v2210
  %v2249 = vmul.f32 %v2181, %v2210
  %v2250 = vmul.f32 %v2182, %v2210
  %v2251 = vmul.f32 %v2183, %v2210
  %v2252 = vmul.f32 %v2184, %v2210
  %v2253 = vmul.f32 %v2185, %v2210
  %v2254 = vmul.f32 %v2186, %v2210
  %v2255 = vmul.f32 %v2187, %v2210
  %v2256 = vmul.f32 %v2188, %v2210
  %v2257 = vmul.f32 %v2189, %v2210
  %v2258 = vmul.f32 %v2190, %v2210
  %v2259 = vmul.f32 %v2191, %v2210
  %v2260 = vmul.f32 %v2192, %v2210
  %v2261 = vmul.f32 %v2193, %v2210
  %v2262 = vmul.f32 %v2194, %v2210
  %v2263 = vmul.f32 %v2195, %v2210
  %v2264 = vmul.f32 %v2196, %v2210
  %v2265 = vmul.f32 %v2197, %v2210
  %v2266 = vmul.f32 %v2198, %v2210
  %v2267 = vmul.f32 %v2199, %v2210
  %v2268 = vmul.f32 %v2200, %v2210
  %v2269 = vmul.f32 %v2201, %v2210
  %v2270 = vmul.f32 %v2202, %v2210
  %v2271 = vmul.f32 %v2203, %v2210
  %v2272 = vmul.f32 %v2204, %v2210
  %v2273 = vmul.f32 %v2205, %v2210
  %v2274 = vmul.f32 %v2206, %v2210
  %v2275 = vlaneseq
  %v2276 = vshrl.u32 %v2275, 7
  %v2277 = vsub.s32 0, %v2276
  %v2278 = vrot.slane %v1743, %v2277
  %v2279 = vadd.f32 %v2211, %v2278
  %v2280 = vadd.f32 %v2212, %v2278
  %v2281 = vadd.f32 %v2213, %v2278
  %v2282 = vadd.f32 %v2214, %v2278
  %v2283 = vadd.f32 %v2215, %v2278
  %v2284 = vadd.f32 %v2216, %v2278
  %v2285 = vadd.f32 %v2217, %v2278
  %v2286 = vadd.f32 %v2218, %v2278
  %v2287 = vadd.f32 %v2219, %v2278
  %v2288 = vadd.f32 %v2220, %v2278
  %v2289 = vadd.f32 %v2221, %v2278
  %v2290 = vadd.f32 %v2222, %v2278
  %v2291 = vadd.f32 %v2223, %v2278
  %v2292 = vadd.f32 %v2224, %v2278
  %v2293 = vadd.f32 %v2225, %v2278
  %v2294 = vadd.f32 %v2226, %v2278
  %v2295 = vadd.f32 %v2227, %v2278
  %v2296 = vadd.f32 %v2228, %v2278
  %v2297 = vadd.f32 %v2229, %v2278
  %v2298 = vadd.f32 %v2230, %v2278
  %v2299 = vadd.f32 %v2231, %v2278
  %v2300 = vadd.f32 %v2232, %v2278
  %v2301 = vadd.f32 %v2233, %v2278
  %v2302 = vadd.f32 %v2234, %v2278
  %v2303 = vadd.f32 %v2235, %v2278
  %v2304 = vadd.f32 %v2236, %v2278
  %v2305 = vadd.f32 %v2237, %v2278
  %v2306 = vadd.f32 %v2238, %v2278
  %v2307 = vadd.f32 %v2239, %v2278
  %v2308 = vadd.f32 %v2240, %v2278
  %v2309 = vadd.f32 %v2241, %v2278
  %v2310 = vadd.f32 %v2242, %v2278
  %v2311 = vadd.f32 %v2243, %v2278
  %v2312 = vadd.f32 %v2244, %v2278
  %v2313 = vadd.f32 %v2245, %v2278
  %v2314 = vadd.f32 %v2246, %v2278
  %v2315 = vadd.f32 %v2247, %v2278
  %v2316 = vadd.f32 %v2248, %v2278
  %v2317 = vadd.f32 %v2249, %v2278
  %v2318 = vadd.f32 %v2250, %v2278
  %v2319 = vadd.f32 %v2251, %v2278
  %v2320 = vadd.f32 %v2252, %v2278
  %v2321 = vadd.f32 %v2253, %v2278
  %v2322 = vadd.f32 %v2254, %v2278
  %v2323 = vadd.f32 %v2255, %v2278
  %v2324 = vadd.f32 %v2256, %v2278
  %v2325 = vadd.f32 %v2257, %v2278
  %v2326 = vadd.f32 %v2258, %v2278
  %v2327 = vadd.f32 %v2259, %v2278
  %v2328 = vadd.f32 %v2260, %v2278
  %v2329 = vadd.f32 %v2261, %v2278
  %v2330 = vadd.f32 %v2262, %v2278
  %v2331 = vadd.f32 %v2263, %v2278
  %v2332 = vadd.f32 %v2264, %v2278
  %v2333 = vadd.f32 %v2265, %v2278
  %v2334 = vadd.f32 %v2266, %v2278
  %v2335 = vadd.f32 %v2267, %v2278
  %v2336 = vadd.f32 %v2268, %v2278
  %v2337 = vadd.f32 %v2269, %v2278
  %v2338 = vadd.f32 %v2270, %v2278
  %v2339 = vadd.f32 %v2271, %v2278
  %v2340 = vadd.f32 %v2272, %v2278
  %v2341 = vadd.f32 %v2273, %v2278
  %v2342 = vadd.f32 %v2274, %v2278
  %v2343 = vsub.f32 0.0, %v727
  %v2344 = vsub.f32 0.0, %v728
  %v2345 = vsub.f32 0.0, %v729
  %v2346 = vsub.f32 0.0, %v730
  %v2347 = vsub.f32 0.0, %v731
  %v2348 = vsub.f32 0.0, %v732
  %v2349 = vsub.f32 0.0, %v733
  %v2350 = vsub.f32 0.0, %v734
  %v2351 = vsub.f32 0.0, %v735
  %v2352 = vsub.f32 0.0, %v736
  %v2353 = vsub.f32 0.0, %v737
  %v2354 = vsub.f32 0.0, %v738
  %v2355 = vsub.f32 0.0, %v739
  %v2356 = vsub.f32 0.0, %v740
  %v2357 = vsub.f32 0.0, %v741
  %v2358 = vsub.f32 0.0, %v742
  %v2359 = vsub.f32 0.0, %v743
  %v2360 = vsub.f32 0.0, %v744
  %v2361 = vsub.f32 0.0, %v745
  %v2362 = vsub.f32 0.0, %v746
  %v2363 = vsub.f32 0.0, %v747
  %v2364 = vsub.f32 0.0, %v748
  %v2365 = vsub.f32 0.0, %v749
  %v2366 = vsub.f32 0.0, %v750
  %v2367 = vsub.f32 0.0, %v751
  %v2368 = vsub.f32 0.0, %v752
  %v2369 = vsub.f32 0.0, %v753
  %v2370 = vsub.f32 0.0, %v754
  %v2371 = vsub.f32 0.0, %v755
  %v2372 = vsub.f32 0.0, %v756
  %v2373 = vsub.f32 0.0, %v757
  %v2374 = vsub.f32 0.0, %v758
  %v2375 = vsub.f32 0.0, %v759
  %v2376 = vsub.f32 0.0, %v760
  %v2377 = vsub.f32 0.0, %v761
  %v2378 = vsub.f32 0.0, %v762
  %v2379 = vsub.f32 0.0, %v763
  %v2380 = vsub.f32 0.0, %v764
  %v2381 = vsub.f32 0.0, %v765
  %v2382 = vsub.f32 0.0, %v766
  %v2383 = vsub.f32 0.0, %v767
  %v2384 = vsub.f32 0.0, %v768
  %v2385 = vsub.f32 0.0, %v769
  %v2386 = vsub.f32 0.0, %v770
  %v2387 = vsub.f32 0.0, %v771
  %v2388 = vsub.f32 0.0, %v772
  %v2389 = vsub.f32 0.0, %v773
  %v2390 = vsub.f32 0.0, %v774
  %v2391 = vsub.f32 0.0, %v775
  %v2392 = vsub.f32 0.0, %v776
  %v2393 = vsub.f32 0.0, %v777
  %v2394 = vsub.f32 0.0, %v778
  %v2395 = vsub.f32 0.0, %v779
  %v2396 = vsub.f32 0.0, %v780
  %v2397 = vsub.f32 0.0, %v781
  %v2398 = vsub.f32 0.0, %v782
  %v2399 = vsub.f32 0.0, %v783
  %v2400 = vsub.f32 0.0, %v784
  %v2401 = vsub.f32 0.0, %v785
  %v2402 = vsub.f32 0.0, %v786
  %v2403 = vsub.f32 0.0, %v787
  %v2404 = vsub.f32 0.0, %v788
  %v2405 = vsub.f32 0.0, %v789
  %v2406 = vsub.f32 0.0, %v790
  %v2407 = vmul.f32 %v2343, 1.442695
  %v2408 = vpow.pop %v2407
  %v2409 = vmul.f32 %v2344, 1.442695
  %v2410 = vpow.pop %v2409
  %v2411 = vmul.f32 %v2345, 1.442695
  %v2412 = vpow.pop %v2411
  %v2413 = vmul.f32 %v2346, 1.442695
  %v2414 = vpow.pop %v2413
  %v2415 = vmul.f32 %v2347, 1.442695
  %v2416 = vpow.pop %v2415
  %v2417 = vmul.f32 %v2348, 1.442695
  %v2418 = vpow.pop %v2417
  %v2419 = vmul.f32 %v2349, 1.442695
  %v2420 = vpow.pop %v2419
  %v2421 = vmul.f32 %v2350, 1.442695
  %v2422 = vpow.pop %v2421
  %v2423 = vmul.f32 %v2351, 1.442695
  %v2424 = vpow.pop %v2423
  %v2425 = vmul.f32 %v2352, 1.442695
  %v2426 = vpow.pop %v2425
  %v2427 = vmul.f32 %v2353, 1.442695
  %v2428 = vpow.pop %v2427
  %v2429 = vmul.f32 %v2354, 1.442695
  %v2430 = vpow.pop %v2429
  %v2431 = vmul.f32 %v2355, 1.442695
  %v2432 = vpow.pop %v2431
  %v2433 = vmul.f32 %v2356, 1.442695
  %v2434 = vpow.pop %v2433
  %v2435 = vmul.f32 %v2357, 1.442695
  %v2436 = vpow.pop %v2435
  %v2437 = vmul.f32 %v2358, 1.442695
  %v2438 = vpow.pop %v2437
  %v2439 = vmul.f32 %v2359, 1.442695
  %v2440 = vpow.pop %v2439
  %v2441 = vmul.f32 %v2360, 1.442695
  %v2442 = vpow.pop %v2441
  %v2443 = vmul.f32 %v2361, 1.442695
  %v2444 = vpow.pop %v2443
  %v2445 = vmul.f32 %v2362, 1.442695
  %v2446 = vpow.pop %v2445
  %v2447 = vmul.f32 %v2363, 1.442695
  %v2448 = vpow.pop %v2447
  %v2449 = vmul.f32 %v2364, 1.442695
  %v2450 = vpow.pop %v2449
  %v2451 = vmul.f32 %v2365, 1.442695
  %v2452 = vpow.pop %v2451
  %v2453 = vmul.f32 %v2366, 1.442695
  %v2454 = vpow.pop %v2453
  %v2455 = vmul.f32 %v2367, 1.442695
  %v2456 = vpow.pop %v2455
  %v2457 = vmul.f32 %v2368, 1.442695
  %v2458 = vpow.pop %v2457
  %v2459 = vmul.f32 %v2369, 1.442695
  %v2460 = vpow.pop %v2459
  %v2461 = vmul.f32 %v2370, 1.442695
  %v2462 = vpow.pop %v2461
  %v2463 = vmul.f32 %v2371, 1.442695
  %v2464 = vpow.pop %v2463
  %v2465 = vmul.f32 %v2372, 1.442695
  %v2466 = vpow.pop %v2465
  %v2467 = vmul.f32 %v2373, 1.442695
  %v2468 = vpow.pop %v2467
  %v2469 = vmul.f32 %v2374, 1.442695
  %v2470 = vpow.pop %v2469
  %v2471 = vmul.f32 %v2375, 1.442695
  %v2472 = vpow.pop %v2471
  %v2473 = vmul.f32 %v2376, 1.442695
  %v2474 = vpow.pop %v2473
  %v2475 = vmul.f32 %v2377, 1.442695
  %v2476 = vpow.pop %v2475
  %v2477 = vmul.f32 %v2378, 1.442695
  %v2478 = vpow.pop %v2477
  %v2479 = vmul.f32 %v2379, 1.442695
  %v2480 = vpow.pop %v2479
  %v2481 = vmul.f32 %v2380, 1.442695
  %v2482 = vpow.pop %v2481
  %v2483 = vmul.f32 %v2381, 1.442695
  %v2484 = vpow.pop %v2483
  %v2485 = vmul.f32 %v2382, 1.442695
  %v2486 = vpow.pop %v2485
  %v2487 = vmul.f32 %v2383, 1.442695
  %v2488 = vpow.pop %v2487
  %v2489 = vmul.f32 %v2384, 1.442695
  %v2490 = vpow.pop %v2489
  %v2491 = vmul.f32 %v2385, 1.442695
  %v2492 = vpow.pop %v2491
  %v2493 = vmul.f32 %v2386, 1.442695
  %v2494 = vpow.pop %v2493
  %v2495 = vmul.f32 %v2387, 1.442695
  %v2496 = vpow.pop %v2495
  %v2497 = vmul.f32 %v2388, 1.442695
  %v2498 = vpow.pop %v2497
  %v2499 = vmul.f32 %v2389, 1.442695
  %v2500 = vpow.pop %v2499
  %v2501 = vmul.f32 %v2390, 1.442695
  %v2502 = vpow.pop %v2501
  %v2503 = vmul.f32 %v2391, 1.442695
  %v2504 = vpow.pop %v2503
  %v2505 = vmul.f32 %v2392, 1.442695
  %v2506 = vpow.pop %v2505
  %v2507 = vmul.f32 %v2393, 1.442695
  %v2508 = vpow.pop %v2507
  %v2509 = vmul.f32 %v2394, 1.442695
  %v2510 = vpow.pop %v2509
  %v2511 = vmul.f32 %v2395, 1.442695
  %v2512 = vpow.pop %v2511
  %v2513 = vmul.f32 %v2396, 1.442695
  %v2514 = vpow.pop %v2513
  %v2515 = vmul.f32 %v2397, 1.442695
  %v2516 = vpow.pop %v2515
  %v2517 = vmul.f32 %v2398, 1.442695
  %v2518 = vpow.pop %v2517
  %v2519 = vmul.f32 %v2399, 1.442695
  %v2520 = vpow.pop %v2519
  %v2521 = vmul.f32 %v2400, 1.442695
  %v2522 = vpow.pop %v2521
  %v2523 = vmul.f32 %v2401, 1.442695
  %v2524 = vpow.pop %v2523
  %v2525 = vmul.f32 %v2402, 1.442695
  %v2526 = vpow.pop %v2525
  %v2527 = vmul.f32 %v2403, 1.442695
  %v2528 = vpow.pop %v2527
  %v2529 = vmul.f32 %v2404, 1.442695
  %v2530 = vpow.pop %v2529
  %v2531 = vmul.f32 %v2405, 1.442695
  %v2532 = vpow.pop %v2531
  %v2533 = vmul.f32 %v2406, 1.442695
  %v2534 = vpow.pop %v2533
  %v2535 = vadd.f32 %v2408, 1.0
  %v2536 = vadd.f32 %v2410, 1.0
  %v2537 = vadd.f32 %v2412, 1.0
  %v2538 = vadd.f32 %v2414, 1.0
  %v2539 = vadd.f32 %v2416, 1.0
  %v2540 = vadd.f32 %v2418, 1.0
  %v2541 = vadd.f32 %v2420, 1.0
  %v2542 = vadd.f32 %v2422, 1.0
  %v2543 = vadd.f32 %v2424, 1.0
  %v2544 = vadd.f32 %v2426, 1.0
  %v2545 = vadd.f32 %v2428, 1.0
  %v2546 = vadd.f32 %v2430, 1.0
  %v2547 = vadd.f32 %v2432, 1.0
  %v2548 = vadd.f32 %v2434, 1.0
  %v2549 = vadd.f32 %v2436, 1.0
  %v2550 = vadd.f32 %v2438, 1.0
  %v2551 = vadd.f32 %v2440, 1.0
  %v2552 = vadd.f32 %v2442, 1.0
  %v2553 = vadd.f32 %v2444, 1.0
  %v2554 = vadd.f32 %v2446, 1.0
  %v2555 = vadd.f32 %v2448, 1.0
  %v2556 = vadd.f32 %v2450, 1.0
  %v2557 = vadd.f32 %v2452, 1.0
  %v2558 = vadd.f32 %v2454, 1.0
  %v2559 = vadd.f32 %v2456, 1.0
  %v2560 = vadd.f32 %v2458, 1.0
  %v2561 = vadd.f32 %v2460, 1.0
  %v2562 = vadd.f32 %v2462, 1.0
  %v2563 = vadd.f32 %v2464, 1.0
  %v2564 = vadd.f32 %v2466, 1.0
  %v2565 = vadd.f32 %v2468, 1.0
  %v2566 = vadd.f32 %v2470, 1.0
  %v2567 = vadd.f32 %v2472, 1.0
  %v2568 = vadd.f32 %v2474, 1.0
  %v2569 = vadd.f32 %v2476, 1.0
  %v2570 = vadd.f32 %v2478, 1.0
  %v2571 = vadd.f32 %v2480, 1.0
  %v2572 = vadd.f32 %v2482, 1.0
  %v2573 = vadd.f32 %v2484, 1.0
  %v2574 = vadd.f32 %v2486, 1.0
  %v2575 = vadd.f32 %v2488, 1.0
  %v2576 = vadd.f32 %v2490, 1.0
  %v2577 = vadd.f32 %v2492, 1.0
  %v2578 = vadd.f32 %v2494, 1.0
  %v2579 = vadd.f32 %v2496, 1.0
  %v2580 = vadd.f32 %v2498, 1.0
  %v2581 = vadd.f32 %v2500, 1.0
  %v2582 = vadd.f32 %v2502, 1.0
  %v2583 = vadd.f32 %v2504, 1.0
  %v2584 = vadd.f32 %v2506, 1.0
  %v2585 = vadd.f32 %v2508, 1.0
  %v2586 = vadd.f32 %v2510, 1.0
  %v2587 = vadd.f32 %v2512, 1.0
  %v2588 = vadd.f32 %v2514, 1.0
  %v2589 = vadd.f32 %v2516, 1.0
  %v2590 = vadd.f32 %v2518, 1.0
  %v2591 = vadd.f32 %v2520, 1.0
  %v2592 = vadd.f32 %v2522, 1.0
  %v2593 = vadd.f32 %v2524, 1.0
  %v2594 = vadd.f32 %v2526, 1.0
  %v2595 = vadd.f32 %v2528, 1.0
  %v2596 = vadd.f32 %v2530, 1.0
  %v2597 = vadd.f32 %v2532, 1.0
  %v2598 = vadd.f32 %v2534, 1.0
  %v2599 = vrcp.pop %v2535
  %v2600 = vrcp.pop %v2536
  %v2601 = vrcp.pop %v2537
  %v2602 = vrcp.pop %v2538
  %v2603 = vrcp.pop %v2539
  %v2604 = vrcp.pop %v2540
  %v2605 = vrcp.pop %v2541
  %v2606 = vrcp.pop %v2542
  %v2607 = vrcp.pop %v2543
  %v2608 = vrcp.pop %v2544
  %v2609 = vrcp.pop %v2545
  %v2610 = vrcp.pop %v2546
  %v2611 = vrcp.pop %v2547
  %v2612 = vrcp.pop %v2548
  %v2613 = vrcp.pop %v2549
  %v2614 = vrcp.pop %v2550
  %v2615 = vrcp.pop %v2551
  %v2616 = vrcp.pop %v2552
  %v2617 = vrcp.pop %v2553
  %v2618 = vrcp.pop %v2554
  %v2619 = vrcp.pop %v2555
  %v2620 = vrcp.pop %v2556
  %v2621 = vrcp.pop %v2557
  %v2622 = vrcp.pop %v2558
  %v2623 = vrcp.pop %v2559
  %v2624 = vrcp.pop %v2560
  %v2625 = vrcp.pop %v2561
  %v2626 = vrcp.pop %v2562
  %v2627 = vrcp.pop %v2563
  %v2628 = vrcp.pop %v2564
  %v2629 = vrcp.pop %v2565
  %v2630 = vrcp.pop %v2566
  %v2631 = vrcp.pop %v2567
  %v2632 = vrcp.pop %v2568
  %v2633 = vrcp.pop %v2569
  %v2634 = vrcp.pop %v2570
  %v2635 = vrcp.pop %v2571
  %v2636 = vrcp.pop %v2572
  %v2637 = vrcp.pop %v2573
  %v2638 = vrcp.pop %v2574
  %v2639 = vrcp.pop %v2575
  %v2640 = vrcp.pop %v2576
  %v2641 = vrcp.pop %v2577
  %v2642 = vrcp.pop %v2578
  %v2643 = vrcp.pop %v2579
  %v2644 = vrcp.pop %v2580
  %v2645 = vrcp.pop %v2581
  %v2646 = vrcp.pop %v2582
  %v2647 = vrcp.pop %v2583
  %v2648 = vrcp.pop %v2584
  %v2649 = vrcp.pop %v2585
  %v2650 = vrcp.pop %v2586
  %v2651 = vrcp.pop %v2587
  %v2652 = vrcp.pop %v2588
  %v2653 = vrcp.pop %v2589
  %v2654 = vrcp.pop %v2590
  %v2655 = vrcp.pop %v2591
  %v2656 = vrcp.pop %v2592
  %v2657 = vrcp.pop %v2593
  %v2658 = vrcp.pop %v2594
  %v2659 = vrcp.pop %v2595
  %v2660 = vrcp.pop %v2596
  %v2661 = vrcp.pop %v2597
  %v2662 = vrcp.pop %v2598
  %v2663 = vmax.f32 %v2279, 0.0
  %v2664 = vmax.f32 %v2280, 0.0
  %v2665 = vmax.f32 %v2281, 0.0
  %v2666 = vmax.f32 %v2282, 0.0
  %v2667 = vmax.f32 %v2283, 0.0
  %v2668 = vmax.f32 %v2284, 0.0
  %v2669 = vmax.f32 %v2285, 0.0
  %v2670 = vmax.f32 %v2286, 0.0
  %v2671 = vmax.f32 %v2287, 0.0
  %v2672 = vmax.f32 %v2288, 0.0
  %v2673 = vmax.f32 %v2289, 0.0
  %v2674 = vmax.f32 %v2290, 0.0
  %v2675 = vmax.f32 %v2291, 0.0
  %v2676 = vmax.f32 %v2292, 0.0
  %v2677 = vmax.f32 %v2293, 0.0
  %v2678 = vmax.f32 %v2294, 0.0
  %v2679 = vmax.f32 %v2295, 0.0
  %v2680 = vmax.f32 %v2296, 0.0
  %v2681 = vmax.f32 %v2297, 0.0
  %v2682 = vmax.f32 %v2298, 0.0
  %v2683 = vmax.f32 %v2299, 0.0
  %v2684 = vmax.f32 %v2300, 0.0
  %v2685 = vmax.f32 %v2301, 0.0
  %v2686 = vmax.f32 %v2302, 0.0
  %v2687 = vmax.f32 %v2303, 0.0
  %v2688 = vmax.f32 %v2304, 0.0
  %v2689 = vmax.f32 %v2305, 0.0
  %v2690 = vmax.f32 %v2306, 0.0
  %v2691 = vmax.f32 %v2307, 0.0
  %v2692 = vmax.f32 %v2308, 0.0
  %v2693 = vmax.f32 %v2309, 0.0
  %v2694 = vmax.f32 %v2310, 0.0
  %v2695 = vmax.f32 %v2311, 0.0
  %v2696 = vmax.f32 %v2312, 0.0
  %v2697 = vmax.f32 %v2313, 0.0
  %v2698 = vmax.f32 %v2314, 0.0
  %v2699 = vmax.f32 %v2315, 0.0
  %v2700 = vmax.f32 %v2316, 0.0
  %v2701 = vmax.f32 %v2317, 0.0
  %v2702 = vmax.f32 %v2318, 0.0
  %v2703 = vmax.f32 %v2319, 0.0
  %v2704 = vmax.f32 %v2320, 0.0
  %v2705 = vmax.f32 %v2321, 0.0
  %v2706 = vmax.f32 %v2322, 0.0
  %v2707 = vmax.f32 %v2323, 0.0
  %v2708 = vmax.f32 %v2324, 0.0
  %v2709 = vmax.f32 %v2325, 0.0
  %v2710 = vmax.f32 %v2326, 0.0
  %v2711 = vmax.f32 %v2327, 0.0
  %v2712 = vmax.f32 %v2328, 0.0
  %v2713 = vmax.f32 %v2329, 0.0
  %v2714 = vmax.f32 %v2330, 0.0
  %v2715 = vmax.f32 %v2331, 0.0
  %v2716 = vmax.f32 %v2332, 0.0
  %v2717 = vmax.f32 %v2333, 0.0
  %v2718 = vmax.f32 %v2334, 0.0
  %v2719 = vmax.f32 %v2335, 0.0
  %v2720 = vmax.f32 %v2336, 0.0
  %v2721 = vmax.f32 %v2337, 0.0
  %v2722 = vmax.f32 %v2338, 0.0
  %v2723 = vmax.f32 %v2339, 0.0
  %v2724 = vmax.f32 %v2340, 0.0
  %v2725 = vmax.f32 %v2341, 0.0
  %v2726 = vmax.f32 %v2342, 0.0
  %2791 = vrot.lane.b32.xlu0 %v2599, 96
  %v2792 = vpop.permute.xlu0 %2791
  %2793 = vrot.lane.b32.xlu0 %v2600, 96
  %v2794 = vpop.permute.xlu0 %2793
  %2795 = vrot.lane.b32.xlu0 %v2601, 96
  %v2796 = vpop.permute.xlu0 %2795
  %2797 = vrot.lane.b32.xlu0 %v2602, 96
  %v2798 = vpop.permute.xlu0 %2797
  %2799 = vrot.lane.b32.xlu0 %v2603, 96
  %v2800 = vpop.permute.xlu0 %2799
  %2801 = vrot.lane.b32.xlu0 %v2604, 96
  %v2802 = vpop.permute.xlu0 %2801
  %2803 = vrot.lane.b32.xlu0 %v2605, 96
  %v2804 = vpop.permute.xlu0 %2803
  %2805 = vrot.lane.b32.xlu0 %v2606, 96
  %v2806 = vpop.permute.xlu0 %2805
  %2807 = vrot.lane.b32.xlu0 %v2607, 96
  %v2808 = vpop.permute.xlu0 %2807
  %2809 = vrot.lane.b32.xlu0 %v2608, 96
  %v2810 = vpop.permute.xlu0 %2809
  %2811 = vrot.lane.b32.xlu0 %v2609, 96
  %v2812 = vpop.permute.xlu0 %2811
  %2813 = vrot.lane.b32.xlu0 %v2610, 96
  %v2814 = vpop.permute.xlu0 %2813
  %2815 = vrot.lane.b32.xlu0 %v2611, 96
  %v2816 = vpop.permute.xlu0 %2815
  %2817 = vrot.lane.b32.xlu0 %v2612, 96
  %v2818 = vpop.permute.xlu0 %2817
  %2819 = vrot.lane.b32.xlu0 %v2613, 96
  %v2820 = vpop.permute.xlu0 %2819
  %2821 = vrot.lane.b32.xlu0 %v2614, 96
  %v2822 = vpop.permute.xlu0 %2821
  %2823 = vrot.lane.b32.xlu0 %v2615, 96
  %v2824 = vpop.permute.xlu0 %2823
  %2825 = vrot.lane.b32.xlu0 %v2616, 96
  %v2826 = vpop.permute.xlu0 %2825
  %2827 = vrot.lane.b32.xlu0 %v2617, 96
  %v2828 = vpop.permute.xlu0 %2827
  %2829 = vrot.lane.b32.xlu0 %v2618, 96
  %v2830 = vpop.permute.xlu0 %2829
  %2831 = vrot.lane.b32.xlu0 %v2619, 96
  %v2832 = vpop.permute.xlu0 %2831
  %2833 = vrot.lane.b32.xlu0 %v2620, 96
  %v2834 = vpop.permute.xlu0 %2833
  %2835 = vrot.lane.b32.xlu0 %v2621, 96
  %v2836 = vpop.permute.xlu0 %2835
  %2837 = vrot.lane.b32.xlu0 %v2622, 96
  %v2838 = vpop.permute.xlu0 %2837
  %2839 = vrot.lane.b32.xlu0 %v2623, 96
  %v2840 = vpop.permute.xlu0 %2839
  %2841 = vrot.lane.b32.xlu0 %v2624, 96
  %v2842 = vpop.permute.xlu0 %2841
  %2843 = vrot.lane.b32.xlu0 %v2625, 96
  %v2844 = vpop.permute.xlu0 %2843
  %2845 = vrot.lane.b32.xlu0 %v2626, 96
  %v2846 = vpop.permute.xlu0 %2845
  %2847 = vrot.lane.b32.xlu0 %v2627, 96
  %v2848 = vpop.permute.xlu0 %2847
  %2849 = vrot.lane.b32.xlu0 %v2628, 96
  %v2850 = vpop.permute.xlu0 %2849
  %2851 = vrot.lane.b32.xlu0 %v2629, 96
  %v2852 = vpop.permute.xlu0 %2851
  %2853 = vrot.lane.b32.xlu0 %v2630, 96
  %v2854 = vpop.permute.xlu0 %2853
  %2855 = vrot.lane.b32.xlu0 %v2631, 96
  %v2856 = vpop.permute.xlu0 %2855
  %2857 = vrot.lane.b32.xlu0 %v2632, 96
  %v2858 = vpop.permute.xlu0 %2857
  %2859 = vrot.lane.b32.xlu0 %v2633, 96
  %v2860 = vpop.permute.xlu0 %2859
  %2861 = vrot.lane.b32.xlu0 %v2634, 96
  %v2862 = vpop.permute.xlu0 %2861
  %2863 = vrot.lane.b32.xlu0 %v2635, 96
  %v2864 = vpop.permute.xlu0 %2863
  %2865 = vrot.lane.b32.xlu0 %v2636, 96
  %v2866 = vpop.permute.xlu0 %2865
  %2867 = vrot.lane.b32.xlu0 %v2637, 96
  %v2868 = vpop.permute.xlu0 %2867
  %2869 = vrot.lane.b32.xlu0 %v2638, 96
  %v2870 = vpop.permute.xlu0 %2869
  %2871 = vrot.lane.b32.xlu0 %v2639, 96
  %v2872 = vpop.permute.xlu0 %2871
  %2873 = vrot.lane.b32.xlu0 %v2640, 96
  %v2874 = vpop.permute.xlu0 %2873
  %2875 = vrot.lane.b32.xlu0 %v2641, 96
  %v2876 = vpop.permute.xlu0 %2875
  %2877 = vrot.lane.b32.xlu0 %v2642, 96
  %v2878 = vpop.permute.xlu0 %2877
  %2879 = vrot.lane.b32.xlu0 %v2643, 96
  %v2880 = vpop.permute.xlu0 %2879
  %2881 = vrot.lane.b32.xlu0 %v2644, 96
  %v2882 = vpop.permute.xlu0 %2881
  %2883 = vrot.lane.b32.xlu0 %v2645, 96
  %v2884 = vpop.permute.xlu0 %2883
  %2885 = vrot.lane.b32.xlu0 %v2646, 96
  %v2886 = vpop.permute.xlu0 %2885
  %2887 = vrot.lane.b32.xlu0 %v2647, 96
  %v2888 = vpop.permute.xlu0 %2887
  %2889 = vrot.lane.b32.xlu0 %v2648, 96
  %v2890 = vpop.permute.xlu0 %2889
  %2891 = vrot.lane.b32.xlu0 %v2649, 96
  %v2892 = vpop.permute.xlu0 %2891
  %2893 = vrot.lane.b32.xlu0 %v2650, 96
  %v2894 = vpop.permute.xlu0 %2893
  %2895 = vrot.lane.b32.xlu0 %v2651, 96
  %v2896 = vpop.permute.xlu0 %2895
  %2897 = vrot.lane.b32.xlu0 %v2652, 96
  %v2898 = vpop.permute.xlu0 %2897
  %2899 = vrot.lane.b32.xlu0 %v2653, 96
  %v2900 = vpop.permute.xlu0 %2899
  %2901 = vrot.lane.b32.xlu0 %v2654, 96
  %v2902 = vpop.permute.xlu0 %2901
  %2903 = vrot.lane.b32.xlu0 %v2655, 96
  %v2904 = vpop.permute.xlu0 %2903
  %2905 = vrot.lane.b32.xlu0 %v2656, 96
  %v2906 = vpop.permute.xlu0 %2905
  %2907 = vrot.lane.b32.xlu0 %v2657, 96
  %v2908 = vpop.permute.xlu0 %2907
  %2909 = vrot.lane.b32.xlu0 %v2658, 96
  %v2910 = vpop.permute.xlu0 %2909
  %2911 = vrot.lane.b32.xlu0 %v2659, 96
  %v2912 = vpop.permute.xlu0 %2911
  %2913 = vrot.lane.b32.xlu0 %v2660, 96
  %v2914 = vpop.permute.xlu0 %2913
  %2915 = vrot.lane.b32.xlu0 %v2661, 96
  %v2916 = vpop.permute.xlu0 %2915
  %2917 = vrot.lane.b32.xlu0 %v2662, 96
  %v2918 = vpop.permute.xlu0 %2917
  %v2983 = vmul.f32 %v2663, %v2792
  %v2984 = vmul.f32 %v2664, %v2794
  %v2985 = vmul.f32 %v2665, %v2796
  %v2986 = vmul.f32 %v2666, %v2798
  %v2987 = vmul.f32 %v2667, %v2800
  %v2988 = vmul.f32 %v2668, %v2802
  %v2989 = vmul.f32 %v2669, %v2804
  %v2990 = vmul.f32 %v2670, %v2806
  %v2991 = vmul.f32 %v2671, %v2808
  %v2992 = vmul.f32 %v2672, %v2810
  %v2993 = vmul.f32 %v2673, %v2812
  %v2994 = vmul.f32 %v2674, %v2814
  %v2995 = vmul.f32 %v2675, %v2816
  %v2996 = vmul.f32 %v2676, %v2818
  %v2997 = vmul.f32 %v2677, %v2820
  %v2998 = vmul.f32 %v2678, %v2822
  %v2999 = vmul.f32 %v2679, %v2824
  %v3000 = vmul.f32 %v2680, %v2826
  %v3001 = vmul.f32 %v2681, %v2828
  %v3002 = vmul.f32 %v2682, %v2830
  %v3003 = vmul.f32 %v2683, %v2832
  %v3004 = vmul.f32 %v2684, %v2834
  %v3005 = vmul.f32 %v2685, %v2836
  %v3006 = vmul.f32 %v2686, %v2838
  %v3007 = vmul.f32 %v2687, %v2840
  %v3008 = vmul.f32 %v2688, %v2842
  %v3009 = vmul.f32 %v2689, %v2844
  %v3010 = vmul.f32 %v2690, %v2846
  %v3011 = vmul.f32 %v2691, %v2848
  %v3012 = vmul.f32 %v2692, %v2850
  %v3013 = vmul.f32 %v2693, %v2852
  %v3014 = vmul.f32 %v2694, %v2854
  %v3015 = vmul.f32 %v2695, %v2856
  %v3016 = vmul.f32 %v2696, %v2858
  %v3017 = vmul.f32 %v2697, %v2860
  %v3018 = vmul.f32 %v2698, %v2862
  %v3019 = vmul.f32 %v2699, %v2864
  %v3020 = vmul.f32 %v2700, %v2866
  %v3021 = vmul.f32 %v2701, %v2868
  %v3022 = vmul.f32 %v2702, %v2870
  %v3023 = vmul.f32 %v2703, %v2872
  %v3024 = vmul.f32 %v2704, %v2874
  %v3025 = vmul.f32 %v2705, %v2876
  %v3026 = vmul.f32 %v2706, %v2878
  %v3027 = vmul.f32 %v2707, %v2880
  %v3028 = vmul.f32 %v2708, %v2882
  %v3029 = vmul.f32 %v2709, %v2884
  %v3030 = vmul.f32 %v2710, %v2886
  %v3031 = vmul.f32 %v2711, %v2888
  %v3032 = vmul.f32 %v2712, %v2890
  %v3033 = vmul.f32 %v2713, %v2892
  %v3034 = vmul.f32 %v2714, %v2894
  %v3035 = vmul.f32 %v2715, %v2896
  %v3036 = vmul.f32 %v2716, %v2898
  %v3037 = vmul.f32 %v2717, %v2900
  %v3038 = vmul.f32 %v2718, %v2902
  %v3039 = vmul.f32 %v2719, %v2904
  %v3040 = vmul.f32 %v2720, %v2906
  %v3041 = vmul.f32 %v2721, %v2908
  %v3042 = vmul.f32 %v2722, %v2910
  %v3043 = vmul.f32 %v2723, %v2912
  %v3044 = vmul.f32 %v2724, %v2914
  %v3045 = vmul.f32 %v2725, %v2916
  %v3046 = vmul.f32 %v2726, %v2918
  %v3047 = vld [vmem:[%s7 + $0x5] sm:$0x1]
  %v3048 = vld [vmem:[%s7 + $0x6] sm:$0x1]
  %vm3049 = vcmask 785920
  %v3050 = vsel %vm3049, %v1678, 0.0
  %v3051 = vsel %vm3049, %v1679, 0.0
  %v3052 = vadd.f32 %v3050, %v3051
  %v3053 = vsel %vm3049, %v1680, 0.0
  %v3054 = vadd.f32 %v3052, %v3053
  %v3055 = vsel %vm3049, %v1681, 0.0
  %v3056 = vadd.f32 %v3054, %v3055
  %v3057 = vsel %vm3049, %v1682, 0.0
  %v3058 = vadd.f32 %v3056, %v3057
  %v3059 = vsel %vm3049, %v1683, 0.0
  %v3060 = vadd.f32 %v3058, %v3059
  %v3061 = vsel %vm3049, %v1684, 0.0
  %v3062 = vadd.f32 %v3060, %v3061
  %v3063 = vsel %vm3049, %v1685, 0.0
  %v3064 = vadd.f32 %v3062, %v3063
  %v3065 = vsel %vm3049, %v1686, 0.0
  %v3066 = vadd.f32 %v3064, %v3065
  %v3067 = vsel %vm3049, %v1687, 0.0
  %v3068 = vadd.f32 %v3066, %v3067
  %v3069 = vsel %vm3049, %v1688, 0.0
  %v3070 = vadd.f32 %v3068, %v3069
  %v3071 = vsel %vm3049, %v1689, 0.0
  %v3072 = vadd.f32 %v3070, %v3071
  %v3073 = vsel %vm3049, %v1690, 0.0
  %v3074 = vadd.f32 %v3072, %v3073
  %v3075 = vsel %vm3049, %v1691, 0.0
  %v3076 = vadd.f32 %v3074, %v3075
  %v3077 = vsel %vm3049, %v1692, 0.0
  %v3078 = vadd.f32 %v3076, %v3077
  %v3079 = vsel %vm3049, %v1693, 0.0
  %v3080 = vadd.f32 %v3078, %v3079
  %v3081 = vsel %vm3049, %v1694, 0.0
  %v3082 = vadd.f32 %v3080, %v3081
  %v3083 = vsel %vm3049, %v1695, 0.0
  %v3084 = vadd.f32 %v3082, %v3083
  %v3085 = vsel %vm3049, %v1696, 0.0
  %v3086 = vadd.f32 %v3084, %v3085
  %v3087 = vsel %vm3049, %v1697, 0.0
  %v3088 = vadd.f32 %v3086, %v3087
  %v3089 = vsel %vm3049, %v1698, 0.0
  %v3090 = vadd.f32 %v3088, %v3089
  %v3091 = vsel %vm3049, %v1699, 0.0
  %v3092 = vadd.f32 %v3090, %v3091
  %v3093 = vsel %vm3049, %v1700, 0.0
  %v3094 = vadd.f32 %v3092, %v3093
  %v3095 = vsel %vm3049, %v1701, 0.0
  %v3096 = vadd.f32 %v3094, %v3095
  %v3097 = vsel %vm3049, %v1702, 0.0
  %v3098 = vadd.f32 %v3096, %v3097
  %v3099 = vsel %vm3049, %v1703, 0.0
  %v3100 = vadd.f32 %v3098, %v3099
  %v3101 = vsel %vm3049, %v1704, 0.0
  %v3102 = vadd.f32 %v3100, %v3101
  %v3103 = vsel %vm3049, %v1705, 0.0
  %v3104 = vadd.f32 %v3102, %v3103
  %v3105 = vsel %vm3049, %v1706, 0.0
  %v3106 = vadd.f32 %v3104, %v3105
  %v3107 = vsel %vm3049, %v1707, 0.0
  %v3108 = vadd.f32 %v3106, %v3107
  %v3109 = vsel %vm3049, %v1708, 0.0
  %v3110 = vadd.f32 %v3108, %v3109
  %v3111 = vsel %vm3049, %v1709, 0.0
  %v3112 = vadd.f32 %v3110, %v3111
  %v3113 = vsel %vm3049, %v1710, 0.0
  %v3114 = vadd.f32 %v3112, %v3113
  %v3115 = vsel %vm3049, %v1711, 0.0
  %v3116 = vadd.f32 %v3114, %v3115
  %v3117 = vsel %vm3049, %v1712, 0.0
  %v3118 = vadd.f32 %v3116, %v3117
  %v3119 = vsel %vm3049, %v1713, 0.0
  %v3120 = vadd.f32 %v3118, %v3119
  %v3121 = vsel %vm3049, %v1714, 0.0
  %v3122 = vadd.f32 %v3120, %v3121
  %v3123 = vsel %vm3049, %v1715, 0.0
  %v3124 = vadd.f32 %v3122, %v3123
  %v3125 = vsel %vm3049, %v1716, 0.0
  %v3126 = vadd.f32 %v3124, %v3125
  %v3127 = vsel %vm3049, %v1717, 0.0
  %v3128 = vadd.f32 %v3126, %v3127
  %v3129 = vsel %vm3049, %v1718, 0.0
  %v3130 = vadd.f32 %v3128, %v3129
  %v3131 = vsel %vm3049, %v1719, 0.0
  %v3132 = vadd.f32 %v3130, %v3131
  %v3133 = vsel %vm3049, %v1720, 0.0
  %v3134 = vadd.f32 %v3132, %v3133
  %v3135 = vsel %vm3049, %v1721, 0.0
  %v3136 = vadd.f32 %v3134, %v3135
  %v3137 = vsel %vm3049, %v1722, 0.0
  %v3138 = vadd.f32 %v3136, %v3137
  %v3139 = vsel %vm3049, %v1723, 0.0
  %v3140 = vadd.f32 %v3138, %v3139
  %v3141 = vsel %vm3049, %v1724, 0.0
  %v3142 = vadd.f32 %v3140, %v3141
  %v3143 = vsel %vm3049, %v1725, 0.0
  %v3144 = vadd.f32 %v3142, %v3143
  %v3145 = vsel %vm3049, %v1726, 0.0
  %v3146 = vadd.f32 %v3144, %v3145
  %v3147 = vsel %vm3049, %v1727, 0.0
  %v3148 = vadd.f32 %v3146, %v3147
  %v3149 = vsel %vm3049, %v1728, 0.0
  %v3150 = vadd.f32 %v3148, %v3149
  %v3151 = vsel %vm3049, %v1729, 0.0
  %v3152 = vadd.f32 %v3150, %v3151
  %v3153 = vsel %vm3049, %v1730, 0.0
  %v3154 = vadd.f32 %v3152, %v3153
  %v3155 = vsel %vm3049, %v1731, 0.0
  %v3156 = vadd.f32 %v3154, %v3155
  %v3157 = vsel %vm3049, %v1732, 0.0
  %v3158 = vadd.f32 %v3156, %v3157
  %v3159 = vsel %vm3049, %v1733, 0.0
  %v3160 = vadd.f32 %v3158, %v3159
  %v3161 = vsel %vm3049, %v1734, 0.0
  %v3162 = vadd.f32 %v3160, %v3161
  %v3163 = vsel %vm3049, %v1735, 0.0
  %v3164 = vadd.f32 %v3162, %v3163
  %v3165 = vsel %vm3049, %v1736, 0.0
  %v3166 = vadd.f32 %v3164, %v3165
  %v3167 = vsel %vm3049, %v1737, 0.0
  %v3168 = vadd.f32 %v3166, %v3167
  %v3169 = vsel %vm3049, %v1738, 0.0
  %v3170 = vadd.f32 %v3168, %v3169
  %v3171 = vsel %vm3049, %v1739, 0.0
  %v3172 = vadd.f32 %v3170, %v3171
  %v3173 = vsel %vm3049, %v1740, 0.0
  %v3174 = vadd.f32 %v3172, %v3173
  %v3175 = vsel %vm3049, %v1741, 0.0
  %v3176 = vadd.f32 %v3174, %v3175
  %v3177 = vrot.slane %v3176, 4
  %v3178 = vadd.f32 %v3176, %v3177
  %v3179 = vrot.slane %v3178, 2
  %v3180 = vadd.f32 %v3178, %v3179
  %v3181 = vrot.slane %v3180, 1
  %v3182 = vadd.f32 %v3180, %v3181
  %v3183 = vmul.f32 %v3182, %v1877
  %v3184 = vsub.f32 %v1678, %v3183
  %v3185 = vsub.f32 %v1679, %v3183
  %v3186 = vsub.f32 %v1680, %v3183
  %v3187 = vsub.f32 %v1681, %v3183
  %v3188 = vsub.f32 %v1682, %v3183
  %v3189 = vsub.f32 %v1683, %v3183
  %v3190 = vsub.f32 %v1684, %v3183
  %v3191 = vsub.f32 %v1685, %v3183
  %v3192 = vsub.f32 %v1686, %v3183
  %v3193 = vsub.f32 %v1687, %v3183
  %v3194 = vsub.f32 %v1688, %v3183
  %v3195 = vsub.f32 %v1689, %v3183
  %v3196 = vsub.f32 %v1690, %v3183
  %v3197 = vsub.f32 %v1691, %v3183
  %v3198 = vsub.f32 %v1692, %v3183
  %v3199 = vsub.f32 %v1693, %v3183
  %v3200 = vsub.f32 %v1694, %v3183
  %v3201 = vsub.f32 %v1695, %v3183
  %v3202 = vsub.f32 %v1696, %v3183
  %v3203 = vsub.f32 %v1697, %v3183
  %v3204 = vsub.f32 %v1698, %v3183
  %v3205 = vsub.f32 %v1699, %v3183
  %v3206 = vsub.f32 %v1700, %v3183
  %v3207 = vsub.f32 %v1701, %v3183
  %v3208 = vsub.f32 %v1702, %v3183
  %v3209 = vsub.f32 %v1703, %v3183
  %v3210 = vsub.f32 %v1704, %v3183
  %v3211 = vsub.f32 %v1705, %v3183
  %v3212 = vsub.f32 %v1706, %v3183
  %v3213 = vsub.f32 %v1707, %v3183
  %v3214 = vsub.f32 %v1708, %v3183
  %v3215 = vsub.f32 %v1709, %v3183
  %v3216 = vsub.f32 %v1710, %v3183
  %v3217 = vsub.f32 %v1711, %v3183
  %v3218 = vsub.f32 %v1712, %v3183
  %v3219 = vsub.f32 %v1713, %v3183
  %v3220 = vsub.f32 %v1714, %v3183
  %v3221 = vsub.f32 %v1715, %v3183
  %v3222 = vsub.f32 %v1716, %v3183
  %v3223 = vsub.f32 %v1717, %v3183
  %v3224 = vsub.f32 %v1718, %v3183
  %v3225 = vsub.f32 %v1719, %v3183
  %v3226 = vsub.f32 %v1720, %v3183
  %v3227 = vsub.f32 %v1721, %v3183
  %v3228 = vsub.f32 %v1722, %v3183
  %v3229 = vsub.f32 %v1723, %v3183
  %v3230 = vsub.f32 %v1724, %v3183
  %v3231 = vsub.f32 %v1725, %v3183
  %v3232 = vsub.f32 %v1726, %v3183
  %v3233 = vsub.f32 %v1727, %v3183
  %v3234 = vsub.f32 %v1728, %v3183
  %v3235 = vsub.f32 %v1729, %v3183
  %v3236 = vsub.f32 %v1730, %v3183
  %v3237 = vsub.f32 %v1731, %v3183
  %v3238 = vsub.f32 %v1732, %v3183
  %v3239 = vsub.f32 %v1733, %v3183
  %v3240 = vsub.f32 %v1734, %v3183
  %v3241 = vsub.f32 %v1735, %v3183
  %v3242 = vsub.f32 %v1736, %v3183
  %v3243 = vsub.f32 %v1737, %v3183
  %v3244 = vsub.f32 %v1738, %v3183
  %v3245 = vsub.f32 %v1739, %v3183
  %v3246 = vsub.f32 %v1740, %v3183
  %v3247 = vsub.f32 %v1741, %v3183
  %v3248 = vmul.f32 %v3184, %v3184
  %v3249 = vmul.f32 %v3185, %v3185
  %v3250 = vmul.f32 %v3186, %v3186
  %v3251 = vmul.f32 %v3187, %v3187
  %v3252 = vmul.f32 %v3188, %v3188
  %v3253 = vmul.f32 %v3189, %v3189
  %v3254 = vmul.f32 %v3190, %v3190
  %v3255 = vmul.f32 %v3191, %v3191
  %v3256 = vmul.f32 %v3192, %v3192
  %v3257 = vmul.f32 %v3193, %v3193
  %v3258 = vmul.f32 %v3194, %v3194
  %v3259 = vmul.f32 %v3195, %v3195
  %v3260 = vmul.f32 %v3196, %v3196
  %v3261 = vmul.f32 %v3197, %v3197
  %v3262 = vmul.f32 %v3198, %v3198
  %v3263 = vmul.f32 %v3199, %v3199
  %v3264 = vmul.f32 %v3200, %v3200
  %v3265 = vmul.f32 %v3201, %v3201
  %v3266 = vmul.f32 %v3202, %v3202
  %v3267 = vmul.f32 %v3203, %v3203
  %v3268 = vmul.f32 %v3204, %v3204
  %v3269 = vmul.f32 %v3205, %v3205
  %v3270 = vmul.f32 %v3206, %v3206
  %v3271 = vmul.f32 %v3207, %v3207
  %v3272 = vmul.f32 %v3208, %v3208
  %v3273 = vmul.f32 %v3209, %v3209
  %v3274 = vmul.f32 %v3210, %v3210
  %v3275 = vmul.f32 %v3211, %v3211
  %v3276 = vmul.f32 %v3212, %v3212
  %v3277 = vmul.f32 %v3213, %v3213
  %v3278 = vmul.f32 %v3214, %v3214
  %v3279 = vmul.f32 %v3215, %v3215
  %v3280 = vmul.f32 %v3216, %v3216
  %v3281 = vmul.f32 %v3217, %v3217
  %v3282 = vmul.f32 %v3218, %v3218
  %v3283 = vmul.f32 %v3219, %v3219
  %v3284 = vmul.f32 %v3220, %v3220
  %v3285 = vmul.f32 %v3221, %v3221
  %v3286 = vmul.f32 %v3222, %v3222
  %v3287 = vmul.f32 %v3223, %v3223
  %v3288 = vmul.f32 %v3224, %v3224
  %v3289 = vmul.f32 %v3225, %v3225
  %v3290 = vmul.f32 %v3226, %v3226
  %v3291 = vmul.f32 %v3227, %v3227
  %v3292 = vmul.f32 %v3228, %v3228
  %v3293 = vmul.f32 %v3229, %v3229
  %v3294 = vmul.f32 %v3230, %v3230
  %v3295 = vmul.f32 %v3231, %v3231
  %v3296 = vmul.f32 %v3232, %v3232
  %v3297 = vmul.f32 %v3233, %v3233
  %v3298 = vmul.f32 %v3234, %v3234
  %v3299 = vmul.f32 %v3235, %v3235
  %v3300 = vmul.f32 %v3236, %v3236
  %v3301 = vmul.f32 %v3237, %v3237
  %v3302 = vmul.f32 %v3238, %v3238
  %v3303 = vmul.f32 %v3239, %v3239
  %v3304 = vmul.f32 %v3240, %v3240
  %v3305 = vmul.f32 %v3241, %v3241
  %v3306 = vmul.f32 %v3242, %v3242
  %v3307 = vmul.f32 %v3243, %v3243
  %v3308 = vmul.f32 %v3244, %v3244
  %v3309 = vmul.f32 %v3245, %v3245
  %v3310 = vmul.f32 %v3246, %v3246
  %v3311 = vmul.f32 %v3247, %v3247
  %v3312 = vsel %vm3049, %v3248, 0.0
  %v3313 = vsel %vm3049, %v3249, 0.0
  %v3314 = vadd.f32 %v3312, %v3313
  %v3315 = vsel %vm3049, %v3250, 0.0
  %v3316 = vadd.f32 %v3314, %v3315
  %v3317 = vsel %vm3049, %v3251, 0.0
  %v3318 = vadd.f32 %v3316, %v3317
  %v3319 = vsel %vm3049, %v3252, 0.0
  %v3320 = vadd.f32 %v3318, %v3319
  %v3321 = vsel %vm3049, %v3253, 0.0
  %v3322 = vadd.f32 %v3320, %v3321
  %v3323 = vsel %vm3049, %v3254, 0.0
  %v3324 = vadd.f32 %v3322, %v3323
  %v3325 = vsel %vm3049, %v3255, 0.0
  %v3326 = vadd.f32 %v3324, %v3325
  %v3327 = vsel %vm3049, %v3256, 0.0
  %v3328 = vadd.f32 %v3326, %v3327
  %v3329 = vsel %vm3049, %v3257, 0.0
  %v3330 = vadd.f32 %v3328, %v3329
  %v3331 = vsel %vm3049, %v3258, 0.0
  %v3332 = vadd.f32 %v3330, %v3331
  %v3333 = vsel %vm3049, %v3259, 0.0
  %v3334 = vadd.f32 %v3332, %v3333
  %v3335 = vsel %vm3049, %v3260, 0.0
  %v3336 = vadd.f32 %v3334, %v3335
  %v3337 = vsel %vm3049, %v3261, 0.0
  %v3338 = vadd.f32 %v3336, %v3337
  %v3339 = vsel %vm3049, %v3262, 0.0
  %v3340 = vadd.f32 %v3338, %v3339
  %v3341 = vsel %vm3049, %v3263, 0.0
  %v3342 = vadd.f32 %v3340, %v3341
  %v3343 = vsel %vm3049, %v3264, 0.0
  %v3344 = vadd.f32 %v3342, %v3343
  %v3345 = vsel %vm3049, %v3265, 0.0
  %v3346 = vadd.f32 %v3344, %v3345
  %v3347 = vsel %vm3049, %v3266, 0.0
  %v3348 = vadd.f32 %v3346, %v3347
  %v3349 = vsel %vm3049, %v3267, 0.0
  %v3350 = vadd.f32 %v3348, %v3349
  %v3351 = vsel %vm3049, %v3268, 0.0
  %v3352 = vadd.f32 %v3350, %v3351
  %v3353 = vsel %vm3049, %v3269, 0.0
  %v3354 = vadd.f32 %v3352, %v3353
  %v3355 = vsel %vm3049, %v3270, 0.0
  %v3356 = vadd.f32 %v3354, %v3355
  %v3357 = vsel %vm3049, %v3271, 0.0
  %v3358 = vadd.f32 %v3356, %v3357
  %v3359 = vsel %vm3049, %v3272, 0.0
  %v3360 = vadd.f32 %v3358, %v3359
  %v3361 = vsel %vm3049, %v3273, 0.0
  %v3362 = vadd.f32 %v3360, %v3361
  %v3363 = vsel %vm3049, %v3274, 0.0
  %v3364 = vadd.f32 %v3362, %v3363
  %v3365 = vsel %vm3049, %v3275, 0.0
  %v3366 = vadd.f32 %v3364, %v3365
  %v3367 = vsel %vm3049, %v3276, 0.0
  %v3368 = vadd.f32 %v3366, %v3367
  %v3369 = vsel %vm3049, %v3277, 0.0
  %v3370 = vadd.f32 %v3368, %v3369
  %v3371 = vsel %vm3049, %v3278, 0.0
  %v3372 = vadd.f32 %v3370, %v3371
  %v3373 = vsel %vm3049, %v3279, 0.0
  %v3374 = vadd.f32 %v3372, %v3373
  %v3375 = vsel %vm3049, %v3280, 0.0
  %v3376 = vadd.f32 %v3374, %v3375
  %v3377 = vsel %vm3049, %v3281, 0.0
  %v3378 = vadd.f32 %v3376, %v3377
  %v3379 = vsel %vm3049, %v3282, 0.0
  %v3380 = vadd.f32 %v3378, %v3379
  %v3381 = vsel %vm3049, %v3283, 0.0
  %v3382 = vadd.f32 %v3380, %v3381
  %v3383 = vsel %vm3049, %v3284, 0.0
  %v3384 = vadd.f32 %v3382, %v3383
  %v3385 = vsel %vm3049, %v3285, 0.0
  %v3386 = vadd.f32 %v3384, %v3385
  %v3387 = vsel %vm3049, %v3286, 0.0
  %v3388 = vadd.f32 %v3386, %v3387
  %v3389 = vsel %vm3049, %v3287, 0.0
  %v3390 = vadd.f32 %v3388, %v3389
  %v3391 = vsel %vm3049, %v3288, 0.0
  %v3392 = vadd.f32 %v3390, %v3391
  %v3393 = vsel %vm3049, %v3289, 0.0
  %v3394 = vadd.f32 %v3392, %v3393
  %v3395 = vsel %vm3049, %v3290, 0.0
  %v3396 = vadd.f32 %v3394, %v3395
  %v3397 = vsel %vm3049, %v3291, 0.0
  %v3398 = vadd.f32 %v3396, %v3397
  %v3399 = vsel %vm3049, %v3292, 0.0
  %v3400 = vadd.f32 %v3398, %v3399
  %v3401 = vsel %vm3049, %v3293, 0.0
  %v3402 = vadd.f32 %v3400, %v3401
  %v3403 = vsel %vm3049, %v3294, 0.0
  %v3404 = vadd.f32 %v3402, %v3403
  %v3405 = vsel %vm3049, %v3295, 0.0
  %v3406 = vadd.f32 %v3404, %v3405
  %v3407 = vsel %vm3049, %v3296, 0.0
  %v3408 = vadd.f32 %v3406, %v3407
  %v3409 = vsel %vm3049, %v3297, 0.0
  %v3410 = vadd.f32 %v3408, %v3409
  %v3411 = vsel %vm3049, %v3298, 0.0
  %v3412 = vadd.f32 %v3410, %v3411
  %v3413 = vsel %vm3049, %v3299, 0.0
  %v3414 = vadd.f32 %v3412, %v3413
  %v3415 = vsel %vm3049, %v3300, 0.0
  %v3416 = vadd.f32 %v3414, %v3415
  %v3417 = vsel %vm3049, %v3301, 0.0
  %v3418 = vadd.f32 %v3416, %v3417
  %v3419 = vsel %vm3049, %v3302, 0.0
  %v3420 = vadd.f32 %v3418, %v3419
  %v3421 = vsel %vm3049, %v3303, 0.0
  %v3422 = vadd.f32 %v3420, %v3421
  %v3423 = vsel %vm3049, %v3304, 0.0
  %v3424 = vadd.f32 %v3422, %v3423
  %v3425 = vsel %vm3049, %v3305, 0.0
  %v3426 = vadd.f32 %v3424, %v3425
  %v3427 = vsel %vm3049, %v3306, 0.0
  %v3428 = vadd.f32 %v3426, %v3427
  %v3429 = vsel %vm3049, %v3307, 0.0
  %v3430 = vadd.f32 %v3428, %v3429
  %v3431 = vsel %vm3049, %v3308, 0.0
  %v3432 = vadd.f32 %v3430, %v3431
  %v3433 = vsel %vm3049, %v3309, 0.0
  %v3434 = vadd.f32 %v3432, %v3433
  %v3435 = vsel %vm3049, %v3310, 0.0
  %v3436 = vadd.f32 %v3434, %v3435
  %v3437 = vsel %vm3049, %v3311, 0.0
  %v3438 = vadd.f32 %v3436, %v3437
  %v3439 = vrot.slane %v3438, 4
  %v3440 = vadd.f32 %v3438, %v3439
  %v3441 = vrot.slane %v3440, 2
  %v3442 = vadd.f32 %v3440, %v3441
  %v3443 = vrot.slane %v3442, 1
  %v3444 = vadd.f32 %v3442, %v3443
  %v3445 = vmul.f32 %v3444, %v1877
  %v3446 = vadd.f32 %v3445, 1e-05
  %v3447 = vrsqrt.pop %v3446
  %v3448 = vmul.f32 %v3184, %v3447
  %v3449 = vmul.f32 %v3185, %v3447
  %v3450 = vmul.f32 %v3186, %v3447
  %v3451 = vmul.f32 %v3187, %v3447
  %v3452 = vmul.f32 %v3188, %v3447
  %v3453 = vmul.f32 %v3189, %v3447
  %v3454 = vmul.f32 %v3190, %v3447
  %v3455 = vmul.f32 %v3191, %v3447
  %v3456 = vmul.f32 %v3192, %v3447
  %v3457 = vmul.f32 %v3193, %v3447
  %v3458 = vmul.f32 %v3194, %v3447
  %v3459 = vmul.f32 %v3195, %v3447
  %v3460 = vmul.f32 %v3196, %v3447
  %v3461 = vmul.f32 %v3197, %v3447
  %v3462 = vmul.f32 %v3198, %v3447
  %v3463 = vmul.f32 %v3199, %v3447
  %v3464 = vmul.f32 %v3200, %v3447
  %v3465 = vmul.f32 %v3201, %v3447
  %v3466 = vmul.f32 %v3202, %v3447
  %v3467 = vmul.f32 %v3203, %v3447
  %v3468 = vmul.f32 %v3204, %v3447
  %v3469 = vmul.f32 %v3205, %v3447
  %v3470 = vmul.f32 %v3206, %v3447
  %v3471 = vmul.f32 %v3207, %v3447
  %v3472 = vmul.f32 %v3208, %v3447
  %v3473 = vmul.f32 %v3209, %v3447
  %v3474 = vmul.f32 %v3210, %v3447
  %v3475 = vmul.f32 %v3211, %v3447
  %v3476 = vmul.f32 %v3212, %v3447
  %v3477 = vmul.f32 %v3213, %v3447
  %v3478 = vmul.f32 %v3214, %v3447
  %v3479 = vmul.f32 %v3215, %v3447
  %v3480 = vmul.f32 %v3216, %v3447
  %v3481 = vmul.f32 %v3217, %v3447
  %v3482 = vmul.f32 %v3218, %v3447
  %v3483 = vmul.f32 %v3219, %v3447
  %v3484 = vmul.f32 %v3220, %v3447
  %v3485 = vmul.f32 %v3221, %v3447
  %v3486 = vmul.f32 %v3222, %v3447
  %v3487 = vmul.f32 %v3223, %v3447
  %v3488 = vmul.f32 %v3224, %v3447
  %v3489 = vmul.f32 %v3225, %v3447
  %v3490 = vmul.f32 %v3226, %v3447
  %v3491 = vmul.f32 %v3227, %v3447
  %v3492 = vmul.f32 %v3228, %v3447
  %v3493 = vmul.f32 %v3229, %v3447
  %v3494 = vmul.f32 %v3230, %v3447
  %v3495 = vmul.f32 %v3231, %v3447
  %v3496 = vmul.f32 %v3232, %v3447
  %v3497 = vmul.f32 %v3233, %v3447
  %v3498 = vmul.f32 %v3234, %v3447
  %v3499 = vmul.f32 %v3235, %v3447
  %v3500 = vmul.f32 %v3236, %v3447
  %v3501 = vmul.f32 %v3237, %v3447
  %v3502 = vmul.f32 %v3238, %v3447
  %v3503 = vmul.f32 %v3239, %v3447
  %v3504 = vmul.f32 %v3240, %v3447
  %v3505 = vmul.f32 %v3241, %v3447
  %v3506 = vmul.f32 %v3242, %v3447
  %v3507 = vmul.f32 %v3243, %v3447
  %v3508 = vmul.f32 %v3244, %v3447
  %v3509 = vmul.f32 %v3245, %v3447
  %v3510 = vmul.f32 %v3246, %v3447
  %v3511 = vmul.f32 %v3247, %v3447
  %v3512 = vlaneseq
  %v3513 = vshrl.u32 %v3512, 7
  %v3514 = vsub.s32 0, %v3513
  %v3515 = vrot.slane %v3047, %v3514
  %3517 = vrot.lane.b32.xlu0 %v3515, 64
  %v3518 = vpop.permute.xlu0 %3517
  %v3520 = vmul.f32 %v3448, %v3518
  %v3521 = vmul.f32 %v3449, %v3518
  %v3522 = vmul.f32 %v3450, %v3518
  %v3523 = vmul.f32 %v3451, %v3518
  %v3524 = vmul.f32 %v3452, %v3518
  %v3525 = vmul.f32 %v3453, %v3518
  %v3526 = vmul.f32 %v3454, %v3518
  %v3527 = vmul.f32 %v3455, %v3518
  %v3528 = vmul.f32 %v3456, %v3518
  %v3529 = vmul.f32 %v3457, %v3518
  %v3530 = vmul.f32 %v3458, %v3518
  %v3531 = vmul.f32 %v3459, %v3518
  %v3532 = vmul.f32 %v3460, %v3518
  %v3533 = vmul.f32 %v3461, %v3518
  %v3534 = vmul.f32 %v3462, %v3518
  %v3535 = vmul.f32 %v3463, %v3518
  %v3536 = vmul.f32 %v3464, %v3518
  %v3537 = vmul.f32 %v3465, %v3518
  %v3538 = vmul.f32 %v3466, %v3518
  %v3539 = vmul.f32 %v3467, %v3518
  %v3540 = vmul.f32 %v3468, %v3518
  %v3541 = vmul.f32 %v3469, %v3518
  %v3542 = vmul.f32 %v3470, %v3518
  %v3543 = vmul.f32 %v3471, %v3518
  %v3544 = vmul.f32 %v3472, %v3518
  %v3545 = vmul.f32 %v3473, %v3518
  %v3546 = vmul.f32 %v3474, %v3518
  %v3547 = vmul.f32 %v3475, %v3518
  %v3548 = vmul.f32 %v3476, %v3518
  %v3549 = vmul.f32 %v3477, %v3518
  %v3550 = vmul.f32 %v3478, %v3518
  %v3551 = vmul.f32 %v3479, %v3518
  %v3552 = vmul.f32 %v3480, %v3518
  %v3553 = vmul.f32 %v3481, %v3518
  %v3554 = vmul.f32 %v3482, %v3518
  %v3555 = vmul.f32 %v3483, %v3518
  %v3556 = vmul.f32 %v3484, %v3518
  %v3557 = vmul.f32 %v3485, %v3518
  %v3558 = vmul.f32 %v3486, %v3518
  %v3559 = vmul.f32 %v3487, %v3518
  %v3560 = vmul.f32 %v3488, %v3518
  %v3561 = vmul.f32 %v3489, %v3518
  %v3562 = vmul.f32 %v3490, %v3518
  %v3563 = vmul.f32 %v3491, %v3518
  %v3564 = vmul.f32 %v3492, %v3518
  %v3565 = vmul.f32 %v3493, %v3518
  %v3566 = vmul.f32 %v3494, %v3518
  %v3567 = vmul.f32 %v3495, %v3518
  %v3568 = vmul.f32 %v3496, %v3518
  %v3569 = vmul.f32 %v3497, %v3518
  %v3570 = vmul.f32 %v3498, %v3518
  %v3571 = vmul.f32 %v3499, %v3518
  %v3572 = vmul.f32 %v3500, %v3518
  %v3573 = vmul.f32 %v3501, %v3518
  %v3574 = vmul.f32 %v3502, %v3518
  %v3575 = vmul.f32 %v3503, %v3518
  %v3576 = vmul.f32 %v3504, %v3518
  %v3577 = vmul.f32 %v3505, %v3518
  %v3578 = vmul.f32 %v3506, %v3518
  %v3579 = vmul.f32 %v3507, %v3518
  %v3580 = vmul.f32 %v3508, %v3518
  %v3581 = vmul.f32 %v3509, %v3518
  %v3582 = vmul.f32 %v3510, %v3518
  %v3583 = vmul.f32 %v3511, %v3518
  %v3584 = vlaneseq
  %v3585 = vshrl.u32 %v3584, 7
  %v3586 = vsub.s32 0, %v3585
  %v3587 = vrot.slane %v3048, %v3586
  %3589 = vrot.lane.b32.xlu0 %v3587, 64
  %v3590 = vpop.permute.xlu0 %3589
  %v3592 = vadd.f32 %v3520, %v3590
  %v3593 = vadd.f32 %v3521, %v3590
  %v3594 = vadd.f32 %v3522, %v3590
  %v3595 = vadd.f32 %v3523, %v3590
  %v3596 = vadd.f32 %v3524, %v3590
  %v3597 = vadd.f32 %v3525, %v3590
  %v3598 = vadd.f32 %v3526, %v3590
  %v3599 = vadd.f32 %v3527, %v3590
  %v3600 = vadd.f32 %v3528, %v3590
  %v3601 = vadd.f32 %v3529, %v3590
  %v3602 = vadd.f32 %v3530, %v3590
  %v3603 = vadd.f32 %v3531, %v3590
  %v3604 = vadd.f32 %v3532, %v3590
  %v3605 = vadd.f32 %v3533, %v3590
  %v3606 = vadd.f32 %v3534, %v3590
  %v3607 = vadd.f32 %v3535, %v3590
  %v3608 = vadd.f32 %v3536, %v3590
  %v3609 = vadd.f32 %v3537, %v3590
  %v3610 = vadd.f32 %v3538, %v3590
  %v3611 = vadd.f32 %v3539, %v3590
  %v3612 = vadd.f32 %v3540, %v3590
  %v3613 = vadd.f32 %v3541, %v3590
  %v3614 = vadd.f32 %v3542, %v3590
  %v3615 = vadd.f32 %v3543, %v3590
  %v3616 = vadd.f32 %v3544, %v3590
  %v3617 = vadd.f32 %v3545, %v3590
  %v3618 = vadd.f32 %v3546, %v3590
  %v3619 = vadd.f32 %v3547, %v3590
  %v3620 = vadd.f32 %v3548, %v3590
  %v3621 = vadd.f32 %v3549, %v3590
  %v3622 = vadd.f32 %v3550, %v3590
  %v3623 = vadd.f32 %v3551, %v3590
  %v3624 = vadd.f32 %v3552, %v3590
  %v3625 = vadd.f32 %v3553, %v3590
  %v3626 = vadd.f32 %v3554, %v3590
  %v3627 = vadd.f32 %v3555, %v3590
  %v3628 = vadd.f32 %v3556, %v3590
  %v3629 = vadd.f32 %v3557, %v3590
  %v3630 = vadd.f32 %v3558, %v3590
  %v3631 = vadd.f32 %v3559, %v3590
  %v3632 = vadd.f32 %v3560, %v3590
  %v3633 = vadd.f32 %v3561, %v3590
  %v3634 = vadd.f32 %v3562, %v3590
  %v3635 = vadd.f32 %v3563, %v3590
  %v3636 = vadd.f32 %v3564, %v3590
  %v3637 = vadd.f32 %v3565, %v3590
  %v3638 = vadd.f32 %v3566, %v3590
  %v3639 = vadd.f32 %v3567, %v3590
  %v3640 = vadd.f32 %v3568, %v3590
  %v3641 = vadd.f32 %v3569, %v3590
  %v3642 = vadd.f32 %v3570, %v3590
  %v3643 = vadd.f32 %v3571, %v3590
  %v3644 = vadd.f32 %v3572, %v3590
  %v3645 = vadd.f32 %v3573, %v3590
  %v3646 = vadd.f32 %v3574, %v3590
  %v3647 = vadd.f32 %v3575, %v3590
  %v3648 = vadd.f32 %v3576, %v3590
  %v3649 = vadd.f32 %v3577, %v3590
  %v3650 = vadd.f32 %v3578, %v3590
  %v3651 = vadd.f32 %v3579, %v3590
  %v3652 = vadd.f32 %v3580, %v3590
  %v3653 = vadd.f32 %v3581, %v3590
  %v3654 = vadd.f32 %v3582, %v3590
  %v3655 = vadd.f32 %v3583, %v3590
  %v3656 = vsub.f32 0.0, %v1678
  %v3657 = vsub.f32 0.0, %v1679
  %v3658 = vsub.f32 0.0, %v1680
  %v3659 = vsub.f32 0.0, %v1681
  %v3660 = vsub.f32 0.0, %v1682
  %v3661 = vsub.f32 0.0, %v1683
  %v3662 = vsub.f32 0.0, %v1684
  %v3663 = vsub.f32 0.0, %v1685
  %v3664 = vsub.f32 0.0, %v1686
  %v3665 = vsub.f32 0.0, %v1687
  %v3666 = vsub.f32 0.0, %v1688
  %v3667 = vsub.f32 0.0, %v1689
  %v3668 = vsub.f32 0.0, %v1690
  %v3669 = vsub.f32 0.0, %v1691
  %v3670 = vsub.f32 0.0, %v1692
  %v3671 = vsub.f32 0.0, %v1693
  %v3672 = vsub.f32 0.0, %v1694
  %v3673 = vsub.f32 0.0, %v1695
  %v3674 = vsub.f32 0.0, %v1696
  %v3675 = vsub.f32 0.0, %v1697
  %v3676 = vsub.f32 0.0, %v1698
  %v3677 = vsub.f32 0.0, %v1699
  %v3678 = vsub.f32 0.0, %v1700
  %v3679 = vsub.f32 0.0, %v1701
  %v3680 = vsub.f32 0.0, %v1702
  %v3681 = vsub.f32 0.0, %v1703
  %v3682 = vsub.f32 0.0, %v1704
  %v3683 = vsub.f32 0.0, %v1705
  %v3684 = vsub.f32 0.0, %v1706
  %v3685 = vsub.f32 0.0, %v1707
  %v3686 = vsub.f32 0.0, %v1708
  %v3687 = vsub.f32 0.0, %v1709
  %v3688 = vsub.f32 0.0, %v1710
  %v3689 = vsub.f32 0.0, %v1711
  %v3690 = vsub.f32 0.0, %v1712
  %v3691 = vsub.f32 0.0, %v1713
  %v3692 = vsub.f32 0.0, %v1714
  %v3693 = vsub.f32 0.0, %v1715
  %v3694 = vsub.f32 0.0, %v1716
  %v3695 = vsub.f32 0.0, %v1717
  %v3696 = vsub.f32 0.0, %v1718
  %v3697 = vsub.f32 0.0, %v1719
  %v3698 = vsub.f32 0.0, %v1720
  %v3699 = vsub.f32 0.0, %v1721
  %v3700 = vsub.f32 0.0, %v1722
  %v3701 = vsub.f32 0.0, %v1723
  %v3702 = vsub.f32 0.0, %v1724
  %v3703 = vsub.f32 0.0, %v1725
  %v3704 = vsub.f32 0.0, %v1726
  %v3705 = vsub.f32 0.0, %v1727
  %v3706 = vsub.f32 0.0, %v1728
  %v3707 = vsub.f32 0.0, %v1729
  %v3708 = vsub.f32 0.0, %v1730
  %v3709 = vsub.f32 0.0, %v1731
  %v3710 = vsub.f32 0.0, %v1732
  %v3711 = vsub.f32 0.0, %v1733
  %v3712 = vsub.f32 0.0, %v1734
  %v3713 = vsub.f32 0.0, %v1735
  %v3714 = vsub.f32 0.0, %v1736
  %v3715 = vsub.f32 0.0, %v1737
  %v3716 = vsub.f32 0.0, %v1738
  %v3717 = vsub.f32 0.0, %v1739
  %v3718 = vsub.f32 0.0, %v1740
  %v3719 = vsub.f32 0.0, %v1741
  %v3720 = vmul.f32 %v3656, 1.442695
  %v3721 = vpow.pop %v3720
  %v3722 = vmul.f32 %v3657, 1.442695
  %v3723 = vpow.pop %v3722
  %v3724 = vmul.f32 %v3658, 1.442695
  %v3725 = vpow.pop %v3724
  %v3726 = vmul.f32 %v3659, 1.442695
  %v3727 = vpow.pop %v3726
  %v3728 = vmul.f32 %v3660, 1.442695
  %v3729 = vpow.pop %v3728
  %v3730 = vmul.f32 %v3661, 1.442695
  %v3731 = vpow.pop %v3730
  %v3732 = vmul.f32 %v3662, 1.442695
  %v3733 = vpow.pop %v3732
  %v3734 = vmul.f32 %v3663, 1.442695
  %v3735 = vpow.pop %v3734
  %v3736 = vmul.f32 %v3664, 1.442695
  %v3737 = vpow.pop %v3736
  %v3738 = vmul.f32 %v3665, 1.442695
  %v3739 = vpow.pop %v3738
  %v3740 = vmul.f32 %v3666, 1.442695
  %v3741 = vpow.pop %v3740
  %v3742 = vmul.f32 %v3667, 1.442695
  %v3743 = vpow.pop %v3742
  %v3744 = vmul.f32 %v3668, 1.442695
  %v3745 = vpow.pop %v3744
  %v3746 = vmul.f32 %v3669, 1.442695
  %v3747 = vpow.pop %v3746
  %v3748 = vmul.f32 %v3670, 1.442695
  %v3749 = vpow.pop %v3748
  %v3750 = vmul.f32 %v3671, 1.442695
  %v3751 = vpow.pop %v3750
  %v3752 = vmul.f32 %v3672, 1.442695
  %v3753 = vpow.pop %v3752
  %v3754 = vmul.f32 %v3673, 1.442695
  %v3755 = vpow.pop %v3754
  %v3756 = vmul.f32 %v3674, 1.442695
  %v3757 = vpow.pop %v3756
  %v3758 = vmul.f32 %v3675, 1.442695
  %v3759 = vpow.pop %v3758
  %v3760 = vmul.f32 %v3676, 1.442695
  %v3761 = vpow.pop %v3760
  %v3762 = vmul.f32 %v3677, 1.442695
  %v3763 = vpow.pop %v3762
  %v3764 = vmul.f32 %v3678, 1.442695
  %v3765 = vpow.pop %v3764
  %v3766 = vmul.f32 %v3679, 1.442695
  %v3767 = vpow.pop %v3766
  %v3768 = vmul.f32 %v3680, 1.442695
  %v3769 = vpow.pop %v3768
  %v3770 = vmul.f32 %v3681, 1.442695
  %v3771 = vpow.pop %v3770
  %v3772 = vmul.f32 %v3682, 1.442695
  %v3773 = vpow.pop %v3772
  %v3774 = vmul.f32 %v3683, 1.442695
  %v3775 = vpow.pop %v3774
  %v3776 = vmul.f32 %v3684, 1.442695
  %v3777 = vpow.pop %v3776
  %v3778 = vmul.f32 %v3685, 1.442695
  %v3779 = vpow.pop %v3778
  %v3780 = vmul.f32 %v3686, 1.442695
  %v3781 = vpow.pop %v3780
  %v3782 = vmul.f32 %v3687, 1.442695
  %v3783 = vpow.pop %v3782
  %v3784 = vmul.f32 %v3688, 1.442695
  %v3785 = vpow.pop %v3784
  %v3786 = vmul.f32 %v3689, 1.442695
  %v3787 = vpow.pop %v3786
  %v3788 = vmul.f32 %v3690, 1.442695
  %v3789 = vpow.pop %v3788
  %v3790 = vmul.f32 %v3691, 1.442695
  %v3791 = vpow.pop %v3790
  %v3792 = vmul.f32 %v3692, 1.442695
  %v3793 = vpow.pop %v3792
  %v3794 = vmul.f32 %v3693, 1.442695
  %v3795 = vpow.pop %v3794
  %v3796 = vmul.f32 %v3694, 1.442695
  %v3797 = vpow.pop %v3796
  %v3798 = vmul.f32 %v3695, 1.442695
  %v3799 = vpow.pop %v3798
  %v3800 = vmul.f32 %v3696, 1.442695
  %v3801 = vpow.pop %v3800
  %v3802 = vmul.f32 %v3697, 1.442695
  %v3803 = vpow.pop %v3802
  %v3804 = vmul.f32 %v3698, 1.442695
  %v3805 = vpow.pop %v3804
  %v3806 = vmul.f32 %v3699, 1.442695
  %v3807 = vpow.pop %v3806
  %v3808 = vmul.f32 %v3700, 1.442695
  %v3809 = vpow.pop %v3808
  %v3810 = vmul.f32 %v3701, 1.442695
  %v3811 = vpow.pop %v3810
  %v3812 = vmul.f32 %v3702, 1.442695
  %v3813 = vpow.pop %v3812
  %v3814 = vmul.f32 %v3703, 1.442695
  %v3815 = vpow.pop %v3814
  %v3816 = vmul.f32 %v3704, 1.442695
  %v3817 = vpow.pop %v3816
  %v3818 = vmul.f32 %v3705, 1.442695
  %v3819 = vpow.pop %v3818
  %v3820 = vmul.f32 %v3706, 1.442695
  %v3821 = vpow.pop %v3820
  %v3822 = vmul.f32 %v3707, 1.442695
  %v3823 = vpow.pop %v3822
  %v3824 = vmul.f32 %v3708, 1.442695
  %v3825 = vpow.pop %v3824
  %v3826 = vmul.f32 %v3709, 1.442695
  %v3827 = vpow.pop %v3826
  %v3828 = vmul.f32 %v3710, 1.442695
  %v3829 = vpow.pop %v3828
  %v3830 = vmul.f32 %v3711, 1.442695
  %v3831 = vpow.pop %v3830
  %v3832 = vmul.f32 %v3712, 1.442695
  %v3833 = vpow.pop %v3832
  %v3834 = vmul.f32 %v3713, 1.442695
  %v3835 = vpow.pop %v3834
  %v3836 = vmul.f32 %v3714, 1.442695
  %v3837 = vpow.pop %v3836
  %v3838 = vmul.f32 %v3715, 1.442695
  %v3839 = vpow.pop %v3838
  %v3840 = vmul.f32 %v3716, 1.442695
  %v3841 = vpow.pop %v3840
  %v3842 = vmul.f32 %v3717, 1.442695
  %v3843 = vpow.pop %v3842
  %v3844 = vmul.f32 %v3718, 1.442695
  %v3845 = vpow.pop %v3844
  %v3846 = vmul.f32 %v3719, 1.442695
  %v3847 = vpow.pop %v3846
  %v3848 = vadd.f32 %v3721, 1.0
  %v3849 = vadd.f32 %v3723, 1.0
  %v3850 = vadd.f32 %v3725, 1.0
  %v3851 = vadd.f32 %v3727, 1.0
  %v3852 = vadd.f32 %v3729, 1.0
  %v3853 = vadd.f32 %v3731, 1.0
  %v3854 = vadd.f32 %v3733, 1.0
  %v3855 = vadd.f32 %v3735, 1.0
  %v3856 = vadd.f32 %v3737, 1.0
  %v3857 = vadd.f32 %v3739, 1.0
  %v3858 = vadd.f32 %v3741, 1.0
  %v3859 = vadd.f32 %v3743, 1.0
  %v3860 = vadd.f32 %v3745, 1.0
  %v3861 = vadd.f32 %v3747, 1.0
  %v3862 = vadd.f32 %v3749, 1.0
  %v3863 = vadd.f32 %v3751, 1.0
  %v3864 = vadd.f32 %v3753, 1.0
  %v3865 = vadd.f32 %v3755, 1.0
  %v3866 = vadd.f32 %v3757, 1.0
  %v3867 = vadd.f32 %v3759, 1.0
  %v3868 = vadd.f32 %v3761, 1.0
  %v3869 = vadd.f32 %v3763, 1.0
  %v3870 = vadd.f32 %v3765, 1.0
  %v3871 = vadd.f32 %v3767, 1.0
  %v3872 = vadd.f32 %v3769, 1.0
  %v3873 = vadd.f32 %v3771, 1.0
  %v3874 = vadd.f32 %v3773, 1.0
  %v3875 = vadd.f32 %v3775, 1.0
  %v3876 = vadd.f32 %v3777, 1.0
  %v3877 = vadd.f32 %v3779, 1.0
  %v3878 = vadd.f32 %v3781, 1.0
  %v3879 = vadd.f32 %v3783, 1.0
  %v3880 = vadd.f32 %v3785, 1.0
  %v3881 = vadd.f32 %v3787, 1.0
  %v3882 = vadd.f32 %v3789, 1.0
  %v3883 = vadd.f32 %v3791, 1.0
  %v3884 = vadd.f32 %v3793, 1.0
  %v3885 = vadd.f32 %v3795, 1.0
  %v3886 = vadd.f32 %v3797, 1.0
  %v3887 = vadd.f32 %v3799, 1.0
  %v3888 = vadd.f32 %v3801, 1.0
  %v3889 = vadd.f32 %v3803, 1.0
  %v3890 = vadd.f32 %v3805, 1.0
  %v3891 = vadd.f32 %v3807, 1.0
  %v3892 = vadd.f32 %v3809, 1.0
  %v3893 = vadd.f32 %v3811, 1.0
  %v3894 = vadd.f32 %v3813, 1.0
  %v3895 = vadd.f32 %v3815, 1.0
  %v3896 = vadd.f32 %v3817, 1.0
  %v3897 = vadd.f32 %v3819, 1.0
  %v3898 = vadd.f32 %v3821, 1.0
  %v3899 = vadd.f32 %v3823, 1.0
  %v3900 = vadd.f32 %v3825, 1.0
  %v3901 = vadd.f32 %v3827, 1.0
  %v3902 = vadd.f32 %v3829, 1.0
  %v3903 = vadd.f32 %v3831, 1.0
  %v3904 = vadd.f32 %v3833, 1.0
  %v3905 = vadd.f32 %v3835, 1.0
  %v3906 = vadd.f32 %v3837, 1.0
  %v3907 = vadd.f32 %v3839, 1.0
  %v3908 = vadd.f32 %v3841, 1.0
  %v3909 = vadd.f32 %v3843, 1.0
  %v3910 = vadd.f32 %v3845, 1.0
  %v3911 = vadd.f32 %v3847, 1.0
  %v3912 = vrcp.pop %v3848
  %v3913 = vrcp.pop %v3849
  %v3914 = vrcp.pop %v3850
  %v3915 = vrcp.pop %v3851
  %v3916 = vrcp.pop %v3852
  %v3917 = vrcp.pop %v3853
  %v3918 = vrcp.pop %v3854
  %v3919 = vrcp.pop %v3855
  %v3920 = vrcp.pop %v3856
  %v3921 = vrcp.pop %v3857
  %v3922 = vrcp.pop %v3858
  %v3923 = vrcp.pop %v3859
  %v3924 = vrcp.pop %v3860
  %v3925 = vrcp.pop %v3861
  %v3926 = vrcp.pop %v3862
  %v3927 = vrcp.pop %v3863
  %v3928 = vrcp.pop %v3864
  %v3929 = vrcp.pop %v3865
  %v3930 = vrcp.pop %v3866
  %v3931 = vrcp.pop %v3867
  %v3932 = vrcp.pop %v3868
  %v3933 = vrcp.pop %v3869
  %v3934 = vrcp.pop %v3870
  %v3935 = vrcp.pop %v3871
  %v3936 = vrcp.pop %v3872
  %v3937 = vrcp.pop %v3873
  %v3938 = vrcp.pop %v3874
  %v3939 = vrcp.pop %v3875
  %v3940 = vrcp.pop %v3876
  %v3941 = vrcp.pop %v3877
  %v3942 = vrcp.pop %v3878
  %v3943 = vrcp.pop %v3879
  %v3944 = vrcp.pop %v3880
  %v3945 = vrcp.pop %v3881
  %v3946 = vrcp.pop %v3882
  %v3947 = vrcp.pop %v3883
  %v3948 = vrcp.pop %v3884
  %v3949 = vrcp.pop %v3885
  %v3950 = vrcp.pop %v3886
  %v3951 = vrcp.pop %v3887
  %v3952 = vrcp.pop %v3888
  %v3953 = vrcp.pop %v3889
  %v3954 = vrcp.pop %v3890
  %v3955 = vrcp.pop %v3891
  %v3956 = vrcp.pop %v3892
  %v3957 = vrcp.pop %v3893
  %v3958 = vrcp.pop %v3894
  %v3959 = vrcp.pop %v3895
  %v3960 = vrcp.pop %v3896
  %v3961 = vrcp.pop %v3897
  %v3962 = vrcp.pop %v3898
  %v3963 = vrcp.pop %v3899
  %v3964 = vrcp.pop %v3900
  %v3965 = vrcp.pop %v3901
  %v3966 = vrcp.pop %v3902
  %v3967 = vrcp.pop %v3903
  %v3968 = vrcp.pop %v3904
  %v3969 = vrcp.pop %v3905
  %v3970 = vrcp.pop %v3906
  %v3971 = vrcp.pop %v3907
  %v3972 = vrcp.pop %v3908
  %v3973 = vrcp.pop %v3909
  %v3974 = vrcp.pop %v3910
  %v3975 = vrcp.pop %v3911
  %v3976 = vmax.f32 %v3592, 0.0
  %v3977 = vmax.f32 %v3593, 0.0
  %v3978 = vmax.f32 %v3594, 0.0
  %v3979 = vmax.f32 %v3595, 0.0
  %v3980 = vmax.f32 %v3596, 0.0
  %v3981 = vmax.f32 %v3597, 0.0
  %v3982 = vmax.f32 %v3598, 0.0
  %v3983 = vmax.f32 %v3599, 0.0
  %v3984 = vmax.f32 %v3600, 0.0
  %v3985 = vmax.f32 %v3601, 0.0
  %v3986 = vmax.f32 %v3602, 0.0
  %v3987 = vmax.f32 %v3603, 0.0
  %v3988 = vmax.f32 %v3604, 0.0
  %v3989 = vmax.f32 %v3605, 0.0
  %v3990 = vmax.f32 %v3606, 0.0
  %v3991 = vmax.f32 %v3607, 0.0
  %v3992 = vmax.f32 %v3608, 0.0
  %v3993 = vmax.f32 %v3609, 0.0
  %v3994 = vmax.f32 %v3610, 0.0
  %v3995 = vmax.f32 %v3611, 0.0
  %v3996 = vmax.f32 %v3612, 0.0
  %v3997 = vmax.f32 %v3613, 0.0
  %v3998 = vmax.f32 %v3614, 0.0
  %v3999 = vmax.f32 %v3615, 0.0
  %v4000 = vmax.f32 %v3616, 0.0
  %v4001 = vmax.f32 %v3617, 0.0
  %v4002 = vmax.f32 %v3618, 0.0
  %v4003 = vmax.f32 %v3619, 0.0
  %v4004 = vmax.f32 %v3620, 0.0
  %v4005 = vmax.f32 %v3621, 0.0
  %v4006 = vmax.f32 %v3622, 0.0
  %v4007 = vmax.f32 %v3623, 0.0
  %v4008 = vmax.f32 %v3624, 0.0
  %v4009 = vmax.f32 %v3625, 0.0
  %v4010 = vmax.f32 %v3626, 0.0
  %v4011 = vmax.f32 %v3627, 0.0
  %v4012 = vmax.f32 %v3628, 0.0
  %v4013 = vmax.f32 %v3629, 0.0
  %v4014 = vmax.f32 %v3630, 0.0
  %v4015 = vmax.f32 %v3631, 0.0
  %v4016 = vmax.f32 %v3632, 0.0
  %v4017 = vmax.f32 %v3633, 0.0
  %v4018 = vmax.f32 %v3634, 0.0
  %v4019 = vmax.f32 %v3635, 0.0
  %v4020 = vmax.f32 %v3636, 0.0
  %v4021 = vmax.f32 %v3637, 0.0
  %v4022 = vmax.f32 %v3638, 0.0
  %v4023 = vmax.f32 %v3639, 0.0
  %v4024 = vmax.f32 %v3640, 0.0
  %v4025 = vmax.f32 %v3641, 0.0
  %v4026 = vmax.f32 %v3642, 0.0
  %v4027 = vmax.f32 %v3643, 0.0
  %v4028 = vmax.f32 %v3644, 0.0
  %v4029 = vmax.f32 %v3645, 0.0
  %v4030 = vmax.f32 %v3646, 0.0
  %v4031 = vmax.f32 %v3647, 0.0
  %v4032 = vmax.f32 %v3648, 0.0
  %v4033 = vmax.f32 %v3649, 0.0
  %v4034 = vmax.f32 %v3650, 0.0
  %v4035 = vmax.f32 %v3651, 0.0
  %v4036 = vmax.f32 %v3652, 0.0
  %v4037 = vmax.f32 %v3653, 0.0
  %v4038 = vmax.f32 %v3654, 0.0
  %v4039 = vmax.f32 %v3655, 0.0
  %4104 = vrot.lane.b32.xlu0 %v3912, 96
  %v4105 = vpop.permute.xlu0 %4104
  %4106 = vrot.lane.b32.xlu0 %v3913, 96
  %v4107 = vpop.permute.xlu0 %4106
  %4108 = vrot.lane.b32.xlu0 %v3914, 96
  %v4109 = vpop.permute.xlu0 %4108
  %4110 = vrot.lane.b32.xlu0 %v3915, 96
  %v4111 = vpop.permute.xlu0 %4110
  %4112 = vrot.lane.b32.xlu0 %v3916, 96
  %v4113 = vpop.permute.xlu0 %4112
  %4114 = vrot.lane.b32.xlu0 %v3917, 96
  %v4115 = vpop.permute.xlu0 %4114
  %4116 = vrot.lane.b32.xlu0 %v3918, 96
  %v4117 = vpop.permute.xlu0 %4116
  %4118 = vrot.lane.b32.xlu0 %v3919, 96
  %v4119 = vpop.permute.xlu0 %4118
  %4120 = vrot.lane.b32.xlu0 %v3920, 96
  %v4121 = vpop.permute.xlu0 %4120
  %4122 = vrot.lane.b32.xlu0 %v3921, 96
  %v4123 = vpop.permute.xlu0 %4122
  %4124 = vrot.lane.b32.xlu0 %v3922, 96
  %v4125 = vpop.permute.xlu0 %4124
  %4126 = vrot.lane.b32.xlu0 %v3923, 96
  %v4127 = vpop.permute.xlu0 %4126
  %4128 = vrot.lane.b32.xlu0 %v3924, 96
  %v4129 = vpop.permute.xlu0 %4128
  %4130 = vrot.lane.b32.xlu0 %v3925, 96
  %v4131 = vpop.permute.xlu0 %4130
  %4132 = vrot.lane.b32.xlu0 %v3926, 96
  %v4133 = vpop.permute.xlu0 %4132
  %4134 = vrot.lane.b32.xlu0 %v3927, 96
  %v4135 = vpop.permute.xlu0 %4134
  %4136 = vrot.lane.b32.xlu0 %v3928, 96
  %v4137 = vpop.permute.xlu0 %4136
  %4138 = vrot.lane.b32.xlu0 %v3929, 96
  %v4139 = vpop.permute.xlu0 %4138
  %4140 = vrot.lane.b32.xlu0 %v3930, 96
  %v4141 = vpop.permute.xlu0 %4140
  %4142 = vrot.lane.b32.xlu0 %v3931, 96
  %v4143 = vpop.permute.xlu0 %4142
  %4144 = vrot.lane.b32.xlu0 %v3932, 96
  %v4145 = vpop.permute.xlu0 %4144
  %4146 = vrot.lane.b32.xlu0 %v3933, 96
  %v4147 = vpop.permute.xlu0 %4146
  %4148 = vrot.lane.b32.xlu0 %v3934, 96
  %v4149 = vpop.permute.xlu0 %4148
  %4150 = vrot.lane.b32.xlu0 %v3935, 96
  %v4151 = vpop.permute.xlu0 %4150
  %4152 = vrot.lane.b32.xlu0 %v3936, 96
  %v4153 = vpop.permute.xlu0 %4152
  %4154 = vrot.lane.b32.xlu0 %v3937, 96
  %v4155 = vpop.permute.xlu0 %4154
  %4156 = vrot.lane.b32.xlu0 %v3938, 96
  %v4157 = vpop.permute.xlu0 %4156
  %4158 = vrot.lane.b32.xlu0 %v3939, 96
  %v4159 = vpop.permute.xlu0 %4158
  %4160 = vrot.lane.b32.xlu0 %v3940, 96
  %v4161 = vpop.permute.xlu0 %4160
  %4162 = vrot.lane.b32.xlu0 %v3941, 96
  %v4163 = vpop.permute.xlu0 %4162
  %4164 = vrot.lane.b32.xlu0 %v3942, 96
  %v4165 = vpop.permute.xlu0 %4164
  %4166 = vrot.lane.b32.xlu0 %v3943, 96
  %v4167 = vpop.permute.xlu0 %4166
  %4168 = vrot.lane.b32.xlu0 %v3944, 96
  %v4169 = vpop.permute.xlu0 %4168
  %4170 = vrot.lane.b32.xlu0 %v3945, 96
  %v4171 = vpop.permute.xlu0 %4170
  %4172 = vrot.lane.b32.xlu0 %v3946, 96
  %v4173 = vpop.permute.xlu0 %4172
  %4174 = vrot.lane.b32.xlu0 %v3947, 96
  %v4175 = vpop.permute.xlu0 %4174
  %4176 = vrot.lane.b32.xlu0 %v3948, 96
  %v4177 = vpop.permute.xlu0 %4176
  %4178 = vrot.lane.b32.xlu0 %v3949, 96
  %v4179 = vpop.permute.xlu0 %4178
  %4180 = vrot.lane.b32.xlu0 %v3950, 96
  %v4181 = vpop.permute.xlu0 %4180
  %4182 = vrot.lane.b32.xlu0 %v3951, 96
  %v4183 = vpop.permute.xlu0 %4182
  %4184 = vrot.lane.b32.xlu0 %v3952, 96
  %v4185 = vpop.permute.xlu0 %4184
  %4186 = vrot.lane.b32.xlu0 %v3953, 96
  %v4187 = vpop.permute.xlu0 %4186
  %4188 = vrot.lane.b32.xlu0 %v3954, 96
  %v4189 = vpop.permute.xlu0 %4188
  %4190 = vrot.lane.b32.xlu0 %v3955, 96
  %v4191 = vpop.permute.xlu0 %4190
  %4192 = vrot.lane.b32.xlu0 %v3956, 96
  %v4193 = vpop.permute.xlu0 %4192
  %4194 = vrot.lane.b32.xlu0 %v3957, 96
  %v4195 = vpop.permute.xlu0 %4194
  %4196 = vrot.lane.b32.xlu0 %v3958, 96
  %v4197 = vpop.permute.xlu0 %4196
  %4198 = vrot.lane.b32.xlu0 %v3959, 96
  %v4199 = vpop.permute.xlu0 %4198
  %4200 = vrot.lane.b32.xlu0 %v3960, 96
  %v4201 = vpop.permute.xlu0 %4200
  %4202 = vrot.lane.b32.xlu0 %v3961, 96
  %v4203 = vpop.permute.xlu0 %4202
  %4204 = vrot.lane.b32.xlu0 %v3962, 96
  %v4205 = vpop.permute.xlu0 %4204
  %4206 = vrot.lane.b32.xlu0 %v3963, 96
  %v4207 = vpop.permute.xlu0 %4206
  %4208 = vrot.lane.b32.xlu0 %v3964, 96
  %v4209 = vpop.permute.xlu0 %4208
  %4210 = vrot.lane.b32.xlu0 %v3965, 96
  %v4211 = vpop.permute.xlu0 %4210
  %4212 = vrot.lane.b32.xlu0 %v3966, 96
  %v4213 = vpop.permute.xlu0 %4212
  %4214 = vrot.lane.b32.xlu0 %v3967, 96
  %v4215 = vpop.permute.xlu0 %4214
  %4216 = vrot.lane.b32.xlu0 %v3968, 96
  %v4217 = vpop.permute.xlu0 %4216
  %4218 = vrot.lane.b32.xlu0 %v3969, 96
  %v4219 = vpop.permute.xlu0 %4218
  %4220 = vrot.lane.b32.xlu0 %v3970, 96
  %v4221 = vpop.permute.xlu0 %4220
  %4222 = vrot.lane.b32.xlu0 %v3971, 96
  %v4223 = vpop.permute.xlu0 %4222
  %4224 = vrot.lane.b32.xlu0 %v3972, 96
  %v4225 = vpop.permute.xlu0 %4224
  %4226 = vrot.lane.b32.xlu0 %v3973, 96
  %v4227 = vpop.permute.xlu0 %4226
  %4228 = vrot.lane.b32.xlu0 %v3974, 96
  %v4229 = vpop.permute.xlu0 %4228
  %4230 = vrot.lane.b32.xlu0 %v3975, 96
  %v4231 = vpop.permute.xlu0 %4230
  %v4296 = vmul.f32 %v3976, %v4105
  %v4297 = vmul.f32 %v3977, %v4107
  %v4298 = vmul.f32 %v3978, %v4109
  %v4299 = vmul.f32 %v3979, %v4111
  %v4300 = vmul.f32 %v3980, %v4113
  %v4301 = vmul.f32 %v3981, %v4115
  %v4302 = vmul.f32 %v3982, %v4117
  %v4303 = vmul.f32 %v3983, %v4119
  %v4304 = vmul.f32 %v3984, %v4121
  %v4305 = vmul.f32 %v3985, %v4123
  %v4306 = vmul.f32 %v3986, %v4125
  %v4307 = vmul.f32 %v3987, %v4127
  %v4308 = vmul.f32 %v3988, %v4129
  %v4309 = vmul.f32 %v3989, %v4131
  %v4310 = vmul.f32 %v3990, %v4133
  %v4311 = vmul.f32 %v3991, %v4135
  %v4312 = vmul.f32 %v3992, %v4137
  %v4313 = vmul.f32 %v3993, %v4139
  %v4314 = vmul.f32 %v3994, %v4141
  %v4315 = vmul.f32 %v3995, %v4143
  %v4316 = vmul.f32 %v3996, %v4145
  %v4317 = vmul.f32 %v3997, %v4147
  %v4318 = vmul.f32 %v3998, %v4149
  %v4319 = vmul.f32 %v3999, %v4151
  %v4320 = vmul.f32 %v4000, %v4153
  %v4321 = vmul.f32 %v4001, %v4155
  %v4322 = vmul.f32 %v4002, %v4157
  %v4323 = vmul.f32 %v4003, %v4159
  %v4324 = vmul.f32 %v4004, %v4161
  %v4325 = vmul.f32 %v4005, %v4163
  %v4326 = vmul.f32 %v4006, %v4165
  %v4327 = vmul.f32 %v4007, %v4167
  %v4328 = vmul.f32 %v4008, %v4169
  %v4329 = vmul.f32 %v4009, %v4171
  %v4330 = vmul.f32 %v4010, %v4173
  %v4331 = vmul.f32 %v4011, %v4175
  %v4332 = vmul.f32 %v4012, %v4177
  %v4333 = vmul.f32 %v4013, %v4179
  %v4334 = vmul.f32 %v4014, %v4181
  %v4335 = vmul.f32 %v4015, %v4183
  %v4336 = vmul.f32 %v4016, %v4185
  %v4337 = vmul.f32 %v4017, %v4187
  %v4338 = vmul.f32 %v4018, %v4189
  %v4339 = vmul.f32 %v4019, %v4191
  %v4340 = vmul.f32 %v4020, %v4193
  %v4341 = vmul.f32 %v4021, %v4195
  %v4342 = vmul.f32 %v4022, %v4197
  %v4343 = vmul.f32 %v4023, %v4199
  %v4344 = vmul.f32 %v4024, %v4201
  %v4345 = vmul.f32 %v4025, %v4203
  %v4346 = vmul.f32 %v4026, %v4205
  %v4347 = vmul.f32 %v4027, %v4207
  %v4348 = vmul.f32 %v4028, %v4209
  %v4349 = vmul.f32 %v4029, %v4211
  %v4350 = vmul.f32 %v4030, %v4213
  %v4351 = vmul.f32 %v4031, %v4215
  %v4352 = vmul.f32 %v4032, %v4217
  %v4353 = vmul.f32 %v4033, %v4219
  %v4354 = vmul.f32 %v4034, %v4221
  %v4355 = vmul.f32 %v4035, %v4223
  %v4356 = vmul.f32 %v4036, %v4225
  %v4357 = vmul.f32 %v4037, %v4227
  %v4358 = vmul.f32 %v4038, %v4229
  %v4359 = vmul.f32 %v4039, %v4231
  %v4360 = vpack.c.bf16 %v4297, %v4296
  %v4361 = vpack.c.bf16 %v4299, %v4298
  %v4362 = vpack.c.bf16 %v4301, %v4300
  %v4363 = vpack.c.bf16 %v4303, %v4302
  %v4364 = vpack.c.bf16 %v4305, %v4304
  %v4365 = vpack.c.bf16 %v4307, %v4306
  %v4366 = vpack.c.bf16 %v4309, %v4308
  %v4367 = vpack.c.bf16 %v4311, %v4310
  %v4368 = vpack.c.bf16 %v4313, %v4312
  %v4369 = vpack.c.bf16 %v4315, %v4314
  %v4370 = vpack.c.bf16 %v4317, %v4316
  %v4371 = vpack.c.bf16 %v4319, %v4318
  %v4372 = vpack.c.bf16 %v4321, %v4320
  %v4373 = vpack.c.bf16 %v4323, %v4322
  %v4374 = vpack.c.bf16 %v4325, %v4324
  %v4375 = vpack.c.bf16 %v4327, %v4326
  %v4376 = vpack.c.bf16 %v4329, %v4328
  %v4377 = vpack.c.bf16 %v4331, %v4330
  %v4378 = vpack.c.bf16 %v4333, %v4332
  %v4379 = vpack.c.bf16 %v4335, %v4334
  %v4380 = vpack.c.bf16 %v4337, %v4336
  %v4381 = vpack.c.bf16 %v4339, %v4338
  %v4382 = vpack.c.bf16 %v4341, %v4340
  %v4383 = vpack.c.bf16 %v4343, %v4342
  %v4384 = vpack.c.bf16 %v4345, %v4344
  %v4385 = vpack.c.bf16 %v4347, %v4346
  %v4386 = vpack.c.bf16 %v4349, %v4348
  %v4387 = vpack.c.bf16 %v4351, %v4350
  %v4388 = vpack.c.bf16 %v4353, %v4352
  %v4389 = vpack.c.bf16 %v4355, %v4354
  %v4390 = vpack.c.bf16 %v4357, %v4356
  %v4391 = vpack.c.bf16 %v4359, %v4358
  %v4392 = vld [vmem:[%s6] sm:$0xf]
  %v4393 = vld [vmem:[%s6 + $0x4] sm:$0xf]
  %v4394 = vld [vmem:[%s6 + $0x8] sm:$0xf]
  %v4395 = vld [vmem:[%s6 + $0xc] sm:$0xf]
  %v4396 = vld [vmem:[%s7 + $0x2] sm:$0x1]
  %v4397 = vlaneseq
  %v4398 = vshrl.u32 %v4397, 7
  %v4399 = vsub.s32 0, %v4398
  %v4400 = vrot.slane %v4396, %v4399
  %4433 = vrot.lane.b32.xlu0 %v4360, 64
  %v4434 = vpop.permute.xlu0 %4433
  %4435 = vrot.lane.b32.xlu0 %v4361, 64
  %v4436 = vpop.permute.xlu0 %4435
  %4437 = vrot.lane.b32.xlu0 %v4362, 64
  %v4438 = vpop.permute.xlu0 %4437
  %4439 = vrot.lane.b32.xlu0 %v4363, 64
  %v4440 = vpop.permute.xlu0 %4439
  %4441 = vrot.lane.b32.xlu0 %v4364, 64
  %v4442 = vpop.permute.xlu0 %4441
  %4443 = vrot.lane.b32.xlu0 %v4365, 64
  %v4444 = vpop.permute.xlu0 %4443
  %4445 = vrot.lane.b32.xlu0 %v4366, 64
  %v4446 = vpop.permute.xlu0 %4445
  %4447 = vrot.lane.b32.xlu0 %v4367, 64
  %v4448 = vpop.permute.xlu0 %4447
  %4449 = vrot.lane.b32.xlu0 %v4368, 64
  %v4450 = vpop.permute.xlu0 %4449
  %4451 = vrot.lane.b32.xlu0 %v4369, 64
  %v4452 = vpop.permute.xlu0 %4451
  %4453 = vrot.lane.b32.xlu0 %v4370, 64
  %v4454 = vpop.permute.xlu0 %4453
  %4455 = vrot.lane.b32.xlu0 %v4371, 64
  %v4456 = vpop.permute.xlu0 %4455
  %4457 = vrot.lane.b32.xlu0 %v4372, 64
  %v4458 = vpop.permute.xlu0 %4457
  %4459 = vrot.lane.b32.xlu0 %v4373, 64
  %v4460 = vpop.permute.xlu0 %4459
  %4461 = vrot.lane.b32.xlu0 %v4374, 64
  %v4462 = vpop.permute.xlu0 %4461
  %4463 = vrot.lane.b32.xlu0 %v4375, 64
  %v4464 = vpop.permute.xlu0 %4463
  %4465 = vrot.lane.b32.xlu0 %v4376, 64
  %v4466 = vpop.permute.xlu0 %4465
  %4467 = vrot.lane.b32.xlu0 %v4377, 64
  %v4468 = vpop.permute.xlu0 %4467
  %4469 = vrot.lane.b32.xlu0 %v4378, 64
  %v4470 = vpop.permute.xlu0 %4469
  %4471 = vrot.lane.b32.xlu0 %v4379, 64
  %v4472 = vpop.permute.xlu0 %4471
  %4473 = vrot.lane.b32.xlu0 %v4380, 64
  %v4474 = vpop.permute.xlu0 %4473
  %4475 = vrot.lane.b32.xlu0 %v4381, 64
  %v4476 = vpop.permute.xlu0 %4475
  %4477 = vrot.lane.b32.xlu0 %v4382, 64
  %v4478 = vpop.permute.xlu0 %4477
  %4479 = vrot.lane.b32.xlu0 %v4383, 64
  %v4480 = vpop.permute.xlu0 %4479
  %4481 = vrot.lane.b32.xlu0 %v4384, 64
  %v4482 = vpop.permute.xlu0 %4481
  %4483 = vrot.lane.b32.xlu0 %v4385, 64
  %v4484 = vpop.permute.xlu0 %4483
  %4485 = vrot.lane.b32.xlu0 %v4386, 64
  %v4486 = vpop.permute.xlu0 %4485
  %4487 = vrot.lane.b32.xlu0 %v4387, 64
  %v4488 = vpop.permute.xlu0 %4487
  %4489 = vrot.lane.b32.xlu0 %v4388, 64
  %v4490 = vpop.permute.xlu0 %4489
  %4491 = vrot.lane.b32.xlu0 %v4389, 64
  %v4492 = vpop.permute.xlu0 %4491
  %4493 = vrot.lane.b32.xlu0 %v4390, 64
  %v4494 = vpop.permute.xlu0 %4493
  %4495 = vrot.lane.b32.xlu0 %v4391, 64
  %v4496 = vpop.permute.xlu0 %4495
  %v4501 = vunpack.c.l.b16 %v4392
  %v4502 = vunpack.c.l.b16 %v4393
  %v4503 = vunpack.c.l.b16 %v4394
  %v4504 = vunpack.c.l.b16 %v4395
  %v4505 = vpack.c.b16 %v4502, %v4501
  %v4506 = vpack.c.b16 %v4504, %v4503
  %v4510 = vsel %vm1036, %v4434, 0
  %v4513 = vsel %vm1036, %v4436, 0
  %v4516 = vsel %vm1036, %v4438, 0
  %v4519 = vsel %vm1036, %v4440, 0
  %v4522 = vsel %vm1036, %v4442, 0
  %v4525 = vsel %vm1036, %v4444, 0
  %v4528 = vsel %vm1036, %v4446, 0
  %v4531 = vsel %vm1036, %v4448, 0
  %v4534 = vsel %vm1036, %v4450, 0
  %v4537 = vsel %vm1036, %v4452, 0
  %v4540 = vsel %vm1036, %v4454, 0
  %v4543 = vsel %vm1036, %v4456, 0
  %v4546 = vsel %vm1036, %v4458, 0
  %v4549 = vsel %vm1036, %v4460, 0
  %v4552 = vsel %vm1036, %v4462, 0
  %v4555 = vsel %vm1036, %v4464, 0
  %v4558 = vsel %vm1036, %v4466, 0
  %v4561 = vsel %vm1036, %v4468, 0
  %v4564 = vsel %vm1036, %v4470, 0
  %v4567 = vsel %vm1036, %v4472, 0
  %v4570 = vsel %vm1036, %v4474, 0
  %v4573 = vsel %vm1036, %v4476, 0
  %v4576 = vsel %vm1036, %v4478, 0
  %v4579 = vsel %vm1036, %v4480, 0
  %v4582 = vsel %vm1036, %v4482, 0
  %v4585 = vsel %vm1036, %v4484, 0
  %v4588 = vsel %vm1036, %v4486, 0
  %v4591 = vsel %vm1036, %v4488, 0
  %v4594 = vsel %vm1036, %v4490, 0
  %v4597 = vsel %vm1036, %v4492, 0
  %v4600 = vsel %vm1036, %v4494, 0
  %v4603 = vsel %vm1036, %v4496, 0
  %4605 = vmatprep.subr.bf16.mxu0 0
  %4606 = vmatpush1.bf16.msra.mxu0 0
  %4607 = vmatprep.subr.bf16.mxu0 0
  %4608 = vmatpush1.bf16.msra.mxu0 0
  %4609 = vmatprep.subr.bf16.mxu0 0
  %4610 = vmatpush1.bf16.msra.mxu0 0
  %4611 = vmatprep.subr.bf16.mxu0 0
  %4612 = vmatpush1.bf16.msra.mxu0 0
  %4613 = vmatprep.subr.bf16.mxu0 0
  %4614 = vmatpush1.bf16.msra.mxu0 0
  %4615 = vmatprep.subr.bf16.mxu0 0
  %4616 = vmatpush1.bf16.msra.mxu0 0
  %4617 = vmatprep.subr.bf16.mxu0 0
  %4618 = vmatpush1.bf16.msra.mxu0 %v4506
  %4619 = vmatprep.subr.bf16.mxu0 0
  %4620 = vmatpush1.bf16.msra.mxu0 %v4505
  %4621 = vmatprep.subr.bf16.mxu0 0
  %4622 = vmatpush2.bf16.msra.mxu0 0
  %4623 = vmatprep.subr.bf16.mxu0 0
  %4624 = vmatpush2.bf16.msra.mxu0 0
  %4625 = vmatprep.subr.bf16.mxu0 0
  %4626 = vmatpush2.bf16.msra.mxu0 0
  %4627 = vmatprep.subr.bf16.mxu0 0
  %4628 = vmatpush2.bf16.msra.mxu0 0
  %4629 = vmatprep.subr.bf16.mxu0 0
  %4630 = vmatpush2.bf16.msra.mxu0 0
  %4631 = vmatprep.subr.bf16.mxu0 0
  %4632 = vmatpush2.bf16.msra.mxu0 0
  %4633 = vmatprep.subr.bf16.mxu0 0
  %4634 = vmatpush2.bf16.msra.mxu0 0
  %4635 = vmatprep.subr.bf16.mxu0 0
  %4636 = vmatpush2.bf16.msra.mxu0 0
  %4637 = vmatprep.mubr.bf16.mxu0 0
  %4638 = vmatmul.mubr.bf16.gmra.mxu0 %v4510
  %v4639 = vpop.f32.mrf.mxu0
  %v4640 = vadd.f32 %v4400, %v4639
  %v4641 = vpop.f32.mrf.mxu0
  %v4642 = vpop.f32.mrf.mxu0
  %v4643 = vadd.f32 %v4400, %v4642
  %v4644 = vpop.f32.mrf.mxu0
  %4645 = vmatprep.mubr.bf16.mxu0 0
  %4646 = vmatmul.mubr.bf16.gmra.mxu0 %v4513
  %v4647 = vpop.f32.mrf.mxu0
  %v4648 = vadd.f32 %v4400, %v4647
  %v4649 = vpop.f32.mrf.mxu0
  %v4650 = vpop.f32.mrf.mxu0
  %v4651 = vadd.f32 %v4400, %v4650
  %v4652 = vpop.f32.mrf.mxu0
  %4653 = vmatprep.mubr.bf16.mxu0 0
  %4654 = vmatmul.mubr.bf16.gmra.mxu0 %v4516
  %v4655 = vpop.f32.mrf.mxu0
  %v4656 = vadd.f32 %v4400, %v4655
  %v4657 = vpop.f32.mrf.mxu0
  %v4658 = vpop.f32.mrf.mxu0
  %v4659 = vadd.f32 %v4400, %v4658
  %v4660 = vpop.f32.mrf.mxu0
  %4661 = vmatprep.mubr.bf16.mxu0 0
  %4662 = vmatmul.mubr.bf16.gmra.mxu0 %v4519
  %v4663 = vpop.f32.mrf.mxu0
  %v4664 = vadd.f32 %v4400, %v4663
  %v4665 = vpop.f32.mrf.mxu0
  %v4666 = vpop.f32.mrf.mxu0
  %v4667 = vadd.f32 %v4400, %v4666
  %v4668 = vpop.f32.mrf.mxu0
  %4669 = vmatprep.mubr.bf16.mxu0 0
  %4670 = vmatmul.mubr.bf16.gmra.mxu0 %v4522
  %v4671 = vpop.f32.mrf.mxu0
  %v4672 = vadd.f32 %v4400, %v4671
  %v4673 = vpop.f32.mrf.mxu0
  %v4674 = vpop.f32.mrf.mxu0
  %v4675 = vadd.f32 %v4400, %v4674
  %v4676 = vpop.f32.mrf.mxu0
  %4677 = vmatprep.mubr.bf16.mxu0 0
  %4678 = vmatmul.mubr.bf16.gmra.mxu0 %v4525
  %v4679 = vpop.f32.mrf.mxu0
  %v4680 = vadd.f32 %v4400, %v4679
  %v4681 = vpop.f32.mrf.mxu0
  %v4682 = vpop.f32.mrf.mxu0
  %v4683 = vadd.f32 %v4400, %v4682
  %v4684 = vpop.f32.mrf.mxu0
  %4685 = vmatprep.mubr.bf16.mxu0 0
  %4686 = vmatmul.mubr.bf16.gmra.mxu0 %v4528
  %v4687 = vpop.f32.mrf.mxu0
  %v4688 = vadd.f32 %v4400, %v4687
  %v4689 = vpop.f32.mrf.mxu0
  %v4690 = vpop.f32.mrf.mxu0
  %v4691 = vadd.f32 %v4400, %v4690
  %v4692 = vpop.f32.mrf.mxu0
  %4693 = vmatprep.mubr.bf16.mxu0 0
  %4694 = vmatmul.mubr.bf16.gmra.mxu0 %v4531
  %v4695 = vpop.f32.mrf.mxu0
  %v4696 = vadd.f32 %v4400, %v4695
  %v4697 = vpop.f32.mrf.mxu0
  %v4698 = vpop.f32.mrf.mxu0
  %v4699 = vadd.f32 %v4400, %v4698
  %v4700 = vpop.f32.mrf.mxu0
  %4701 = vmatprep.mubr.bf16.mxu0 0
  %4702 = vmatmul.mubr.bf16.gmra.mxu0 %v4534
  %v4703 = vpop.f32.mrf.mxu0
  %v4704 = vadd.f32 %v4400, %v4703
  %v4705 = vpop.f32.mrf.mxu0
  %v4706 = vpop.f32.mrf.mxu0
  %v4707 = vadd.f32 %v4400, %v4706
  %v4708 = vpop.f32.mrf.mxu0
  %4709 = vmatprep.mubr.bf16.mxu0 0
  %4710 = vmatmul.mubr.bf16.gmra.mxu0 %v4537
  %v4711 = vpop.f32.mrf.mxu0
  %v4712 = vadd.f32 %v4400, %v4711
  %v4713 = vpop.f32.mrf.mxu0
  %v4714 = vpop.f32.mrf.mxu0
  %v4715 = vadd.f32 %v4400, %v4714
  %v4716 = vpop.f32.mrf.mxu0
  %4717 = vmatprep.mubr.bf16.mxu0 0
  %4718 = vmatmul.mubr.bf16.gmra.mxu0 %v4540
  %v4719 = vpop.f32.mrf.mxu0
  %v4720 = vadd.f32 %v4400, %v4719
  %v4721 = vpop.f32.mrf.mxu0
  %v4722 = vpop.f32.mrf.mxu0
  %v4723 = vadd.f32 %v4400, %v4722
  %v4724 = vpop.f32.mrf.mxu0
  %4725 = vmatprep.mubr.bf16.mxu0 0
  %4726 = vmatmul.mubr.bf16.gmra.mxu0 %v4543
  %v4727 = vpop.f32.mrf.mxu0
  %v4728 = vadd.f32 %v4400, %v4727
  %v4729 = vpop.f32.mrf.mxu0
  %v4730 = vpop.f32.mrf.mxu0
  %v4731 = vadd.f32 %v4400, %v4730
  %v4732 = vpop.f32.mrf.mxu0
  %4733 = vmatprep.mubr.bf16.mxu0 0
  %4734 = vmatmul.mubr.bf16.gmra.mxu0 %v4546
  %v4735 = vpop.f32.mrf.mxu0
  %v4736 = vadd.f32 %v4400, %v4735
  %v4737 = vpop.f32.mrf.mxu0
  %v4738 = vpop.f32.mrf.mxu0
  %v4739 = vadd.f32 %v4400, %v4738
  %v4740 = vpop.f32.mrf.mxu0
  %4741 = vmatprep.mubr.bf16.mxu0 0
  %4742 = vmatmul.mubr.bf16.gmra.mxu0 %v4549
  %v4743 = vpop.f32.mrf.mxu0
  %v4744 = vadd.f32 %v4400, %v4743
  %v4745 = vpop.f32.mrf.mxu0
  %v4746 = vpop.f32.mrf.mxu0
  %v4747 = vadd.f32 %v4400, %v4746
  %v4748 = vpop.f32.mrf.mxu0
  %4749 = vmatprep.mubr.bf16.mxu0 0
  %4750 = vmatmul.mubr.bf16.gmra.mxu0 %v4552
  %v4751 = vpop.f32.mrf.mxu0
  %v4752 = vadd.f32 %v4400, %v4751
  %v4753 = vpop.f32.mrf.mxu0
  %v4754 = vpop.f32.mrf.mxu0
  %v4755 = vadd.f32 %v4400, %v4754
  %v4756 = vpop.f32.mrf.mxu0
  %4757 = vmatprep.mubr.bf16.mxu0 0
  %4758 = vmatmul.mubr.bf16.gmra.mxu0 %v4555
  %v4759 = vpop.f32.mrf.mxu0
  %v4760 = vadd.f32 %v4400, %v4759
  %v4761 = vpop.f32.mrf.mxu0
  %v4762 = vpop.f32.mrf.mxu0
  %v4763 = vadd.f32 %v4400, %v4762
  %v4764 = vpop.f32.mrf.mxu0
  %4765 = vmatprep.mubr.bf16.mxu0 0
  %4766 = vmatmul.mubr.bf16.gmra.mxu0 %v4558
  %v4767 = vpop.f32.mrf.mxu0
  %v4768 = vadd.f32 %v4400, %v4767
  %v4769 = vpop.f32.mrf.mxu0
  %v4770 = vpop.f32.mrf.mxu0
  %v4771 = vadd.f32 %v4400, %v4770
  %v4772 = vpop.f32.mrf.mxu0
  %4773 = vmatprep.mubr.bf16.mxu0 0
  %4774 = vmatmul.mubr.bf16.gmra.mxu0 %v4561
  %v4775 = vpop.f32.mrf.mxu0
  %v4776 = vadd.f32 %v4400, %v4775
  %v4777 = vpop.f32.mrf.mxu0
  %v4778 = vpop.f32.mrf.mxu0
  %v4779 = vadd.f32 %v4400, %v4778
  %v4780 = vpop.f32.mrf.mxu0
  %4781 = vmatprep.mubr.bf16.mxu0 0
  %4782 = vmatmul.mubr.bf16.gmra.mxu0 %v4564
  %v4783 = vpop.f32.mrf.mxu0
  %v4784 = vadd.f32 %v4400, %v4783
  %v4785 = vpop.f32.mrf.mxu0
  %v4786 = vpop.f32.mrf.mxu0
  %v4787 = vadd.f32 %v4400, %v4786
  %v4788 = vpop.f32.mrf.mxu0
  %4789 = vmatprep.mubr.bf16.mxu0 0
  %4790 = vmatmul.mubr.bf16.gmra.mxu0 %v4567
  %v4791 = vpop.f32.mrf.mxu0
  %v4792 = vadd.f32 %v4400, %v4791
  %v4793 = vpop.f32.mrf.mxu0
  %v4794 = vpop.f32.mrf.mxu0
  %v4795 = vadd.f32 %v4400, %v4794
  %v4796 = vpop.f32.mrf.mxu0
  %4797 = vmatprep.mubr.bf16.mxu0 0
  %4798 = vmatmul.mubr.bf16.gmra.mxu0 %v4570
  %v4799 = vpop.f32.mrf.mxu0
  %v4800 = vadd.f32 %v4400, %v4799
  %v4801 = vpop.f32.mrf.mxu0
  %v4802 = vpop.f32.mrf.mxu0
  %v4803 = vadd.f32 %v4400, %v4802
  %v4804 = vpop.f32.mrf.mxu0
  %4805 = vmatprep.mubr.bf16.mxu0 0
  %4806 = vmatmul.mubr.bf16.gmra.mxu0 %v4573
  %v4807 = vpop.f32.mrf.mxu0
  %v4808 = vadd.f32 %v4400, %v4807
  %v4809 = vpop.f32.mrf.mxu0
  %v4810 = vpop.f32.mrf.mxu0
  %v4811 = vadd.f32 %v4400, %v4810
  %v4812 = vpop.f32.mrf.mxu0
  %4813 = vmatprep.mubr.bf16.mxu0 0
  %4814 = vmatmul.mubr.bf16.gmra.mxu0 %v4576
  %v4815 = vpop.f32.mrf.mxu0
  %v4816 = vadd.f32 %v4400, %v4815
  %v4817 = vpop.f32.mrf.mxu0
  %v4818 = vpop.f32.mrf.mxu0
  %v4819 = vadd.f32 %v4400, %v4818
  %v4820 = vpop.f32.mrf.mxu0
  %4821 = vmatprep.mubr.bf16.mxu0 0
  %4822 = vmatmul.mubr.bf16.gmra.mxu0 %v4579
  %v4823 = vpop.f32.mrf.mxu0
  %v4824 = vadd.f32 %v4400, %v4823
  %v4825 = vpop.f32.mrf.mxu0
  %v4826 = vpop.f32.mrf.mxu0
  %v4827 = vadd.f32 %v4400, %v4826
  %v4828 = vpop.f32.mrf.mxu0
  %4829 = vmatprep.mubr.bf16.mxu0 0
  %4830 = vmatmul.mubr.bf16.gmra.mxu0 %v4582
  %v4831 = vpop.f32.mrf.mxu0
  %v4832 = vadd.f32 %v4400, %v4831
  %v4833 = vpop.f32.mrf.mxu0
  %v4834 = vpop.f32.mrf.mxu0
  %v4835 = vadd.f32 %v4400, %v4834
  %v4836 = vpop.f32.mrf.mxu0
  %4837 = vmatprep.mubr.bf16.mxu0 0
  %4838 = vmatmul.mubr.bf16.gmra.mxu0 %v4585
  %v4839 = vpop.f32.mrf.mxu0
  %v4840 = vadd.f32 %v4400, %v4839
  %v4841 = vpop.f32.mrf.mxu0
  %v4842 = vpop.f32.mrf.mxu0
  %v4843 = vadd.f32 %v4400, %v4842
  %v4844 = vpop.f32.mrf.mxu0
  %4845 = vmatprep.mubr.bf16.mxu0 0
  %4846 = vmatmul.mubr.bf16.gmra.mxu0 %v4588
  %v4847 = vpop.f32.mrf.mxu0
  %v4848 = vadd.f32 %v4400, %v4847
  %v4849 = vpop.f32.mrf.mxu0
  %v4850 = vpop.f32.mrf.mxu0
  %v4851 = vadd.f32 %v4400, %v4850
  %v4852 = vpop.f32.mrf.mxu0
  %4853 = vmatprep.mubr.bf16.mxu0 0
  %4854 = vmatmul.mubr.bf16.gmra.mxu0 %v4591
  %v4855 = vpop.f32.mrf.mxu0
  %v4856 = vadd.f32 %v4400, %v4855
  %v4857 = vpop.f32.mrf.mxu0
  %v4858 = vpop.f32.mrf.mxu0
  %v4859 = vadd.f32 %v4400, %v4858
  %v4860 = vpop.f32.mrf.mxu0
  %4861 = vmatprep.mubr.bf16.mxu0 0
  %4862 = vmatmul.mubr.bf16.gmra.mxu0 %v4594
  %v4863 = vpop.f32.mrf.mxu0
  %v4864 = vadd.f32 %v4400, %v4863
  %v4865 = vpop.f32.mrf.mxu0
  %v4866 = vpop.f32.mrf.mxu0
  %v4867 = vadd.f32 %v4400, %v4866
  %v4868 = vpop.f32.mrf.mxu0
  %4869 = vmatprep.mubr.bf16.mxu0 0
  %4870 = vmatmul.mubr.bf16.gmra.mxu0 %v4597
  %v4871 = vpop.f32.mrf.mxu0
  %v4872 = vadd.f32 %v4400, %v4871
  %v4873 = vpop.f32.mrf.mxu0
  %v4874 = vpop.f32.mrf.mxu0
  %v4875 = vadd.f32 %v4400, %v4874
  %v4876 = vpop.f32.mrf.mxu0
  %4877 = vmatprep.mubr.bf16.mxu0 0
  %4878 = vmatmul.mubr.bf16.gmra.mxu0 %v4600
  %v4879 = vpop.f32.mrf.mxu0
  %v4880 = vadd.f32 %v4400, %v4879
  %v4881 = vpop.f32.mrf.mxu0
  %v4882 = vpop.f32.mrf.mxu0
  %v4883 = vadd.f32 %v4400, %v4882
  %v4884 = vpop.f32.mrf.mxu0
  %4885 = vmatprep.mubr.bf16.mxu0 0
  %4886 = vmatmul.mubr.bf16.gmra.mxu0 %v4603
  %v4887 = vpop.f32.mrf.mxu0
  %v4888 = vadd.f32 %v4400, %v4887
  %v4889 = vpop.f32.mrf.mxu0
  %v4890 = vpop.f32.mrf.mxu0
  %v4891 = vadd.f32 %v4400, %v4890
  %v4892 = vpop.f32.mrf.mxu0
  %4893 = vdwg.mxu0
  %v4894 = vsel %vm1036, %v4640, 0.0
  %v4895 = vsel %vm1036, %v4643, 0.0
  %v4896 = vadd.f32 %v4894, %v4895
  %v4897 = vsel %vm1036, %v4648, 0.0
  %v4898 = vadd.f32 %v4896, %v4897
  %v4899 = vsel %vm1036, %v4651, 0.0
  %v4900 = vadd.f32 %v4898, %v4899
  %v4901 = vsel %vm1036, %v4656, 0.0
  %v4902 = vadd.f32 %v4900, %v4901
  %v4903 = vsel %vm1036, %v4659, 0.0
  %v4904 = vadd.f32 %v4902, %v4903
  %v4905 = vsel %vm1036, %v4664, 0.0
  %v4906 = vadd.f32 %v4904, %v4905
  %v4907 = vsel %vm1036, %v4667, 0.0
  %v4908 = vadd.f32 %v4906, %v4907
  %v4909 = vsel %vm1036, %v4672, 0.0
  %v4910 = vadd.f32 %v4908, %v4909
  %v4911 = vsel %vm1036, %v4675, 0.0
  %v4912 = vadd.f32 %v4910, %v4911
  %v4913 = vsel %vm1036, %v4680, 0.0
  %v4914 = vadd.f32 %v4912, %v4913
  %v4915 = vsel %vm1036, %v4683, 0.0
  %v4916 = vadd.f32 %v4914, %v4915
  %v4917 = vsel %vm1036, %v4688, 0.0
  %v4918 = vadd.f32 %v4916, %v4917
  %v4919 = vsel %vm1036, %v4691, 0.0
  %v4920 = vadd.f32 %v4918, %v4919
  %v4921 = vsel %vm1036, %v4696, 0.0
  %v4922 = vadd.f32 %v4920, %v4921
  %v4923 = vsel %vm1036, %v4699, 0.0
  %v4924 = vadd.f32 %v4922, %v4923
  %v4925 = vsel %vm1036, %v4704, 0.0
  %v4926 = vadd.f32 %v4924, %v4925
  %v4927 = vsel %vm1036, %v4707, 0.0
  %v4928 = vadd.f32 %v4926, %v4927
  %v4929 = vsel %vm1036, %v4712, 0.0
  %v4930 = vadd.f32 %v4928, %v4929
  %v4931 = vsel %vm1036, %v4715, 0.0
  %v4932 = vadd.f32 %v4930, %v4931
  %v4933 = vsel %vm1036, %v4720, 0.0
  %v4934 = vadd.f32 %v4932, %v4933
  %v4935 = vsel %vm1036, %v4723, 0.0
  %v4936 = vadd.f32 %v4934, %v4935
  %v4937 = vsel %vm1036, %v4728, 0.0
  %v4938 = vadd.f32 %v4936, %v4937
  %v4939 = vsel %vm1036, %v4731, 0.0
  %v4940 = vadd.f32 %v4938, %v4939
  %v4941 = vsel %vm1036, %v4736, 0.0
  %v4942 = vadd.f32 %v4940, %v4941
  %v4943 = vsel %vm1036, %v4739, 0.0
  %v4944 = vadd.f32 %v4942, %v4943
  %v4945 = vsel %vm1036, %v4744, 0.0
  %v4946 = vadd.f32 %v4944, %v4945
  %v4947 = vsel %vm1036, %v4747, 0.0
  %v4948 = vadd.f32 %v4946, %v4947
  %v4949 = vsel %vm1036, %v4752, 0.0
  %v4950 = vadd.f32 %v4948, %v4949
  %v4951 = vsel %vm1036, %v4755, 0.0
  %v4952 = vadd.f32 %v4950, %v4951
  %v4953 = vsel %vm1036, %v4760, 0.0
  %v4954 = vadd.f32 %v4952, %v4953
  %v4955 = vsel %vm1036, %v4763, 0.0
  %v4956 = vadd.f32 %v4954, %v4955
  %v4957 = vsel %vm1036, %v4768, 0.0
  %v4958 = vadd.f32 %v4956, %v4957
  %v4959 = vsel %vm1036, %v4771, 0.0
  %v4960 = vadd.f32 %v4958, %v4959
  %v4961 = vsel %vm1036, %v4776, 0.0
  %v4962 = vadd.f32 %v4960, %v4961
  %v4963 = vsel %vm1036, %v4779, 0.0
  %v4964 = vadd.f32 %v4962, %v4963
  %v4965 = vsel %vm1036, %v4784, 0.0
  %v4966 = vadd.f32 %v4964, %v4965
  %v4967 = vsel %vm1036, %v4787, 0.0
  %v4968 = vadd.f32 %v4966, %v4967
  %v4969 = vsel %vm1036, %v4792, 0.0
  %v4970 = vadd.f32 %v4968, %v4969
  %v4971 = vsel %vm1036, %v4795, 0.0
  %v4972 = vadd.f32 %v4970, %v4971
  %v4973 = vsel %vm1036, %v4800, 0.0
  %v4974 = vadd.f32 %v4972, %v4973
  %v4975 = vsel %vm1036, %v4803, 0.0
  %v4976 = vadd.f32 %v4974, %v4975
  %v4977 = vsel %vm1036, %v4808, 0.0
  %v4978 = vadd.f32 %v4976, %v4977
  %v4979 = vsel %vm1036, %v4811, 0.0
  %v4980 = vadd.f32 %v4978, %v4979
  %v4981 = vsel %vm1036, %v4816, 0.0
  %v4982 = vadd.f32 %v4980, %v4981
  %v4983 = vsel %vm1036, %v4819, 0.0
  %v4984 = vadd.f32 %v4982, %v4983
  %v4985 = vsel %vm1036, %v4824, 0.0
  %v4986 = vadd.f32 %v4984, %v4985
  %v4987 = vsel %vm1036, %v4827, 0.0
  %v4988 = vadd.f32 %v4986, %v4987
  %v4989 = vsel %vm1036, %v4832, 0.0
  %v4990 = vadd.f32 %v4988, %v4989
  %v4991 = vsel %vm1036, %v4835, 0.0
  %v4992 = vadd.f32 %v4990, %v4991
  %v4993 = vsel %vm1036, %v4840, 0.0
  %v4994 = vadd.f32 %v4992, %v4993
  %v4995 = vsel %vm1036, %v4843, 0.0
  %v4996 = vadd.f32 %v4994, %v4995
  %v4997 = vsel %vm1036, %v4848, 0.0
  %v4998 = vadd.f32 %v4996, %v4997
  %v4999 = vsel %vm1036, %v4851, 0.0
  %v5000 = vadd.f32 %v4998, %v4999
  %v5001 = vsel %vm1036, %v4856, 0.0
  %v5002 = vadd.f32 %v5000, %v5001
  %v5003 = vsel %vm1036, %v4859, 0.0
  %v5004 = vadd.f32 %v5002, %v5003
  %v5005 = vsel %vm1036, %v4864, 0.0
  %v5006 = vadd.f32 %v5004, %v5005
  %v5007 = vsel %vm1036, %v4867, 0.0
  %v5008 = vadd.f32 %v5006, %v5007
  %v5009 = vsel %vm1036, %v4872, 0.0
  %v5010 = vadd.f32 %v5008, %v5009
  %v5011 = vsel %vm1036, %v4875, 0.0
  %v5012 = vadd.f32 %v5010, %v5011
  %v5013 = vsel %vm1036, %v4880, 0.0
  %v5014 = vadd.f32 %v5012, %v5013
  %v5015 = vsel %vm1036, %v4883, 0.0
  %v5016 = vadd.f32 %v5014, %v5015
  %v5017 = vsel %vm1036, %v4888, 0.0
  %v5018 = vadd.f32 %v5016, %v5017
  %v5019 = vsel %vm1036, %v4891, 0.0
  %v5020 = vadd.f32 %v5018, %v5019
  %v5021 = vrot.slane %v5020, 4
  %v5022 = vadd.f32 %v5020, %v5021
  %v5023 = vrot.slane %v5022, 2
  %v5024 = vadd.f32 %v5022, %v5023
  %v5025 = vrot.slane %v5024, 1
  %v5026 = vadd.f32 %v5024, %v5025
  %v5027 = vmul.f32 %v5026, %v1877
  %v5028 = vsub.f32 %v4640, %v5027
  %v5029 = vsub.f32 %v4643, %v5027
  %v5030 = vsub.f32 %v4648, %v5027
  %v5031 = vsub.f32 %v4651, %v5027
  %v5032 = vsub.f32 %v4656, %v5027
  %v5033 = vsub.f32 %v4659, %v5027
  %v5034 = vsub.f32 %v4664, %v5027
  %v5035 = vsub.f32 %v4667, %v5027
  %v5036 = vsub.f32 %v4672, %v5027
  %v5037 = vsub.f32 %v4675, %v5027
  %v5038 = vsub.f32 %v4680, %v5027
  %v5039 = vsub.f32 %v4683, %v5027
  %v5040 = vsub.f32 %v4688, %v5027
  %v5041 = vsub.f32 %v4691, %v5027
  %v5042 = vsub.f32 %v4696, %v5027
  %v5043 = vsub.f32 %v4699, %v5027
  %v5044 = vsub.f32 %v4704, %v5027
  %v5045 = vsub.f32 %v4707, %v5027
  %v5046 = vsub.f32 %v4712, %v5027
  %v5047 = vsub.f32 %v4715, %v5027
  %v5048 = vsub.f32 %v4720, %v5027
  %v5049 = vsub.f32 %v4723, %v5027
  %v5050 = vsub.f32 %v4728, %v5027
  %v5051 = vsub.f32 %v4731, %v5027
  %v5052 = vsub.f32 %v4736, %v5027
  %v5053 = vsub.f32 %v4739, %v5027
  %v5054 = vsub.f32 %v4744, %v5027
  %v5055 = vsub.f32 %v4747, %v5027
  %v5056 = vsub.f32 %v4752, %v5027
  %v5057 = vsub.f32 %v4755, %v5027
  %v5058 = vsub.f32 %v4760, %v5027
  %v5059 = vsub.f32 %v4763, %v5027
  %v5060 = vsub.f32 %v4768, %v5027
  %v5061 = vsub.f32 %v4771, %v5027
  %v5062 = vsub.f32 %v4776, %v5027
  %v5063 = vsub.f32 %v4779, %v5027
  %v5064 = vsub.f32 %v4784, %v5027
  %v5065 = vsub.f32 %v4787, %v5027
  %v5066 = vsub.f32 %v4792, %v5027
  %v5067 = vsub.f32 %v4795, %v5027
  %v5068 = vsub.f32 %v4800, %v5027
  %v5069 = vsub.f32 %v4803, %v5027
  %v5070 = vsub.f32 %v4808, %v5027
  %v5071 = vsub.f32 %v4811, %v5027
  %v5072 = vsub.f32 %v4816, %v5027
  %v5073 = vsub.f32 %v4819, %v5027
  %v5074 = vsub.f32 %v4824, %v5027
  %v5075 = vsub.f32 %v4827, %v5027
  %v5076 = vsub.f32 %v4832, %v5027
  %v5077 = vsub.f32 %v4835, %v5027
  %v5078 = vsub.f32 %v4840, %v5027
  %v5079 = vsub.f32 %v4843, %v5027
  %v5080 = vsub.f32 %v4848, %v5027
  %v5081 = vsub.f32 %v4851, %v5027
  %v5082 = vsub.f32 %v4856, %v5027
  %v5083 = vsub.f32 %v4859, %v5027
  %v5084 = vsub.f32 %v4864, %v5027
  %v5085 = vsub.f32 %v4867, %v5027
  %v5086 = vsub.f32 %v4872, %v5027
  %v5087 = vsub.f32 %v4875, %v5027
  %v5088 = vsub.f32 %v4880, %v5027
  %v5089 = vsub.f32 %v4883, %v5027
  %v5090 = vsub.f32 %v4888, %v5027
  %v5091 = vsub.f32 %v4891, %v5027
  %v5092 = vmul.f32 %v5028, %v5028
  %v5093 = vmul.f32 %v5029, %v5029
  %v5094 = vmul.f32 %v5030, %v5030
  %v5095 = vmul.f32 %v5031, %v5031
  %v5096 = vmul.f32 %v5032, %v5032
  %v5097 = vmul.f32 %v5033, %v5033
  %v5098 = vmul.f32 %v5034, %v5034
  %v5099 = vmul.f32 %v5035, %v5035
  %v5100 = vmul.f32 %v5036, %v5036
  %v5101 = vmul.f32 %v5037, %v5037
  %v5102 = vmul.f32 %v5038, %v5038
  %v5103 = vmul.f32 %v5039, %v5039
  %v5104 = vmul.f32 %v5040, %v5040
  %v5105 = vmul.f32 %v5041, %v5041
  %v5106 = vmul.f32 %v5042, %v5042
  %v5107 = vmul.f32 %v5043, %v5043
  %v5108 = vmul.f32 %v5044, %v5044
  %v5109 = vmul.f32 %v5045, %v5045
  %v5110 = vmul.f32 %v5046, %v5046
  %v5111 = vmul.f32 %v5047, %v5047
  %v5112 = vmul.f32 %v5048, %v5048
  %v5113 = vmul.f32 %v5049, %v5049
  %v5114 = vmul.f32 %v5050, %v5050
  %v5115 = vmul.f32 %v5051, %v5051
  %v5116 = vmul.f32 %v5052, %v5052
  %v5117 = vmul.f32 %v5053, %v5053
  %v5118 = vmul.f32 %v5054, %v5054
  %v5119 = vmul.f32 %v5055, %v5055
  %v5120 = vmul.f32 %v5056, %v5056
  %v5121 = vmul.f32 %v5057, %v5057
  %v5122 = vmul.f32 %v5058, %v5058
  %v5123 = vmul.f32 %v5059, %v5059
  %v5124 = vmul.f32 %v5060, %v5060
  %v5125 = vmul.f32 %v5061, %v5061
  %v5126 = vmul.f32 %v5062, %v5062
  %v5127 = vmul.f32 %v5063, %v5063
  %v5128 = vmul.f32 %v5064, %v5064
  %v5129 = vmul.f32 %v5065, %v5065
  %v5130 = vmul.f32 %v5066, %v5066
  %v5131 = vmul.f32 %v5067, %v5067
  %v5132 = vmul.f32 %v5068, %v5068
  %v5133 = vmul.f32 %v5069, %v5069
  %v5134 = vmul.f32 %v5070, %v5070
  %v5135 = vmul.f32 %v5071, %v5071
  %v5136 = vmul.f32 %v5072, %v5072
  %v5137 = vmul.f32 %v5073, %v5073
  %v5138 = vmul.f32 %v5074, %v5074
  %v5139 = vmul.f32 %v5075, %v5075
  %v5140 = vmul.f32 %v5076, %v5076
  %v5141 = vmul.f32 %v5077, %v5077
  %v5142 = vmul.f32 %v5078, %v5078
  %v5143 = vmul.f32 %v5079, %v5079
  %v5144 = vmul.f32 %v5080, %v5080
  %v5145 = vmul.f32 %v5081, %v5081
  %v5146 = vmul.f32 %v5082, %v5082
  %v5147 = vmul.f32 %v5083, %v5083
  %v5148 = vmul.f32 %v5084, %v5084
  %v5149 = vmul.f32 %v5085, %v5085
  %v5150 = vmul.f32 %v5086, %v5086
  %v5151 = vmul.f32 %v5087, %v5087
  %v5152 = vmul.f32 %v5088, %v5088
  %v5153 = vmul.f32 %v5089, %v5089
  %v5154 = vmul.f32 %v5090, %v5090
  %v5155 = vmul.f32 %v5091, %v5091
  %v5156 = vsel %vm1036, %v5092, 0.0
  %v5157 = vsel %vm1036, %v5093, 0.0
  %v5158 = vadd.f32 %v5156, %v5157
  %v5159 = vsel %vm1036, %v5094, 0.0
  %v5160 = vadd.f32 %v5158, %v5159
  %v5161 = vsel %vm1036, %v5095, 0.0
  %v5162 = vadd.f32 %v5160, %v5161
  %v5163 = vsel %vm1036, %v5096, 0.0
  %v5164 = vadd.f32 %v5162, %v5163
  %v5165 = vsel %vm1036, %v5097, 0.0
  %v5166 = vadd.f32 %v5164, %v5165
  %v5167 = vsel %vm1036, %v5098, 0.0
  %v5168 = vadd.f32 %v5166, %v5167
  %v5169 = vsel %vm1036, %v5099, 0.0
  %v5170 = vadd.f32 %v5168, %v5169
  %v5171 = vsel %vm1036, %v5100, 0.0
  %v5172 = vadd.f32 %v5170, %v5171
  %v5173 = vsel %vm1036, %v5101, 0.0
  %v5174 = vadd.f32 %v5172, %v5173
  %v5175 = vsel %vm1036, %v5102, 0.0
  %v5176 = vadd.f32 %v5174, %v5175
  %v5177 = vsel %vm1036, %v5103, 0.0
  %v5178 = vadd.f32 %v5176, %v5177
  %v5179 = vsel %vm1036, %v5104, 0.0
  %v5180 = vadd.f32 %v5178, %v5179
  %v5181 = vsel %vm1036, %v5105, 0.0
  %v5182 = vadd.f32 %v5180, %v5181
  %v5183 = vsel %vm1036, %v5106, 0.0
  %v5184 = vadd.f32 %v5182, %v5183
  %v5185 = vsel %vm1036, %v5107, 0.0
  %v5186 = vadd.f32 %v5184, %v5185
  %v5187 = vsel %vm1036, %v5108, 0.0
  %v5188 = vadd.f32 %v5186, %v5187
  %v5189 = vsel %vm1036, %v5109, 0.0
  %v5190 = vadd.f32 %v5188, %v5189
  %v5191 = vsel %vm1036, %v5110, 0.0
  %v5192 = vadd.f32 %v5190, %v5191
  %v5193 = vsel %vm1036, %v5111, 0.0
  %v5194 = vadd.f32 %v5192, %v5193
  %v5195 = vsel %vm1036, %v5112, 0.0
  %v5196 = vadd.f32 %v5194, %v5195
  %v5197 = vsel %vm1036, %v5113, 0.0
  %v5198 = vadd.f32 %v5196, %v5197
  %v5199 = vsel %vm1036, %v5114, 0.0
  %v5200 = vadd.f32 %v5198, %v5199
  %v5201 = vsel %vm1036, %v5115, 0.0
  %v5202 = vadd.f32 %v5200, %v5201
  %v5203 = vsel %vm1036, %v5116, 0.0
  %v5204 = vadd.f32 %v5202, %v5203
  %v5205 = vsel %vm1036, %v5117, 0.0
  %v5206 = vadd.f32 %v5204, %v5205
  %v5207 = vsel %vm1036, %v5118, 0.0
  %v5208 = vadd.f32 %v5206, %v5207
  %v5209 = vsel %vm1036, %v5119, 0.0
  %v5210 = vadd.f32 %v5208, %v5209
  %v5211 = vsel %vm1036, %v5120, 0.0
  %v5212 = vadd.f32 %v5210, %v5211
  %v5213 = vsel %vm1036, %v5121, 0.0
  %v5214 = vadd.f32 %v5212, %v5213
  %v5215 = vsel %vm1036, %v5122, 0.0
  %v5216 = vadd.f32 %v5214, %v5215
  %v5217 = vsel %vm1036, %v5123, 0.0
  %v5218 = vadd.f32 %v5216, %v5217
  %v5219 = vsel %vm1036, %v5124, 0.0
  %v5220 = vadd.f32 %v5218, %v5219
  %v5221 = vsel %vm1036, %v5125, 0.0
  %v5222 = vadd.f32 %v5220, %v5221
  %v5223 = vsel %vm1036, %v5126, 0.0
  %v5224 = vadd.f32 %v5222, %v5223
  %v5225 = vsel %vm1036, %v5127, 0.0
  %v5226 = vadd.f32 %v5224, %v5225
  %v5227 = vsel %vm1036, %v5128, 0.0
  %v5228 = vadd.f32 %v5226, %v5227
  %v5229 = vsel %vm1036, %v5129, 0.0
  %v5230 = vadd.f32 %v5228, %v5229
  %v5231 = vsel %vm1036, %v5130, 0.0
  %v5232 = vadd.f32 %v5230, %v5231
  %v5233 = vsel %vm1036, %v5131, 0.0
  %v5234 = vadd.f32 %v5232, %v5233
  %v5235 = vsel %vm1036, %v5132, 0.0
  %v5236 = vadd.f32 %v5234, %v5235
  %v5237 = vsel %vm1036, %v5133, 0.0
  %v5238 = vadd.f32 %v5236, %v5237
  %v5239 = vsel %vm1036, %v5134, 0.0
  %v5240 = vadd.f32 %v5238, %v5239
  %v5241 = vsel %vm1036, %v5135, 0.0
  %v5242 = vadd.f32 %v5240, %v5241
  %v5243 = vsel %vm1036, %v5136, 0.0
  %v5244 = vadd.f32 %v5242, %v5243
  %v5245 = vsel %vm1036, %v5137, 0.0
  %v5246 = vadd.f32 %v5244, %v5245
  %v5247 = vsel %vm1036, %v5138, 0.0
  %v5248 = vadd.f32 %v5246, %v5247
  %v5249 = vsel %vm1036, %v5139, 0.0
  %v5250 = vadd.f32 %v5248, %v5249
  %v5251 = vsel %vm1036, %v5140, 0.0
  %v5252 = vadd.f32 %v5250, %v5251
  %v5253 = vsel %vm1036, %v5141, 0.0
  %v5254 = vadd.f32 %v5252, %v5253
  %v5255 = vsel %vm1036, %v5142, 0.0
  %v5256 = vadd.f32 %v5254, %v5255
  %v5257 = vsel %vm1036, %v5143, 0.0
  %v5258 = vadd.f32 %v5256, %v5257
  %v5259 = vsel %vm1036, %v5144, 0.0
  %v5260 = vadd.f32 %v5258, %v5259
  %v5261 = vsel %vm1036, %v5145, 0.0
  %v5262 = vadd.f32 %v5260, %v5261
  %v5263 = vsel %vm1036, %v5146, 0.0
  %v5264 = vadd.f32 %v5262, %v5263
  %v5265 = vsel %vm1036, %v5147, 0.0
  %v5266 = vadd.f32 %v5264, %v5265
  %v5267 = vsel %vm1036, %v5148, 0.0
  %v5268 = vadd.f32 %v5266, %v5267
  %v5269 = vsel %vm1036, %v5149, 0.0
  %v5270 = vadd.f32 %v5268, %v5269
  %v5271 = vsel %vm1036, %v5150, 0.0
  %v5272 = vadd.f32 %v5270, %v5271
  %v5273 = vsel %vm1036, %v5151, 0.0
  %v5274 = vadd.f32 %v5272, %v5273
  %v5275 = vsel %vm1036, %v5152, 0.0
  %v5276 = vadd.f32 %v5274, %v5275
  %v5277 = vsel %vm1036, %v5153, 0.0
  %v5278 = vadd.f32 %v5276, %v5277
  %v5279 = vsel %vm1036, %v5154, 0.0
  %v5280 = vadd.f32 %v5278, %v5279
  %v5281 = vsel %vm1036, %v5155, 0.0
  %v5282 = vadd.f32 %v5280, %v5281
  %v5283 = vrot.slane %v5282, 4
  %v5284 = vadd.f32 %v5282, %v5283
  %v5285 = vrot.slane %v5284, 2
  %v5286 = vadd.f32 %v5284, %v5285
  %v5287 = vrot.slane %v5286, 1
  %v5288 = vadd.f32 %v5286, %v5287
  %v5289 = vmul.f32 %v5288, %v1877
  %v5290 = vadd.f32 %v5289, 1e-05
  %v5291 = vrsqrt.pop %v5290
  %v5292 = vmul.f32 %v5028, %v5291
  %v5293 = vmul.f32 %v5029, %v5291
  %v5294 = vmul.f32 %v5030, %v5291
  %v5295 = vmul.f32 %v5031, %v5291
  %v5296 = vmul.f32 %v5032, %v5291
  %v5297 = vmul.f32 %v5033, %v5291
  %v5298 = vmul.f32 %v5034, %v5291
  %v5299 = vmul.f32 %v5035, %v5291
  %v5300 = vmul.f32 %v5036, %v5291
  %v5301 = vmul.f32 %v5037, %v5291
  %v5302 = vmul.f32 %v5038, %v5291
  %v5303 = vmul.f32 %v5039, %v5291
  %v5304 = vmul.f32 %v5040, %v5291
  %v5305 = vmul.f32 %v5041, %v5291
  %v5306 = vmul.f32 %v5042, %v5291
  %v5307 = vmul.f32 %v5043, %v5291
  %v5308 = vmul.f32 %v5044, %v5291
  %v5309 = vmul.f32 %v5045, %v5291
  %v5310 = vmul.f32 %v5046, %v5291
  %v5311 = vmul.f32 %v5047, %v5291
  %v5312 = vmul.f32 %v5048, %v5291
  %v5313 = vmul.f32 %v5049, %v5291
  %v5314 = vmul.f32 %v5050, %v5291
  %v5315 = vmul.f32 %v5051, %v5291
  %v5316 = vmul.f32 %v5052, %v5291
  %v5317 = vmul.f32 %v5053, %v5291
  %v5318 = vmul.f32 %v5054, %v5291
  %v5319 = vmul.f32 %v5055, %v5291
  %v5320 = vmul.f32 %v5056, %v5291
  %v5321 = vmul.f32 %v5057, %v5291
  %v5322 = vmul.f32 %v5058, %v5291
  %v5323 = vmul.f32 %v5059, %v5291
  %v5324 = vmul.f32 %v5060, %v5291
  %v5325 = vmul.f32 %v5061, %v5291
  %v5326 = vmul.f32 %v5062, %v5291
  %v5327 = vmul.f32 %v5063, %v5291
  %v5328 = vmul.f32 %v5064, %v5291
  %v5329 = vmul.f32 %v5065, %v5291
  %v5330 = vmul.f32 %v5066, %v5291
  %v5331 = vmul.f32 %v5067, %v5291
  %v5332 = vmul.f32 %v5068, %v5291
  %v5333 = vmul.f32 %v5069, %v5291
  %v5334 = vmul.f32 %v5070, %v5291
  %v5335 = vmul.f32 %v5071, %v5291
  %v5336 = vmul.f32 %v5072, %v5291
  %v5337 = vmul.f32 %v5073, %v5291
  %v5338 = vmul.f32 %v5074, %v5291
  %v5339 = vmul.f32 %v5075, %v5291
  %v5340 = vmul.f32 %v5076, %v5291
  %v5341 = vmul.f32 %v5077, %v5291
  %v5342 = vmul.f32 %v5078, %v5291
  %v5343 = vmul.f32 %v5079, %v5291
  %v5344 = vmul.f32 %v5080, %v5291
  %v5345 = vmul.f32 %v5081, %v5291
  %v5346 = vmul.f32 %v5082, %v5291
  %v5347 = vmul.f32 %v5083, %v5291
  %v5348 = vmul.f32 %v5084, %v5291
  %v5349 = vmul.f32 %v5085, %v5291
  %v5350 = vmul.f32 %v5086, %v5291
  %v5351 = vmul.f32 %v5087, %v5291
  %v5352 = vmul.f32 %v5088, %v5291
  %v5353 = vmul.f32 %v5089, %v5291
  %v5354 = vmul.f32 %v5090, %v5291
  %v5355 = vmul.f32 %v5091, %v5291
  %v5356 = vld [vmem:[%s7 + $0x7] sm:$0x1]
  %v5357 = vlaneseq
  %v5358 = vshrl.u32 %v5357, 7
  %v5359 = vsub.s32 0, %v5358
  %v5360 = vrot.slane %v5356, %v5359
  %v5361 = vmul.f32 %v5292, %v5360
  %v5362 = vmul.f32 %v5293, %v5360
  %v5363 = vmul.f32 %v5294, %v5360
  %v5364 = vmul.f32 %v5295, %v5360
  %v5365 = vmul.f32 %v5296, %v5360
  %v5366 = vmul.f32 %v5297, %v5360
  %v5367 = vmul.f32 %v5298, %v5360
  %v5368 = vmul.f32 %v5299, %v5360
  %v5369 = vmul.f32 %v5300, %v5360
  %v5370 = vmul.f32 %v5301, %v5360
  %v5371 = vmul.f32 %v5302, %v5360
  %v5372 = vmul.f32 %v5303, %v5360
  %v5373 = vmul.f32 %v5304, %v5360
  %v5374 = vmul.f32 %v5305, %v5360
  %v5375 = vmul.f32 %v5306, %v5360
  %v5376 = vmul.f32 %v5307, %v5360
  %v5377 = vmul.f32 %v5308, %v5360
  %v5378 = vmul.f32 %v5309, %v5360
  %v5379 = vmul.f32 %v5310, %v5360
  %v5380 = vmul.f32 %v5311, %v5360
  %v5381 = vmul.f32 %v5312, %v5360
  %v5382 = vmul.f32 %v5313, %v5360
  %v5383 = vmul.f32 %v5314, %v5360
  %v5384 = vmul.f32 %v5315, %v5360
  %v5385 = vmul.f32 %v5316, %v5360
  %v5386 = vmul.f32 %v5317, %v5360
  %v5387 = vmul.f32 %v5318, %v5360
  %v5388 = vmul.f32 %v5319, %v5360
  %v5389 = vmul.f32 %v5320, %v5360
  %v5390 = vmul.f32 %v5321, %v5360
  %v5391 = vmul.f32 %v5322, %v5360
  %v5392 = vmul.f32 %v5323, %v5360
  %v5393 = vmul.f32 %v5324, %v5360
  %v5394 = vmul.f32 %v5325, %v5360
  %v5395 = vmul.f32 %v5326, %v5360
  %v5396 = vmul.f32 %v5327, %v5360
  %v5397 = vmul.f32 %v5328, %v5360
  %v5398 = vmul.f32 %v5329, %v5360
  %v5399 = vmul.f32 %v5330, %v5360
  %v5400 = vmul.f32 %v5331, %v5360
  %v5401 = vmul.f32 %v5332, %v5360
  %v5402 = vmul.f32 %v5333, %v5360
  %v5403 = vmul.f32 %v5334, %v5360
  %v5404 = vmul.f32 %v5335, %v5360
  %v5405 = vmul.f32 %v5336, %v5360
  %v5406 = vmul.f32 %v5337, %v5360
  %v5407 = vmul.f32 %v5338, %v5360
  %v5408 = vmul.f32 %v5339, %v5360
  %v5409 = vmul.f32 %v5340, %v5360
  %v5410 = vmul.f32 %v5341, %v5360
  %v5411 = vmul.f32 %v5342, %v5360
  %v5412 = vmul.f32 %v5343, %v5360
  %v5413 = vmul.f32 %v5344, %v5360
  %v5414 = vmul.f32 %v5345, %v5360
  %v5415 = vmul.f32 %v5346, %v5360
  %v5416 = vmul.f32 %v5347, %v5360
  %v5417 = vmul.f32 %v5348, %v5360
  %v5418 = vmul.f32 %v5349, %v5360
  %v5419 = vmul.f32 %v5350, %v5360
  %v5420 = vmul.f32 %v5351, %v5360
  %v5421 = vmul.f32 %v5352, %v5360
  %v5422 = vmul.f32 %v5353, %v5360
  %v5423 = vmul.f32 %v5354, %v5360
  %v5424 = vmul.f32 %v5355, %v5360
  %v5425 = vld [vmem:[%s7 + $0x8] sm:$0x1]
  %v5426 = vlaneseq
  %v5427 = vshrl.u32 %v5426, 7
  %v5428 = vsub.s32 0, %v5427
  %v5429 = vrot.slane %v5425, %v5428
  %v5430 = vadd.f32 %v5361, %v5429
  %v5431 = vadd.f32 %v5362, %v5429
  %v5432 = vadd.f32 %v5363, %v5429
  %v5433 = vadd.f32 %v5364, %v5429
  %v5434 = vadd.f32 %v5365, %v5429
  %v5435 = vadd.f32 %v5366, %v5429
  %v5436 = vadd.f32 %v5367, %v5429
  %v5437 = vadd.f32 %v5368, %v5429
  %v5438 = vadd.f32 %v5369, %v5429
  %v5439 = vadd.f32 %v5370, %v5429
  %v5440 = vadd.f32 %v5371, %v5429
  %v5441 = vadd.f32 %v5372, %v5429
  %v5442 = vadd.f32 %v5373, %v5429
  %v5443 = vadd.f32 %v5374, %v5429
  %v5444 = vadd.f32 %v5375, %v5429
  %v5445 = vadd.f32 %v5376, %v5429
  %v5446 = vadd.f32 %v5377, %v5429
  %v5447 = vadd.f32 %v5378, %v5429
  %v5448 = vadd.f32 %v5379, %v5429
  %v5449 = vadd.f32 %v5380, %v5429
  %v5450 = vadd.f32 %v5381, %v5429
  %v5451 = vadd.f32 %v5382, %v5429
  %v5452 = vadd.f32 %v5383, %v5429
  %v5453 = vadd.f32 %v5384, %v5429
  %v5454 = vadd.f32 %v5385, %v5429
  %v5455 = vadd.f32 %v5386, %v5429
  %v5456 = vadd.f32 %v5387, %v5429
  %v5457 = vadd.f32 %v5388, %v5429
  %v5458 = vadd.f32 %v5389, %v5429
  %v5459 = vadd.f32 %v5390, %v5429
  %v5460 = vadd.f32 %v5391, %v5429
  %v5461 = vadd.f32 %v5392, %v5429
  %v5462 = vadd.f32 %v5393, %v5429
  %v5463 = vadd.f32 %v5394, %v5429
  %v5464 = vadd.f32 %v5395, %v5429
  %v5465 = vadd.f32 %v5396, %v5429
  %v5466 = vadd.f32 %v5397, %v5429
  %v5467 = vadd.f32 %v5398, %v5429
  %v5468 = vadd.f32 %v5399, %v5429
  %v5469 = vadd.f32 %v5400, %v5429
  %v5470 = vadd.f32 %v5401, %v5429
  %v5471 = vadd.f32 %v5402, %v5429
  %v5472 = vadd.f32 %v5403, %v5429
  %v5473 = vadd.f32 %v5404, %v5429
  %v5474 = vadd.f32 %v5405, %v5429
  %v5475 = vadd.f32 %v5406, %v5429
  %v5476 = vadd.f32 %v5407, %v5429
  %v5477 = vadd.f32 %v5408, %v5429
  %v5478 = vadd.f32 %v5409, %v5429
  %v5479 = vadd.f32 %v5410, %v5429
  %v5480 = vadd.f32 %v5411, %v5429
  %v5481 = vadd.f32 %v5412, %v5429
  %v5482 = vadd.f32 %v5413, %v5429
  %v5483 = vadd.f32 %v5414, %v5429
  %v5484 = vadd.f32 %v5415, %v5429
  %v5485 = vadd.f32 %v5416, %v5429
  %v5486 = vadd.f32 %v5417, %v5429
  %v5487 = vadd.f32 %v5418, %v5429
  %v5488 = vadd.f32 %v5419, %v5429
  %v5489 = vadd.f32 %v5420, %v5429
  %v5490 = vadd.f32 %v5421, %v5429
  %v5491 = vadd.f32 %v5422, %v5429
  %v5492 = vadd.f32 %v5423, %v5429
  %v5493 = vadd.f32 %v5424, %v5429
  %v5494 = vld [vmem:[%s2] sm:$0xff]
  %v5495 = vld [vmem:[%s2 + $0x8] sm:$0xff]
  %v5496 = vld [vmem:[%s2 + $0x10] sm:$0xff]
  %v5497 = vld [vmem:[%s2 + $0x18] sm:$0xff]
  %v5498 = vld [vmem:[%s2 + $0x20] sm:$0xff]
  %v5499 = vld [vmem:[%s2 + $0x28] sm:$0xff]
  %v5500 = vld [vmem:[%s2 + $0x30] sm:$0xff]
  %v5501 = vld [vmem:[%s2 + $0x38] sm:$0xff]
  %v5502 = vld [vmem:[%s2 + $0x40] sm:$0xff]
  %v5503 = vld [vmem:[%s2 + $0x48] sm:$0xff]
  %v5504 = vld [vmem:[%s2 + $0x50] sm:$0xff]
  %v5505 = vld [vmem:[%s2 + $0x58] sm:$0xff]
  %v5506 = vld [vmem:[%s2 + $0x60] sm:$0xff]
  %v5507 = vld [vmem:[%s2 + $0x68] sm:$0xff]
  %v5508 = vld [vmem:[%s2 + $0x70] sm:$0xff]
  %v5509 = vld [vmem:[%s2 + $0x78] sm:$0xff]
  %v5510 = vld [vmem:[%s2 + $0x80] sm:$0xff]
  %v5511 = vld [vmem:[%s2 + $0x88] sm:$0xff]
  %v5512 = vld [vmem:[%s2 + $0x90] sm:$0xff]
  %v5513 = vld [vmem:[%s2 + $0x98] sm:$0xff]
  %v5514 = vld [vmem:[%s2 + $0xa0] sm:$0xff]
  %v5515 = vld [vmem:[%s2 + $0xa8] sm:$0xff]
  %v5516 = vld [vmem:[%s2 + $0xb0] sm:$0xff]
  %v5517 = vld [vmem:[%s2 + $0xb8] sm:$0xff]
  %v5518 = vld [vmem:[%s2 + $0xc0] sm:$0xff]
  %v5519 = vld [vmem:[%s2 + $0xc8] sm:$0xff]
  %v5520 = vld [vmem:[%s2 + $0xd0] sm:$0xff]
  %v5521 = vld [vmem:[%s2 + $0xd8] sm:$0xff]
  %v5522 = vld [vmem:[%s2 + $0xe0] sm:$0xff]
  %v5523 = vld [vmem:[%s2 + $0xe8] sm:$0xff]
  %v5524 = vld [vmem:[%s2 + $0xf0] sm:$0xff]
  %v5525 = vld [vmem:[%s2 + $0xf8] sm:$0xff]
  %v5526 = vld [vmem:[%s2 + $0x100] sm:$0xff]
  %v5527 = vld [vmem:[%s2 + $0x108] sm:$0xff]
  %v5528 = vld [vmem:[%s2 + $0x110] sm:$0xff]
  %v5529 = vld [vmem:[%s2 + $0x118] sm:$0xff]
  %v5530 = vld [vmem:[%s2 + $0x120] sm:$0xff]
  %v5531 = vld [vmem:[%s2 + $0x128] sm:$0xff]
  %v5532 = vld [vmem:[%s2 + $0x130] sm:$0xff]
  %v5533 = vld [vmem:[%s2 + $0x138] sm:$0xff]
  %v5534 = vld [vmem:[%s2 + $0x140] sm:$0xff]
  %v5535 = vld [vmem:[%s2 + $0x148] sm:$0xff]
  %v5536 = vld [vmem:[%s2 + $0x150] sm:$0xff]
  %v5537 = vld [vmem:[%s2 + $0x158] sm:$0xff]
  %v5538 = vld [vmem:[%s2 + $0x160] sm:$0xff]
  %v5539 = vld [vmem:[%s2 + $0x168] sm:$0xff]
  %v5540 = vld [vmem:[%s2 + $0x170] sm:$0xff]
  %v5541 = vld [vmem:[%s2 + $0x178] sm:$0xff]
  %v5542 = vld [vmem:[%s2 + $0x180] sm:$0xff]
  %v5543 = vld [vmem:[%s2 + $0x188] sm:$0xff]
  %v5544 = vld [vmem:[%s2 + $0x190] sm:$0xff]
  %v5545 = vld [vmem:[%s2 + $0x198] sm:$0xff]
  %v5546 = vld [vmem:[%s2 + $0x1a0] sm:$0xff]
  %v5547 = vld [vmem:[%s2 + $0x1a8] sm:$0xff]
  %v5548 = vld [vmem:[%s2 + $0x1b0] sm:$0xff]
  %v5549 = vld [vmem:[%s2 + $0x1b8] sm:$0xff]
  %v5550 = vld [vmem:[%s2 + $0x1c0] sm:$0xff]
  %v5551 = vld [vmem:[%s2 + $0x1c8] sm:$0xff]
  %v5552 = vld [vmem:[%s2 + $0x1d0] sm:$0xff]
  %v5553 = vld [vmem:[%s2 + $0x1d8] sm:$0xff]
  %v5554 = vld [vmem:[%s2 + $0x1e0] sm:$0xff]
  %v5555 = vld [vmem:[%s2 + $0x1e8] sm:$0xff]
  %v5556 = vld [vmem:[%s2 + $0x1f0] sm:$0xff]
  %v5557 = vld [vmem:[%s2 + $0x1f8] sm:$0xff]
  %v5558 = vadd.f32 %v5430, %v5494
  %v5559 = vadd.f32 %v5431, %v5495
  %v5560 = vadd.f32 %v5432, %v5496
  %v5561 = vadd.f32 %v5433, %v5497
  %v5562 = vadd.f32 %v5434, %v5498
  %v5563 = vadd.f32 %v5435, %v5499
  %v5564 = vadd.f32 %v5436, %v5500
  %v5565 = vadd.f32 %v5437, %v5501
  %v5566 = vadd.f32 %v5438, %v5502
  %v5567 = vadd.f32 %v5439, %v5503
  %v5568 = vadd.f32 %v5440, %v5504
  %v5569 = vadd.f32 %v5441, %v5505
  %v5570 = vadd.f32 %v5442, %v5506
  %v5571 = vadd.f32 %v5443, %v5507
  %v5572 = vadd.f32 %v5444, %v5508
  %v5573 = vadd.f32 %v5445, %v5509
  %v5574 = vadd.f32 %v5446, %v5510
  %v5575 = vadd.f32 %v5447, %v5511
  %v5576 = vadd.f32 %v5448, %v5512
  %v5577 = vadd.f32 %v5449, %v5513
  %v5578 = vadd.f32 %v5450, %v5514
  %v5579 = vadd.f32 %v5451, %v5515
  %v5580 = vadd.f32 %v5452, %v5516
  %v5581 = vadd.f32 %v5453, %v5517
  %v5582 = vadd.f32 %v5454, %v5518
  %v5583 = vadd.f32 %v5455, %v5519
  %v5584 = vadd.f32 %v5456, %v5520
  %v5585 = vadd.f32 %v5457, %v5521
  %v5586 = vadd.f32 %v5458, %v5522
  %v5587 = vadd.f32 %v5459, %v5523
  %v5588 = vadd.f32 %v5460, %v5524
  %v5589 = vadd.f32 %v5461, %v5525
  %v5590 = vadd.f32 %v5462, %v5526
  %v5591 = vadd.f32 %v5463, %v5527
  %v5592 = vadd.f32 %v5464, %v5528
  %v5593 = vadd.f32 %v5465, %v5529
  %v5594 = vadd.f32 %v5466, %v5530
  %v5595 = vadd.f32 %v5467, %v5531
  %v5596 = vadd.f32 %v5468, %v5532
  %v5597 = vadd.f32 %v5469, %v5533
  %v5598 = vadd.f32 %v5470, %v5534
  %v5599 = vadd.f32 %v5471, %v5535
  %v5600 = vadd.f32 %v5472, %v5536
  %v5601 = vadd.f32 %v5473, %v5537
  %v5602 = vadd.f32 %v5474, %v5538
  %v5603 = vadd.f32 %v5475, %v5539
  %v5604 = vadd.f32 %v5476, %v5540
  %v5605 = vadd.f32 %v5477, %v5541
  %v5606 = vadd.f32 %v5478, %v5542
  %v5607 = vadd.f32 %v5479, %v5543
  %v5608 = vadd.f32 %v5480, %v5544
  %v5609 = vadd.f32 %v5481, %v5545
  %v5610 = vadd.f32 %v5482, %v5546
  %v5611 = vadd.f32 %v5483, %v5547
  %v5612 = vadd.f32 %v5484, %v5548
  %v5613 = vadd.f32 %v5485, %v5549
  %v5614 = vadd.f32 %v5486, %v5550
  %v5615 = vadd.f32 %v5487, %v5551
  %v5616 = vadd.f32 %v5488, %v5552
  %v5617 = vadd.f32 %v5489, %v5553
  %v5618 = vadd.f32 %v5490, %v5554
  %v5619 = vadd.f32 %v5491, %v5555
  %v5620 = vadd.f32 %v5492, %v5556
  %v5621 = vadd.f32 %v5493, %v5557
  %5622 = vst.msk [vmem:[%s8] sm:$0xff] %vm1036, %v2983
  %5623 = vst.msk [vmem:[%s8 + $0x8] sm:$0xff] %vm1036, %v2984
  %5624 = vst.msk [vmem:[%s8 + $0x10] sm:$0xff] %vm1036, %v2985
  %5625 = vst.msk [vmem:[%s8 + $0x18] sm:$0xff] %vm1036, %v2986
  %5626 = vst.msk [vmem:[%s8 + $0x20] sm:$0xff] %vm1036, %v2987
  %5627 = vst.msk [vmem:[%s8 + $0x28] sm:$0xff] %vm1036, %v2988
  %5628 = vst.msk [vmem:[%s8 + $0x30] sm:$0xff] %vm1036, %v2989
  %5629 = vst.msk [vmem:[%s8 + $0x38] sm:$0xff] %vm1036, %v2990
  %5630 = vst.msk [vmem:[%s8 + $0x40] sm:$0xff] %vm1036, %v2991
  %5631 = vst.msk [vmem:[%s8 + $0x48] sm:$0xff] %vm1036, %v2992
  %5632 = vst.msk [vmem:[%s8 + $0x50] sm:$0xff] %vm1036, %v2993
  %5633 = vst.msk [vmem:[%s8 + $0x58] sm:$0xff] %vm1036, %v2994
  %5634 = vst.msk [vmem:[%s8 + $0x60] sm:$0xff] %vm1036, %v2995
  %5635 = vst.msk [vmem:[%s8 + $0x68] sm:$0xff] %vm1036, %v2996
  %5636 = vst.msk [vmem:[%s8 + $0x70] sm:$0xff] %vm1036, %v2997
  %5637 = vst.msk [vmem:[%s8 + $0x78] sm:$0xff] %vm1036, %v2998
  %5638 = vst.msk [vmem:[%s8 + $0x80] sm:$0xff] %vm1036, %v2999
  %5639 = vst.msk [vmem:[%s8 + $0x88] sm:$0xff] %vm1036, %v3000
  %5640 = vst.msk [vmem:[%s8 + $0x90] sm:$0xff] %vm1036, %v3001
  %5641 = vst.msk [vmem:[%s8 + $0x98] sm:$0xff] %vm1036, %v3002
  %5642 = vst.msk [vmem:[%s8 + $0xa0] sm:$0xff] %vm1036, %v3003
  %5643 = vst.msk [vmem:[%s8 + $0xa8] sm:$0xff] %vm1036, %v3004
  %5644 = vst.msk [vmem:[%s8 + $0xb0] sm:$0xff] %vm1036, %v3005
  %5645 = vst.msk [vmem:[%s8 + $0xb8] sm:$0xff] %vm1036, %v3006
  %5646 = vst.msk [vmem:[%s8 + $0xc0] sm:$0xff] %vm1036, %v3007
  %5647 = vst.msk [vmem:[%s8 + $0xc8] sm:$0xff] %vm1036, %v3008
  %5648 = vst.msk [vmem:[%s8 + $0xd0] sm:$0xff] %vm1036, %v3009
  %5649 = vst.msk [vmem:[%s8 + $0xd8] sm:$0xff] %vm1036, %v3010
  %5650 = vst.msk [vmem:[%s8 + $0xe0] sm:$0xff] %vm1036, %v3011
  %5651 = vst.msk [vmem:[%s8 + $0xe8] sm:$0xff] %vm1036, %v3012
  %5652 = vst.msk [vmem:[%s8 + $0xf0] sm:$0xff] %vm1036, %v3013
  %5653 = vst.msk [vmem:[%s8 + $0xf8] sm:$0xff] %vm1036, %v3014
  %5654 = vst.msk [vmem:[%s8 + $0x100] sm:$0xff] %vm1036, %v3015
  %5655 = vst.msk [vmem:[%s8 + $0x108] sm:$0xff] %vm1036, %v3016
  %5656 = vst.msk [vmem:[%s8 + $0x110] sm:$0xff] %vm1036, %v3017
  %5657 = vst.msk [vmem:[%s8 + $0x118] sm:$0xff] %vm1036, %v3018
  %5658 = vst.msk [vmem:[%s8 + $0x120] sm:$0xff] %vm1036, %v3019
  %5659 = vst.msk [vmem:[%s8 + $0x128] sm:$0xff] %vm1036, %v3020
  %5660 = vst.msk [vmem:[%s8 + $0x130] sm:$0xff] %vm1036, %v3021
  %5661 = vst.msk [vmem:[%s8 + $0x138] sm:$0xff] %vm1036, %v3022
  %5662 = vst.msk [vmem:[%s8 + $0x140] sm:$0xff] %vm1036, %v3023
  %5663 = vst.msk [vmem:[%s8 + $0x148] sm:$0xff] %vm1036, %v3024
  %5664 = vst.msk [vmem:[%s8 + $0x150] sm:$0xff] %vm1036, %v3025
  %5665 = vst.msk [vmem:[%s8 + $0x158] sm:$0xff] %vm1036, %v3026
  %5666 = vst.msk [vmem:[%s8 + $0x160] sm:$0xff] %vm1036, %v3027
  %5667 = vst.msk [vmem:[%s8 + $0x168] sm:$0xff] %vm1036, %v3028
  %5668 = vst.msk [vmem:[%s8 + $0x170] sm:$0xff] %vm1036, %v3029
  %5669 = vst.msk [vmem:[%s8 + $0x178] sm:$0xff] %vm1036, %v3030
  %5670 = vst.msk [vmem:[%s8 + $0x180] sm:$0xff] %vm1036, %v3031
  %5671 = vst.msk [vmem:[%s8 + $0x188] sm:$0xff] %vm1036, %v3032
  %5672 = vst.msk [vmem:[%s8 + $0x190] sm:$0xff] %vm1036, %v3033
  %5673 = vst.msk [vmem:[%s8 + $0x198] sm:$0xff] %vm1036, %v3034
  %5674 = vst.msk [vmem:[%s8 + $0x1a0] sm:$0xff] %vm1036, %v3035
  %5675 = vst.msk [vmem:[%s8 + $0x1a8] sm:$0xff] %vm1036, %v3036
  %5676 = vst.msk [vmem:[%s8 + $0x1b0] sm:$0xff] %vm1036, %v3037
  %5677 = vst.msk [vmem:[%s8 + $0x1b8] sm:$0xff] %vm1036, %v3038
  %5678 = vst.msk [vmem:[%s8 + $0x1c0] sm:$0xff] %vm1036, %v3039
  %5679 = vst.msk [vmem:[%s8 + $0x1c8] sm:$0xff] %vm1036, %v3040
  %5680 = vst.msk [vmem:[%s8 + $0x1d0] sm:$0xff] %vm1036, %v3041
  %5681 = vst.msk [vmem:[%s8 + $0x1d8] sm:$0xff] %vm1036, %v3042
  %5682 = vst.msk [vmem:[%s8 + $0x1e0] sm:$0xff] %vm1036, %v3043
  %5683 = vst.msk [vmem:[%s8 + $0x1e8] sm:$0xff] %vm1036, %v3044
  %5684 = vst.msk [vmem:[%s8 + $0x1f0] sm:$0xff] %vm1036, %v3045
  %5685 = vst.msk [vmem:[%s8 + $0x1f8] sm:$0xff] %vm1036, %v3046
  %5750 = vrot.lane.b32.xlu0 %v5558, 32
  %v5751 = vpop.permute.xlu0 %5750
  %5752 = vrot.lane.b32.xlu0 %v5559, 32
  %v5753 = vpop.permute.xlu0 %5752
  %5754 = vrot.lane.b32.xlu0 %v5560, 32
  %v5755 = vpop.permute.xlu0 %5754
  %5756 = vrot.lane.b32.xlu0 %v5561, 32
  %v5757 = vpop.permute.xlu0 %5756
  %5758 = vrot.lane.b32.xlu0 %v5562, 32
  %v5759 = vpop.permute.xlu0 %5758
  %5760 = vrot.lane.b32.xlu0 %v5563, 32
  %v5761 = vpop.permute.xlu0 %5760
  %5762 = vrot.lane.b32.xlu0 %v5564, 32
  %v5763 = vpop.permute.xlu0 %5762
  %5764 = vrot.lane.b32.xlu0 %v5565, 32
  %v5765 = vpop.permute.xlu0 %5764
  %5766 = vrot.lane.b32.xlu0 %v5566, 32
  %v5767 = vpop.permute.xlu0 %5766
  %5768 = vrot.lane.b32.xlu0 %v5567, 32
  %v5769 = vpop.permute.xlu0 %5768
  %5770 = vrot.lane.b32.xlu0 %v5568, 32
  %v5771 = vpop.permute.xlu0 %5770
  %5772 = vrot.lane.b32.xlu0 %v5569, 32
  %v5773 = vpop.permute.xlu0 %5772
  %5774 = vrot.lane.b32.xlu0 %v5570, 32
  %v5775 = vpop.permute.xlu0 %5774
  %5776 = vrot.lane.b32.xlu0 %v5571, 32
  %v5777 = vpop.permute.xlu0 %5776
  %5778 = vrot.lane.b32.xlu0 %v5572, 32
  %v5779 = vpop.permute.xlu0 %5778
  %5780 = vrot.lane.b32.xlu0 %v5573, 32
  %v5781 = vpop.permute.xlu0 %5780
  %5782 = vrot.lane.b32.xlu0 %v5574, 32
  %v5783 = vpop.permute.xlu0 %5782
  %5784 = vrot.lane.b32.xlu0 %v5575, 32
  %v5785 = vpop.permute.xlu0 %5784
  %5786 = vrot.lane.b32.xlu0 %v5576, 32
  %v5787 = vpop.permute.xlu0 %5786
  %5788 = vrot.lane.b32.xlu0 %v5577, 32
  %v5789 = vpop.permute.xlu0 %5788
  %5790 = vrot.lane.b32.xlu0 %v5578, 32
  %v5791 = vpop.permute.xlu0 %5790
  %5792 = vrot.lane.b32.xlu0 %v5579, 32
  %v5793 = vpop.permute.xlu0 %5792
  %5794 = vrot.lane.b32.xlu0 %v5580, 32
  %v5795 = vpop.permute.xlu0 %5794
  %5796 = vrot.lane.b32.xlu0 %v5581, 32
  %v5797 = vpop.permute.xlu0 %5796
  %5798 = vrot.lane.b32.xlu0 %v5582, 32
  %v5799 = vpop.permute.xlu0 %5798
  %5800 = vrot.lane.b32.xlu0 %v5583, 32
  %v5801 = vpop.permute.xlu0 %5800
  %5802 = vrot.lane.b32.xlu0 %v5584, 32
  %v5803 = vpop.permute.xlu0 %5802
  %5804 = vrot.lane.b32.xlu0 %v5585, 32
  %v5805 = vpop.permute.xlu0 %5804
  %5806 = vrot.lane.b32.xlu0 %v5586, 32
  %v5807 = vpop.permute.xlu0 %5806
  %5808 = vrot.lane.b32.xlu0 %v5587, 32
  %v5809 = vpop.permute.xlu0 %5808
  %5810 = vrot.lane.b32.xlu0 %v5588, 32
  %v5811 = vpop.permute.xlu0 %5810
  %5812 = vrot.lane.b32.xlu0 %v5589, 32
  %v5813 = vpop.permute.xlu0 %5812
  %5814 = vrot.lane.b32.xlu0 %v5590, 32
  %v5815 = vpop.permute.xlu0 %5814
  %5816 = vrot.lane.b32.xlu0 %v5591, 32
  %v5817 = vpop.permute.xlu0 %5816
  %5818 = vrot.lane.b32.xlu0 %v5592, 32
  %v5819 = vpop.permute.xlu0 %5818
  %5820 = vrot.lane.b32.xlu0 %v5593, 32
  %v5821 = vpop.permute.xlu0 %5820
  %5822 = vrot.lane.b32.xlu0 %v5594, 32
  %v5823 = vpop.permute.xlu0 %5822
  %5824 = vrot.lane.b32.xlu0 %v5595, 32
  %v5825 = vpop.permute.xlu0 %5824
  %5826 = vrot.lane.b32.xlu0 %v5596, 32
  %v5827 = vpop.permute.xlu0 %5826
  %5828 = vrot.lane.b32.xlu0 %v5597, 32
  %v5829 = vpop.permute.xlu0 %5828
  %5830 = vrot.lane.b32.xlu0 %v5598, 32
  %v5831 = vpop.permute.xlu0 %5830
  %5832 = vrot.lane.b32.xlu0 %v5599, 32
  %v5833 = vpop.permute.xlu0 %5832
  %5834 = vrot.lane.b32.xlu0 %v5600, 32
  %v5835 = vpop.permute.xlu0 %5834
  %5836 = vrot.lane.b32.xlu0 %v5601, 32
  %v5837 = vpop.permute.xlu0 %5836
  %5838 = vrot.lane.b32.xlu0 %v5602, 32
  %v5839 = vpop.permute.xlu0 %5838
  %5840 = vrot.lane.b32.xlu0 %v5603, 32
  %v5841 = vpop.permute.xlu0 %5840
  %5842 = vrot.lane.b32.xlu0 %v5604, 32
  %v5843 = vpop.permute.xlu0 %5842
  %5844 = vrot.lane.b32.xlu0 %v5605, 32
  %v5845 = vpop.permute.xlu0 %5844
  %5846 = vrot.lane.b32.xlu0 %v5606, 32
  %v5847 = vpop.permute.xlu0 %5846
  %5848 = vrot.lane.b32.xlu0 %v5607, 32
  %v5849 = vpop.permute.xlu0 %5848
  %5850 = vrot.lane.b32.xlu0 %v5608, 32
  %v5851 = vpop.permute.xlu0 %5850
  %5852 = vrot.lane.b32.xlu0 %v5609, 32
  %v5853 = vpop.permute.xlu0 %5852
  %5854 = vrot.lane.b32.xlu0 %v5610, 32
  %v5855 = vpop.permute.xlu0 %5854
  %5856 = vrot.lane.b32.xlu0 %v5611, 32
  %v5857 = vpop.permute.xlu0 %5856
  %5858 = vrot.lane.b32.xlu0 %v5612, 32
  %v5859 = vpop.permute.xlu0 %5858
  %5860 = vrot.lane.b32.xlu0 %v5613, 32
  %v5861 = vpop.permute.xlu0 %5860
  %5862 = vrot.lane.b32.xlu0 %v5614, 32
  %v5863 = vpop.permute.xlu0 %5862
  %5864 = vrot.lane.b32.xlu0 %v5615, 32
  %v5865 = vpop.permute.xlu0 %5864
  %5866 = vrot.lane.b32.xlu0 %v5616, 32
  %v5867 = vpop.permute.xlu0 %5866
  %5868 = vrot.lane.b32.xlu0 %v5617, 32
  %v5869 = vpop.permute.xlu0 %5868
  %5870 = vrot.lane.b32.xlu0 %v5618, 32
  %v5871 = vpop.permute.xlu0 %5870
  %5872 = vrot.lane.b32.xlu0 %v5619, 32
  %v5873 = vpop.permute.xlu0 %5872
  %5874 = vrot.lane.b32.xlu0 %v5620, 32
  %v5875 = vpop.permute.xlu0 %5874
  %5876 = vrot.lane.b32.xlu0 %v5621, 32
  %v5877 = vpop.permute.xlu0 %5876
  %vm5942 = vcmask 523520
  %5943 = vst.msk [vmem:[%s8] sm:$0xff] %vm5942, %v5751
  %5944 = vst.msk [vmem:[%s8 + $0x8] sm:$0xff] %vm5942, %v5753
  %5945 = vst.msk [vmem:[%s8 + $0x10] sm:$0xff] %vm5942, %v5755
  %5946 = vst.msk [vmem:[%s8 + $0x18] sm:$0xff] %vm5942, %v5757
  %5947 = vst.msk [vmem:[%s8 + $0x20] sm:$0xff] %vm5942, %v5759
  %5948 = vst.msk [vmem:[%s8 + $0x28] sm:$0xff] %vm5942, %v5761
  %5949 = vst.msk [vmem:[%s8 + $0x30] sm:$0xff] %vm5942, %v5763
  %5950 = vst.msk [vmem:[%s8 + $0x38] sm:$0xff] %vm5942, %v5765
  %5951 = vst.msk [vmem:[%s8 + $0x40] sm:$0xff] %vm5942, %v5767
  %5952 = vst.msk [vmem:[%s8 + $0x48] sm:$0xff] %vm5942, %v5769
  %5953 = vst.msk [vmem:[%s8 + $0x50] sm:$0xff] %vm5942, %v5771
  %5954 = vst.msk [vmem:[%s8 + $0x58] sm:$0xff] %vm5942, %v5773
  %5955 = vst.msk [vmem:[%s8 + $0x60] sm:$0xff] %vm5942, %v5775
  %5956 = vst.msk [vmem:[%s8 + $0x68] sm:$0xff] %vm5942, %v5777
  %5957 = vst.msk [vmem:[%s8 + $0x70] sm:$0xff] %vm5942, %v5779
  %5958 = vst.msk [vmem:[%s8 + $0x78] sm:$0xff] %vm5942, %v5781
  %5959 = vst.msk [vmem:[%s8 + $0x80] sm:$0xff] %vm5942, %v5783
  %5960 = vst.msk [vmem:[%s8 + $0x88] sm:$0xff] %vm5942, %v5785
  %5961 = vst.msk [vmem:[%s8 + $0x90] sm:$0xff] %vm5942, %v5787
  %5962 = vst.msk [vmem:[%s8 + $0x98] sm:$0xff] %vm5942, %v5789
  %5963 = vst.msk [vmem:[%s8 + $0xa0] sm:$0xff] %vm5942, %v5791
  %5964 = vst.msk [vmem:[%s8 + $0xa8] sm:$0xff] %vm5942, %v5793
  %5965 = vst.msk [vmem:[%s8 + $0xb0] sm:$0xff] %vm5942, %v5795
  %5966 = vst.msk [vmem:[%s8 + $0xb8] sm:$0xff] %vm5942, %v5797
  %5967 = vst.msk [vmem:[%s8 + $0xc0] sm:$0xff] %vm5942, %v5799
  %5968 = vst.msk [vmem:[%s8 + $0xc8] sm:$0xff] %vm5942, %v5801
  %5969 = vst.msk [vmem:[%s8 + $0xd0] sm:$0xff] %vm5942, %v5803
  %5970 = vst.msk [vmem:[%s8 + $0xd8] sm:$0xff] %vm5942, %v5805
  %5971 = vst.msk [vmem:[%s8 + $0xe0] sm:$0xff] %vm5942, %v5807
  %5972 = vst.msk [vmem:[%s8 + $0xe8] sm:$0xff] %vm5942, %v5809
  %5973 = vst.msk [vmem:[%s8 + $0xf0] sm:$0xff] %vm5942, %v5811
  %5974 = vst.msk [vmem:[%s8 + $0xf8] sm:$0xff] %vm5942, %v5813
  %5975 = vst.msk [vmem:[%s8 + $0x100] sm:$0xff] %vm5942, %v5815
  %5976 = vst.msk [vmem:[%s8 + $0x108] sm:$0xff] %vm5942, %v5817
  %5977 = vst.msk [vmem:[%s8 + $0x110] sm:$0xff] %vm5942, %v5819
  %5978 = vst.msk [vmem:[%s8 + $0x118] sm:$0xff] %vm5942, %v5821
  %5979 = vst.msk [vmem:[%s8 + $0x120] sm:$0xff] %vm5942, %v5823
  %5980 = vst.msk [vmem:[%s8 + $0x128] sm:$0xff] %vm5942, %v5825
  %5981 = vst.msk [vmem:[%s8 + $0x130] sm:$0xff] %vm5942, %v5827
  %5982 = vst.msk [vmem:[%s8 + $0x138] sm:$0xff] %vm5942, %v5829
  %5983 = vst.msk [vmem:[%s8 + $0x140] sm:$0xff] %vm5942, %v5831
  %5984 = vst.msk [vmem:[%s8 + $0x148] sm:$0xff] %vm5942, %v5833
  %5985 = vst.msk [vmem:[%s8 + $0x150] sm:$0xff] %vm5942, %v5835
  %5986 = vst.msk [vmem:[%s8 + $0x158] sm:$0xff] %vm5942, %v5837
  %5987 = vst.msk [vmem:[%s8 + $0x160] sm:$0xff] %vm5942, %v5839
  %5988 = vst.msk [vmem:[%s8 + $0x168] sm:$0xff] %vm5942, %v5841
  %5989 = vst.msk [vmem:[%s8 + $0x170] sm:$0xff] %vm5942, %v5843
  %5990 = vst.msk [vmem:[%s8 + $0x178] sm:$0xff] %vm5942, %v5845
  %5991 = vst.msk [vmem:[%s8 + $0x180] sm:$0xff] %vm5942, %v5847
  %5992 = vst.msk [vmem:[%s8 + $0x188] sm:$0xff] %vm5942, %v5849
  %5993 = vst.msk [vmem:[%s8 + $0x190] sm:$0xff] %vm5942, %v5851
  %5994 = vst.msk [vmem:[%s8 + $0x198] sm:$0xff] %vm5942, %v5853
  %5995 = vst.msk [vmem:[%s8 + $0x1a0] sm:$0xff] %vm5942, %v5855
  %5996 = vst.msk [vmem:[%s8 + $0x1a8] sm:$0xff] %vm5942, %v5857
  %5997 = vst.msk [vmem:[%s8 + $0x1b0] sm:$0xff] %vm5942, %v5859
  %5998 = vst.msk [vmem:[%s8 + $0x1b8] sm:$0xff] %vm5942, %v5861
  %5999 = vst.msk [vmem:[%s8 + $0x1c0] sm:$0xff] %vm5942, %v5863
  %6000 = vst.msk [vmem:[%s8 + $0x1c8] sm:$0xff] %vm5942, %v5865
  %6001 = vst.msk [vmem:[%s8 + $0x1d0] sm:$0xff] %vm5942, %v5867
  %6002 = vst.msk [vmem:[%s8 + $0x1d8] sm:$0xff] %vm5942, %v5869
  %6003 = vst.msk [vmem:[%s8 + $0x1e0] sm:$0xff] %vm5942, %v5871
  %6004 = vst.msk [vmem:[%s8 + $0x1e8] sm:$0xff] %vm5942, %v5873
  %6005 = vst.msk [vmem:[%s8 + $0x1f0] sm:$0xff] %vm5942, %v5875
  %6006 = vst.msk [vmem:[%s8 + $0x1f8] sm:$0xff] %vm5942, %v5877
  // Predicated region
  $region34: #{tpu_custom_call.1} parent=0 // pred_check
    _
  $region35: #{tpu_custom_call.1} parent=0 // pred_check_branch
    %6008 = sbr.rel (0) target = $region37
  $region36: #{tpu_custom_call.1} parent=0 // pred_region
    _
  $region37: #{tpu_custom_call.1} parent=0 // pred_fallthru
    _
  // Predicated region
  $region38: #{tpu_custom_call.1} parent=0 // pred_check
    _
  $region39: #{tpu_custom_call.1} parent=0 // pred_check_branch
    %6010 = sbr.rel (0) target = $region41
  $region40: #{tpu_custom_call.1} parent=0 // pred_region
    _
  $region41: #{tpu_custom_call.1} parent=0 // pred_fallthru
    _

</llo_original>
